<compile_context>
chip_gen: v7x
topology: tpu7x:2x2x1
jax: 0.10.0
libtpu: 0.0.40
codegen_flags: <defaults>
</compile_context>

<pallas_src>
import functools
import math

import jax
import jax.numpy as jnp
from jax import lax
from jax.experimental import pallas as pl
from jax.experimental.pallas import tpu as pltpu

MM_DTYPE = jnp.bfloat16      # matmul-input dtype (MXU native)


# ----------------------------------------------------------------------------
# Small helpers
# ----------------------------------------------------------------------------
def _nbytes(shape, dtype):
    return math.prod(shape) * jnp.dtype(dtype).itemsize


def _lane_pad(n):
    return ((n + 127) // 128) * 128


def _pick_tile(S, target):
    """Largest multiple-of-8 divisor of S that is <= target (or S itself)."""
    if S <= target:
        return S
    t = (target // 8) * 8
    while t >= 8:
        if S % t == 0:
            return t
        t -= 8
    return S


def _vmem_cap_bytes():
    try:
        info = pltpu.get_tpu_info()
        cap = getattr(info, "vmem_capacity_bytes", None)
        if cap:
            return int(cap)
    except Exception:
        pass
    return 128 << 20


def _vmem_limit(est):
    # Generation-aware: ~78% of physical VMEM (~100 MiB on v5e/v6e, ~50 MiB on v7x).
    budget = (_vmem_cap_bytes() * 25) // 32
    return int(min(max(int(est), 32 << 20), budget))


def _q_tile_target():
    # 512 query rows on 128 MiB-VMEM parts (v5e/v6e), 256 on 64 MiB parts (v7x).
    return 512 if _vmem_cap_bytes() >= (96 << 20) else 256


# ----------------------------------------------------------------------------
# pipeline_mode=pl.Buffered(1) capability probe (run eagerly, outside jit)
# ----------------------------------------------------------------------------
_WEIGHT_PIPELINE_MODE = "unset"


def probe_weight_pipeline_mode():
    """If this jax/Mosaic supports single-buffered grid-invariant blocks, use it:
    halves VMEM for the (potentially ~20 MiB) weight set in every layer kernel."""
    global _WEIGHT_PIPELINE_MODE
    if _WEIGHT_PIPELINE_MODE != "unset":
        return _WEIGHT_PIPELINE_MODE
    mode = None
    try:
        spec = pl.BlockSpec((8, 128), lambda i: (0, 0), pipeline_mode=pl.Buffered(1))

        def _probe(x_ref, o_ref):
            o_ref[...] = x_ref[...] + 1.0

        out = pl.pallas_call(
            _probe,
            out_shape=jax.ShapeDtypeStruct((8, 128), jnp.float32),
            grid=(2,),
            in_specs=[spec],
            out_specs=pl.BlockSpec((8, 128), lambda i: (0, 0)),
        )(jnp.zeros((8, 128), jnp.float32))
        jax.block_until_ready(out)
        mode = pl.Buffered(1)
    except Exception:
        mode = None
    _WEIGHT_PIPELINE_MODE = mode
    return mode


def _cached_weight_mode():
    return None if _WEIGHT_PIPELINE_MODE == "unset" else _WEIGHT_PIPELINE_MODE


def _const_spec(shape, ngrid):
    """Grid-invariant block (weights / biases / LN params), single-buffered if possible."""
    zeros = (0,) * len(shape)
    if ngrid == 2:
        imap = lambda b, i: zeros
    else:
        imap = lambda b, i, j: zeros
    pm = _cached_weight_mode()
    if pm is None:
        return pl.BlockSpec(shape, imap)
    return pl.BlockSpec(shape, imap, pipeline_mode=pm)


# ----------------------------------------------------------------------------
# Kernel 1: fused K/V projection, S-tiled, head-batched output layout
# ----------------------------------------------------------------------------
def _kv_proj_kernel(x_ref, wkv_ref, k_ref, v_ref, *, num_heads, dim_heads):
    HD = num_heads * dim_heads
    mm_dt = wkv_ref.dtype
    x = x_ref[0].astype(mm_dt)                                            # (ts, D)
    kv = jnp.dot(x, wkv_ref[...], preferred_element_type=jnp.float32)     # (ts, 2*HD)
    for h in range(num_heads):
        lo = h * dim_heads
        k_ref[0, h, :, :] = kv[:, lo:lo + dim_heads].astype(mm_dt)
        v_ref[0, h, :, :] = kv[:, HD + lo:HD + lo + dim_heads].astype(mm_dt)


def kv_project(x, wkv, *, num_heads, dim_heads, s_tile=512):
    B, S, D = x.shape
    HD = num_heads * dim_heads
    mm_dt = wkv.dtype
    ts = _pick_tile(S, s_tile)
    ns = S // ts
    dh_l = _lane_pad(dim_heads)

    wf = 1 if _cached_weight_mode() is not None else 2
    est = (wf * _nbytes((D, 2 * HD), mm_dt)
           + 2 * _nbytes((1, ts, D), jnp.float32)
           + 4 * _nbytes((1, num_heads, ts, dh_l), mm_dt)
           + 2 * _nbytes((ts, 2 * HD), jnp.float32)
           + (8 << 20))

    kernel = functools.partial(_kv_proj_kernel, num_heads=num_heads, dim_heads=dim_heads)
    return pl.pallas_call(
        kernel,
        out_shape=(jax.ShapeDtypeStruct((B, num_heads, S, dim_heads), mm_dt),
                   jax.ShapeDtypeStruct((B, num_heads, S, dim_heads), mm_dt)),
        grid=(B, ns),
        in_specs=[pl.BlockSpec((1, ts, D), lambda b, si: (b, si, 0)),
                  _const_spec((D, 2 * HD), 2)],
        out_specs=(pl.BlockSpec((1, num_heads, ts, dim_heads), lambda b, si: (b, 0, si, 0)),
                   pl.BlockSpec((1, num_heads, ts, dim_heads), lambda b, si: (b, 0, si, 0))),
        compiler_params=pltpu.CompilerParams(
            dimension_semantics=("parallel", "parallel"),
            vmem_limit_bytes=_vmem_limit(est)),
    )(x, wkv)


# ----------------------------------------------------------------------------
# Kernel 2: flash-style causal MHA + out-proj + residual + LN + FFN + residual + LN
# grid = (B, num_q_tiles, num_k_tiles); K axis is the reduction ("arbitrary").
# ----------------------------------------------------------------------------
def _attn_ffn_kernel(x_ref, wq_ref, k_ref, v_ref, wo_ref, w1_ref, b1_ref,
                     w2_ref, b2_ref, g1_ref, be1_ref, g2_ref, be2_ref,
                     o_ref,
                     q_scr, m_scr, l_scr, acc_scr, ho_scr,
                     *, num_heads, dim_heads, tq, tk, eps):
    qi = pl.program_id(1)
    ki = pl.program_id(2)
    nk = pl.num_programs(2)
    mm_dt = wq_ref.dtype
    q_start = qi * tq
    k_start = ki * tk

    # ---- per-(b, qi) init: Q projection (1/sqrt(dh) folded into Wq) + flash state ----
    @pl.when(ki == 0)
    def _():
        x = x_ref[0].astype(mm_dt)                                            # (tq, D)
        q = jnp.dot(x, wq_ref[...], preferred_element_type=jnp.float32)       # (tq, HD)
        for h in range(num_heads):
            lo = h * dim_heads
            q_scr[h] = q[:, lo:lo + dim_heads].astype(mm_dt)
        m_scr[...] = jnp.full(m_scr.shape, -jnp.inf, m_scr.dtype)
        l_scr[...] = jnp.zeros(l_scr.shape, l_scr.dtype)
        acc_scr[...] = jnp.zeros(acc_scr.shape, acc_scr.dtype)

    # ---- online-softmax update; K tiles fully above the causal diagonal are skipped ----
    @pl.when(k_start <= q_start + tq - 1)
    def _():
        k = k_ref[0]                                                          # (H, tk, dh)
        v = v_ref[0]
        s = lax.dot_general(q_scr[...], k, (((2,), (2,)), ((0,), (0,))),
                            preferred_element_type=jnp.float32)               # (H, tq, tk)
        row = q_start + lax.broadcasted_iota(jnp.int32, (tq, tk), 0)
        col = k_start + lax.broadcasted_iota(jnp.int32, (tq, tk), 1)
        s = s + jnp.where(col > row, jnp.float32(-1e30), jnp.float32(0.0))
        m_prev = m_scr[...]                                                   # (H, tq, 1)
        m_new = jnp.maximum(m_prev, jnp.max(s, axis=-1, keepdims=True))
        alpha = jnp.exp(m_prev - m_new)
        p = jnp.exp(s - m_new)
        l_scr[...] = alpha * l_scr[...] + jnp.sum(p, axis=-1, keepdims=True)
        acc_scr[...] = alpha * acc_scr[...] + lax.dot_general(
            p.astype(mm_dt), v, (((2,), (1,)), ((0,), (0,))),
            preferred_element_type=jnp.float32)                               # (H, tq, dh)
        m_scr[...] = m_new

    # ---- finalize: merge heads -> single out-proj, residual, LN1, FFN, residual, LN2 ----
    @pl.when(ki == nk - 1)
    def _():
        inv_l = pl.reciprocal(l_scr[...], approx=True)                        # (H, tq, 1)
        for h in range(num_heads):
            lo = h * dim_heads
            ho_scr[:, lo:lo + dim_heads] = (acc_scr[h] * inv_l[h]).astype(mm_dt)
        x_q = x_ref[0]                                                        # (tq, D) f32
        y = jnp.dot(ho_scr[...], wo_ref[...],
                    preferred_element_type=jnp.float32) + x_q                 # (tq, D)

        # LayerNorm 1 — matches module: unbiased std (N-1), eps added to std,
        # exact division (review feedback: no approx reciprocal in LN).
        D = y.shape[-1]
        mean = jnp.mean(y, axis=-1, keepdims=True)
        diff = y - mean
        std = jnp.sqrt(jnp.sum(diff * diff, axis=-1, keepdims=True) * (1.0 / (D - 1)))
        y = g1_ref[...] * (diff / (std + eps)) + be1_ref[...]

        # FeedForward + residual
        h1 = jnp.dot(y.astype(mm_dt), w1_ref[...],
                     preferred_element_type=jnp.float32) + b1_ref[...]        # (tq, F)
        h1 = jnp.maximum(h1, 0.0)
        z = jnp.dot(h1.astype(mm_dt), w2_ref[...],
                    preferred_element_type=jnp.float32) + b2_ref[...] + y     # (tq, D)

        # LayerNorm 2
        mean2 = jnp.mean(z, axis=-1, keepdims=True)
        diff2 = z - mean2
        std2 = jnp.sqrt(jnp.sum(diff2 * diff2, axis=-1, keepdims=True) * (1.0 / (D - 1)))
        o_ref[0] = g2_ref[...] * (diff2 / (std2 + eps)) + be2_ref[...]


def attn_ffn_layer(x, k, v, lp, *, num_heads, dim_heads, q_tile, k_tile, eps=1e-5):
    B, S, D = x.shape
    H = num_heads
    HD = H * dim_heads
    F = lp['w1'].shape[1]
    mm_dt = lp['wq'].dtype
    tq = _pick_tile(S, q_tile)
    tk = _pick_tile(S, k_tile)
    nq = S // tq
    nk = S // tk
    dh_l = _lane_pad(dim_heads)

    wf = 1 if _cached_weight_mode() is not None else 2
    est = (wf * (_nbytes((D, HD), mm_dt) + _nbytes((HD, D), mm_dt)
                 + _nbytes((D, F), mm_dt) + _nbytes((F, D), mm_dt)
                 + _nbytes((1, F), jnp.float32) + 5 * _nbytes((1, D), jnp.float32))
           + 4 * _nbytes((1, tq, D), jnp.float32)               # x in + out (double buffered)
           + 4 * _nbytes((1, H, tk, dh_l), mm_dt)               # K, V tiles (double buffered)
           + _nbytes((H, tq, dh_l), mm_dt)                      # q scratch
           + 2 * _nbytes((H, tq, 128), jnp.float32)             # m, l scratch (lane padded)
           + _nbytes((H, tq, dh_l), jnp.float32)                # acc scratch
           + _nbytes((tq, HD), mm_dt)                           # merged-head scratch
           + 3 * _nbytes((H, tq, tk), jnp.float32)              # live score buffers
           + 2 * _nbytes((tq, F), jnp.float32)                  # live FFN intermediate
           + (16 << 20))

    kernel = functools.partial(_attn_ffn_kernel, num_heads=H, dim_heads=dim_heads,
                               tq=tq, tk=tk, eps=eps)

    return pl.pallas_call(
        kernel,
        out_shape=jax.ShapeDtypeStruct((B, S, D), jnp.float32),
        grid=(B, nq, nk),
        in_specs=[
            pl.BlockSpec((1, tq, D), lambda b, qi, ki: (b, qi, 0)),                # x (query tile)
            _const_spec((D, HD), 3),                                               # Wq (pre-scaled)
            pl.BlockSpec((1, H, tk, dim_heads), lambda b, qi, ki: (b, 0, ki, 0)),  # K tile
            pl.BlockSpec((1, H, tk, dim_heads), lambda b, qi, ki: (b, 0, ki, 0)),  # V tile
            _const_spec((HD, D), 3),                                               # Wout
            _const_spec((D, F), 3), _const_spec((1, F), 3),                        # W1, b1
            _const_spec((F, D), 3), _const_spec((1, D), 3),                        # W2, b2
            _const_spec((1, D), 3), _const_spec((1, D), 3),                        # gamma1, beta1
            _const_spec((1, D), 3), _const_spec((1, D), 3),                        # gamma2, beta2
        ],
        out_specs=pl.BlockSpec((1, tq, D), lambda b, qi, ki: (b, qi, 0)),
        scratch_shapes=[
            pltpu.VMEM((H, tq, dim_heads), mm_dt),        # Q (head-batched, pre-scaled)
            pltpu.VMEM((H, tq, 1), jnp.float32),          # running max
            pltpu.VMEM((H, tq, 1), jnp.float32),          # running denominator
            pltpu.VMEM((H, tq, dim_heads), jnp.float32),  # running weighted-V accumulator
            pltpu.VMEM((tq, HD), mm_dt),                  # merged per-head outputs
        ],
        compiler_params=pltpu.CompilerParams(
            dimension_semantics=("parallel", "parallel", "arbitrary"),
            vmem_limit_bytes=_vmem_limit(est)),
    )(x, lp['wq'], k, v, lp['wo'], lp['w1'], lp['b1'], lp['w2'], lp['b2'],
      lp['g1'], lp['be1'], lp['g2'], lp['be2'])


def encoder_layer(x, lp, *, num_heads, dim_heads, eps=1e-5,
                  q_tile=None, k_tile=512, kv_s_tile=512):
    if q_tile is None:
        q_tile = _q_tile_target()
    k, v = kv_project(x, lp['wkv'], num_heads=num_heads, dim_heads=dim_heads,
                      s_tile=kv_s_tile)
    return attn_ffn_layer(x, k, v, lp, num_heads=num_heads, dim_heads=dim_heads,
                          q_tile=q_tile, k_tile=k_tile, eps=eps)


# ----------------------------------------------------------------------------
# Kernel 3: tied-embedding logits, S-tiled and vocab-tiled (lane-dense output)
# ----------------------------------------------------------------------------
def _logits_kernel(x_ref, embt_ref, o_ref):
    o_ref[0] = jnp.dot(x_ref[0].astype(embt_ref.dtype), embt_ref[...],
                       preferred_element_type=jnp.float32)


def tied_logits(x, emb_t, vocab, *, s_tile=256, v_tile=512):
    B, S, D = x.shape
    v_pad = emb_t.shape[1]                       # multiple of 512 (set in prepare_kernel_params)
    tile_v = v_tile if v_pad % v_tile == 0 else v_pad
    nv = v_pad // tile_v
    ts = _pick_tile(S, s_tile)
    ns = S // ts

    est = (2 * _nbytes((1, ts, D), jnp.float32)
           + 2 * _nbytes((D, tile_v), emb_t.dtype)
           + 2 * _nbytes((1, ts, tile_v), jnp.float32)
           + (8 << 20))

    out = pl.pallas_call(
        _logits_kernel,
        out_shape=jax.ShapeDtypeStruct((B, S, v_pad), jnp.float32),
        grid=(B, ns, nv),
        in_specs=[pl.BlockSpec((1, ts, D), lambda b, si, j: (b, si, 0)),
                  pl.BlockSpec((D, tile_v), lambda b, si, j: (0, j))],
        out_specs=pl.BlockSpec((1, ts, tile_v), lambda b, si, j: (b, si, j)),
        compiler_params=pltpu.CompilerParams(
            dimension_semantics=("parallel", "parallel", "parallel"),
            vmem_limit_bytes=_vmem_limit(est)),
    )(x, emb_t)
    # TODO(synk): callers that tolerate vocab-padded logits can skip this slice (it costs
    # one extra B*S*V f32 HBM round trip, most relevant on v5e's lower HBM bandwidth).
    return out[..., :vocab]


# ----------------------------------------------------------------------------
# Full forward
# ----------------------------------------------------------------------------
def transformer_wrapper_forward(token_ids, kparams, *, num_heads, dim_heads):
    B, S = token_ids.shape
    # Glue (plain JAX): embedding gather + learned positional encoding add.
    x = kparams['emb'][token_ids] + kparams['pe'][:S][None]
    # TODO(synk): inter-layer activations could be kept bf16 to halve HBM traffic on v5e;
    # kept f32 here so residual/LayerNorm math stays in f32 end to end.
    for lp in kparams['layers']:
        x = encoder_layer(x, lp, num_heads=num_heads, dim_heads=dim_heads)
    return tied_logits(x, kparams['emb_t'], kparams['emb'].shape[0])


# ----------------------------------------------------------------------------
# Parameter init (mirrors the module's __init__ scalings) + kernel-format prep
# ----------------------------------------------------------------------------
def init_params(key, *, vocab, D, H, dh, F, L, max_len):
    HD = H * dh
    keys = iter(jax.random.split(key, 2 + L * 6))
    params = {
        'emb': jax.random.normal(next(keys), (vocab, D), jnp.float32) / jnp.sqrt(D),
        'pe': jax.random.normal(next(keys), (max_len, D), jnp.float32) / jnp.sqrt(D),
        'layers': [],
    }
    for _ in range(L):
        params['layers'].append({
            'wq': jax.random.normal(next(keys), (D, HD), jnp.float32) / jnp.sqrt(HD),
            'wk': jax.random.normal(next(keys), (D, HD), jnp.float32) / jnp.sqrt(HD),
            'wv': jax.random.normal(next(keys), (D, HD), jnp.float32) / jnp.sqrt(HD),
            'wo': jax.random.normal(next(keys), (HD, D), jnp.float32) / jnp.sqrt(D),
            'w1': jax.random.normal(next(keys), (D, F), jnp.float32) / jnp.sqrt(F),
            'b1': jnp.zeros((1, F), jnp.float32),
            'w2': jax.random.normal(next(keys), (F, D), jnp.float32) / jnp.sqrt(D),
            'b2': jnp.zeros((1, D), jnp.float32),
            'g1': jnp.ones((1, D), jnp.float32), 'be1': jnp.zeros((1, D), jnp.float32),
            'g2': jnp.ones((1, D), jnp.float32), 'be2': jnp.zeros((1, D), jnp.float32),
        })
    return params


def prepare_kernel_params(params, *, dim_heads, mm_dtype=MM_DTYPE):
    """Kernel-format params: Wq pre-scaled by 1/sqrt(dh), fused Wk|Wv, bf16 matmul
    weights, tied embedding pre-transposed + vocab-padded to a multiple of 512 (once)."""
    scale = dim_heads ** (-0.5)
    emb = params['emb']
    V, D = emb.shape
    v_pad = ((V + 511) // 512) * 512
    emb_t = jnp.zeros((D, v_pad), mm_dtype).at[:, :V].set(emb.T.astype(mm_dtype))
    kp = {'emb': emb, 'pe': params['pe'], 'emb_t': emb_t, 'layers': []}
    for lp in params['layers']:
        kp['layers'].append({
            'wq': (lp['wq'] * scale).astype(mm_dtype),
            'wkv': jnp.concatenate([lp['wk'], lp['wv']], axis=1).astype(mm_dtype),
            'wo': lp['wo'].astype(mm_dtype),
            'w1': lp['w1'].astype(mm_dtype), 'b1': lp['b1'],
            'w2': lp['w2'].astype(mm_dtype), 'b2': lp['b2'],
            'g1': lp['g1'], 'be1': lp['be1'], 'g2': lp['g2'], 'be2': lp['be2'],
        })
    return kp


# ----------------------------------------------------------------------------
# Pure-JAX f32 reference (same math as the PyTorch module)
# ----------------------------------------------------------------------------
def reference_forward(token_ids, params, *, num_heads, dim_heads, eps=1e-5):
    B, S = token_ids.shape
    x = params['emb'][token_ids] + params['pe'][:S][None]
    mask = jnp.triu(jnp.ones((S, S), bool), k=1)
    scale = dim_heads ** (-0.5)

    def ln(t, g, b):
        m = t.mean(-1, keepdims=True)
        d = t - m
        std = jnp.sqrt((d * d).sum(-1, keepdims=True) / (t.shape[-1] - 1))
        return g * d / (std + eps) + b

    for lp in params['layers']:
        def split(t):
            return t.reshape(B, S, num_heads, dim_heads).transpose(0, 2, 1, 3)
        q, k, v = split(x @ lp['wq']), split(x @ lp['wk']), split(x @ lp['wv'])
        attn = jnp.einsum('bhqd,bhkd->bhqk', q, k) * scale
        attn = jnp.where(mask[None, None], -jnp.inf, attn)
        w = jax.nn.softmax(attn, axis=-1)
        out = jnp.einsum('bhqk,bhkd->bhqd', w, v).transpose(0, 2, 1, 3).reshape(B, S, -1)
        y = ln(out @ lp['wo'] + x, lp['g1'], lp['be1'])
        h = jax.nn.relu(y @ lp['w1'] + lp['b1'])
        x = ln(h @ lp['w2'] + lp['b2'] + y, lp['g2'], lp['be2'])
    return x @ params['emb'].T


if __name__ == "__main__":
    B, S = 2, 8
    D, H, dh, F, L = 32, 4, 8, 64, 2
    V, max_len = 50, 64

    probe_weight_pipeline_mode()    # eager capability check for pl.Buffered(1), outside jit

    key = jax.random.PRNGKey(0)
    pkey, xkey = jax.random.split(key)
    params = init_params(pkey, vocab=V, D=D, H=H, dh=dh, F=F, L=L, max_len=max_len)
    kparams = prepare_kernel_params(params, dim_heads=dh)
    token_ids = jax.random.randint(xkey, (B, S), 0, V, dtype=jnp.int32)

    fwd = jax.jit(functools.partial(transformer_wrapper_forward,
                                    num_heads=H, dim_heads=dh))
    out = jax.block_until_ready(fwd(token_ids, kparams))

    ref = reference_forward(token_ids, params, num_heads=H, dim_heads=dh)
    assert out.shape == (B, S, V)
    assert bool(jnp.all(jnp.isfinite(out)))
    # Kernel matmuls use bf16 inputs (f32 accumulation) + an approx softmax reciprocal,
    # so the comparison against the pure-f32 reference keeps a loose tolerance.
    # (LayerNorm now uses exact division, per review.)
    assert bool(jnp.allclose(out, ref, atol=1e-1, rtol=1e-1)), \
        float(jnp.max(jnp.abs(out - ref)))

    print("KERNEL_OK")
</pallas_src>

<mosaic_0001>
module attributes {stable_mosaic.version = 11 : i64} {
  func.func @_probe(%arg0: i32, %arg1: memref<8x128xf32, #tpu.memory_space<vmem>>, %arg2: memref<8x128xf32, #tpu.memory_space<vmem>>) attributes {dimension_semantics = [#tpu.dimension_semantics<arbitrary>], iteration_bounds = array<i64: 2>, scalar_prefetch = 0 : i64, scratch_operands = 0 : i64, tpu.core_type = #tpu.core_type<tc>, window_params = [{pipeline_mode = #tpu.pipeline_mode<synchronous>, transform_indices = @transform_0, window_bounds = array<i64: 8, 128>}, {pipeline_mode = #tpu.pipeline_mode<synchronous>, transform_indices = @transform_1, window_bounds = array<i64: 8, 128>}]} {
    %c0 = arith.constant 0 : index
    %c0_0 = arith.constant 0 : index
    %0 = vector.load %arg1[%c0, %c0_0] : memref<8x128xf32, #tpu.memory_space<vmem>>, vector<8x128xf32>
    %cst = arith.constant 1.000000e+00 : f32
    %1 = vector.broadcast %cst : f32 to vector<8x128xf32>
    %2 = arith.addf %0, %1 : vector<8x128xf32>
    %c0_1 = arith.constant 0 : index
    %c0_2 = arith.constant 0 : index
    %3 = vector.load %arg2[%c0_1, %c0_2] : memref<8x128xf32, #tpu.memory_space<vmem>>, vector<8x128xf32>
    tpu.vector_store %arg2[%c0_1, %c0_2], %2 {strides = array<i32>} : memref<8x128xf32, #tpu.memory_space<vmem>>, vector<8x128xf32>,
    return
  }
  func.func @transform_0(%arg0: i32) -> (i32, i32) {
    %c0_i32 = arith.constant 0 : i32
    %c0_i32_0 = arith.constant 0 : i32
    %c0_i32_1 = arith.constant 0 : i32
    return %c0_i32, %c0_i32_0 : i32, i32
  }
  func.func @transform_1(%arg0: i32) -> (i32, i32) {
    %c0_i32 = arith.constant 0 : i32
    %c0_i32_0 = arith.constant 0 : i32
    %c0_i32_1 = arith.constant 0 : i32
    return %c0_i32, %c0_i32_0 : i32, i32
  }
}

module attributes {stable_mosaic.version = 11 : i64} {
  func.func @_kv_proj_kernel(%arg0: i32, %arg1: i32, %arg2: memref<1x8x32xf32, #tpu.memory_space<vmem>>, %arg3: memref<32x64xbf16, #tpu.memory_space<vmem>>, %arg4: memref<1x4x8x8xbf16, #tpu.memory_space<vmem>>, %arg5: memref<1x4x8x8xbf16, #tpu.memory_space<vmem>>) attributes {dimension_semantics = [#tpu.dimension_semantics<parallel>, #tpu.dimension_semantics<parallel>], iteration_bounds = array<i64: 2, 1>, scalar_prefetch = 0 : i64, scratch_operands = 0 : i64, tpu.core_type = #tpu.core_type<tc>, window_params = [{transform_indices = @transform_0, window_bounds = array<i64: 1, 8, 32>}, {pipeline_mode = #tpu.pipeline_mode<synchronous>, transform_indices = @transform_1, window_bounds = array<i64: 32, 64>}, {transform_indices = @transform_2, window_bounds = array<i64: 1, 4, 8, 8>}, {transform_indices = @transform_3, window_bounds = array<i64: 1, 4, 8, 8>}]} {
    %c0 = arith.constant 0 : index
    %c0_0 = arith.constant 0 : index
    %c0_1 = arith.constant 0 : index
    %0 = vector.load %arg2[%c0, %c0_0, %c0_1] : memref<1x8x32xf32, #tpu.memory_space<vmem>>, vector<1x8x32xf32>
    %1 = vector.shape_cast %0 : vector<1x8x32xf32> to vector<8x32xf32>
    %2 = arith.truncf %1 : vector<8x32xf32> to vector<8x32xbf16>
    %c0_2 = arith.constant 0 : index
    %c0_3 = arith.constant 0 : index
    %3 = vector.load %arg3[%c0_2, %c0_3] : memref<32x64xbf16, #tpu.memory_space<vmem>>, vector<32x64xbf16>
    %cst = arith.constant dense<0.000000e+00> : vector<8x64xf32>
    %4 = tpu.matmul %2, %3, %cst {dimension_numbers = #tpu.dot_dimension_numbers<[1], [0], [0], [1], [0, 0, 1, 1], [], []>} : vector<8x32xbf16>, vector<32x64xbf16>, vector<8x64xf32> -> vector<8x64xf32>
    %5 = vector.extract_strided_slice %4 {offsets = [0, 0], sizes = [8, 8], strides = [1, 1]} : vector<8x64xf32> to vector<8x8xf32>
    %6 = arith.truncf %5 : vector<8x8xf32> to vector<8x8xbf16>
    %c0_4 = arith.constant 0 : index
    %c0_5 = arith.constant 0 : index
    %c0_6 = arith.constant 0 : index
    %c0_7 = arith.constant 0 : index
    %7 = vector.load %arg4[%c0_4, %c0_5, %c0_6, %c0_7] : memref<1x4x8x8xbf16, #tpu.memory_space<vmem>>, vector<1x1x8x8xbf16>
    %8 = vector.shape_cast %7 : vector<1x1x8x8xbf16> to vector<8x8xbf16>
    %9 = vector.shape_cast %6 : vector<8x8xbf16> to vector<1x1x8x8xbf16>
    tpu.vector_store %arg4[%c0_4, %c0_5, %c0_6, %c0_7], %9 {strides = array<i32>} : memref<1x4x8x8xbf16, #tpu.memory_space<vmem>>, vector<1x1x8x8xbf16>,
    %10 = vector.extract_strided_slice %4 {offsets = [0, 32], sizes = [8, 8], strides = [1, 1]} : vector<8x64xf32> to vector<8x8xf32>
    %11 = arith.truncf %10 : vector<8x8xf32> to vector<8x8xbf16>
    %c0_8 = arith.constant 0 : index
    %c0_9 = arith.constant 0 : index
    %c0_10 = arith.constant 0 : index
    %c0_11 = arith.constant 0 : index
    %12 = vector.load %arg5[%c0_8, %c0_9, %c0_10, %c0_11] : memref<1x4x8x8xbf16, #tpu.memory_space<vmem>>, vector<1x1x8x8xbf16>
    %13 = vector.shape_cast %12 : vector<1x1x8x8xbf16> to vector<8x8xbf16>
    %14 = vector.shape_cast %11 : vector<8x8xbf16> to vector<1x1x8x8xbf16>
    tpu.vector_store %arg5[%c0_8, %c0_9, %c0_10, %c0_11], %14 {strides = array<i32>} : memref<1x4x8x8xbf16, #tpu.memory_space<vmem>>, vector<1x1x8x8xbf16>,
    %15 = vector.extract_strided_slice %4 {offsets = [0, 8], sizes = [8, 8], strides = [1, 1]} : vector<8x64xf32> to vector<8x8xf32>
    %16 = arith.truncf %15 : vector<8x8xf32> to vector<8x8xbf16>
    %c0_12 = arith.constant 0 : index
    %c1 = arith.constant 1 : index
    %c0_13 = arith.constant 0 : index
    %c0_14 = arith.constant 0 : index
    %17 = vector.load %arg4[%c0_12, %c1, %c0_13, %c0_14] : memref<1x4x8x8xbf16, #tpu.memory_space<vmem>>, vector<1x1x8x8xbf16>
    %18 = vector.shape_cast %17 : vector<1x1x8x8xbf16> to vector<8x8xbf16>
    %19 = vector.shape_cast %16 : vector<8x8xbf16> to vector<1x1x8x8xbf16>
    tpu.vector_store %arg4[%c0_12, %c1, %c0_13, %c0_14], %19 {strides = array<i32>} : memref<1x4x8x8xbf16, #tpu.memory_space<vmem>>, vector<1x1x8x8xbf16>,
    %20 = vector.extract_strided_slice %4 {offsets = [0, 40], sizes = [8, 8], strides = [1, 1]} : vector<8x64xf32> to vector<8x8xf32>
    %21 = arith.truncf %20 : vector<8x8xf32> to vector<8x8xbf16>
    %c0_15 = arith.constant 0 : index
    %c1_16 = arith.constant 1 : index
    %c0_17 = arith.constant 0 : index
    %c0_18 = arith.constant 0 : index
    %22 = vector.load %arg5[%c0_15, %c1_16, %c0_17, %c0_18] : memref<1x4x8x8xbf16, #tpu.memory_space<vmem>>, vector<1x1x8x8xbf16>
    %23 = vector.shape_cast %22 : vector<1x1x8x8xbf16> to vector<8x8xbf16>
    %24 = vector.shape_cast %21 : vector<8x8xbf16> to vector<1x1x8x8xbf16>
    tpu.vector_store %arg5[%c0_15, %c1_16, %c0_17, %c0_18], %24 {strides = array<i32>} : memref<1x4x8x8xbf16, #tpu.memory_space<vmem>>, vector<1x1x8x8xbf16>,
    %25 = vector.extract_strided_slice %4 {offsets = [0, 16], sizes = [8, 8], strides = [1, 1]} : vector<8x64xf32> to vector<8x8xf32>
    %26 = arith.truncf %25 : vector<8x8xf32> to vector<8x8xbf16>
    %c0_19 = arith.constant 0 : index
    %c2 = arith.constant 2 : index
    %c0_20 = arith.constant 0 : index
    %c0_21 = arith.constant 0 : index
    %27 = vector.load %arg4[%c0_19, %c2, %c0_20, %c0_21] : memref<1x4x8x8xbf16, #tpu.memory_space<vmem>>, vector<1x1x8x8xbf16>
    %28 = vector.shape_cast %27 : vector<1x1x8x8xbf16> to vector<8x8xbf16>
    %29 = vector.shape_cast %26 : vector<8x8xbf16> to vector<1x1x8x8xbf16>
    tpu.vector_store %arg4[%c0_19, %c2, %c0_20, %c0_21], %29 {strides = array<i32>} : memref<1x4x8x8xbf16, #tpu.memory_space<vmem>>, vector<1x1x8x8xbf16>,
    %30 = vector.extract_strided_slice %4 {offsets = [0, 48], sizes = [8, 8], strides = [1, 1]} : vector<8x64xf32> to vector<8x8xf32>
    %31 = arith.truncf %30 : vector<8x8xf32> to vector<8x8xbf16>
    %c0_22 = arith.constant 0 : index
    %c2_23 = arith.constant 2 : index
    %c0_24 = arith.constant 0 : index
    %c0_25 = arith.constant 0 : index
    %32 = vector.load %arg5[%c0_22, %c2_23, %c0_24, %c0_25] : memref<1x4x8x8xbf16, #tpu.memory_space<vmem>>, vector<1x1x8x8xbf16>
    %33 = vector.shape_cast %32 : vector<1x1x8x8xbf16> to vector<8x8xbf16>
    %34 = vector.shape_cast %31 : vector<8x8xbf16> to vector<1x1x8x8xbf16>
    tpu.vector_store %arg5[%c0_22, %c2_23, %c0_24, %c0_25], %34 {strides = array<i32>} : memref<1x4x8x8xbf16, #tpu.memory_space<vmem>>, vector<1x1x8x8xbf16>,
    %35 = vector.extract_strided_slice %4 {offsets = [0, 24], sizes = [8, 8], strides = [1, 1]} : vector<8x64xf32> to vector<8x8xf32>
    %36 = arith.truncf %35 : vector<8x8xf32> to vector<8x8xbf16>
    %c0_26 = arith.constant 0 : index
    %c3 = arith.constant 3 : index
    %c0_27 = arith.constant 0 : index
    %c0_28 = arith.constant 0 : index
    %37 = vector.load %arg4[%c0_26, %c3, %c0_27, %c0_28] : memref<1x4x8x8xbf16, #tpu.memory_space<vmem>>, vector<1x1x8x8xbf16>
    %38 = vector.shape_cast %37 : vector<1x1x8x8xbf16> to vector<8x8xbf16>
    %39 = vector.shape_cast %36 : vector<8x8xbf16> to vector<1x1x8x8xbf16>
    tpu.vector_store %arg4[%c0_26, %c3, %c0_27, %c0_28], %39 {strides = array<i32>} : memref<1x4x8x8xbf16, #tpu.memory_space<vmem>>, vector<1x1x8x8xbf16>,
    %40 = vector.extract_strided_slice %4 {offsets = [0, 56], sizes = [8, 8], strides = [1, 1]} : vector<8x64xf32> to vector<8x8xf32>
    %41 = arith.truncf %40 : vector<8x8xf32> to vector<8x8xbf16>
    %c0_29 = arith.constant 0 : index
    %c3_30 = arith.constant 3 : index
    %c0_31 = arith.constant 0 : index
    %c0_32 = arith.constant 0 : index
    %42 = vector.load %arg5[%c0_29, %c3_30, %c0_31, %c0_32] : memref<1x4x8x8xbf16, #tpu.memory_space<vmem>>, vector<1x1x8x8xbf16>
    %43 = vector.shape_cast %42 : vector<1x1x8x8xbf16> to vector<8x8xbf16>
    %44 = vector.shape_cast %41 : vector<8x8xbf16> to vector<1x1x8x8xbf16>
    tpu.vector_store %arg5[%c0_29, %c3_30, %c0_31, %c0_32], %44 {strides = array<i32>} : memref<1x4x8x8xbf16, #tpu.memory_space<vmem>>, vector<1x1x8x8xbf16>,
    return
  }
  func.func @transform_0(%arg0: i32, %arg1: i32) -> (i32, i32, i32) {
    %c0_i32 = arith.constant 0 : i32
    %c0_i32_0 = arith.constant 0 : i32
    return %arg0, %arg1, %c0_i32 : i32, i32, i32
  }
  func.func @transform_1(%arg0: i32, %arg1: i32) -> (i32, i32) {
    %c0_i32 = arith.constant 0 : i32
    %c0_i32_0 = arith.constant 0 : i32
    %c0_i32_1 = arith.constant 0 : i32
    return %c0_i32, %c0_i32_0 : i32, i32
  }
  func.func @transform_2(%arg0: i32, %arg1: i32) -> (i32, i32, i32, i32) {
    %c0_i32 = arith.constant 0 : i32
    %c0_i32_0 = arith.constant 0 : i32
    %c0_i32_1 = arith.constant 0 : i32
    return %arg0, %c0_i32, %arg1, %c0_i32_0 : i32, i32, i32, i32
  }
  func.func @transform_3(%arg0: i32, %arg1: i32) -> (i32, i32, i32, i32) {
    %c0_i32 = arith.constant 0 : i32
    %c0_i32_0 = arith.constant 0 : i32
    %c0_i32_1 = arith.constant 0 : i32
    return %arg0, %c0_i32, %arg1, %c0_i32_0 : i32, i32, i32, i32
  }
}

module attributes {stable_mosaic.version = 11 : i64} {
  func.func @_logits_kernel(%arg0: i32, %arg1: i32, %arg2: i32, %arg3: memref<1x8x32xf32, #tpu.memory_space<vmem>>, %arg4: memref<32x512xbf16, #tpu.memory_space<vmem>>, %arg5: memref<1x8x512xf32, #tpu.memory_space<vmem>>) attributes {dimension_semantics = [#tpu.dimension_semantics<parallel>, #tpu.dimension_semantics<parallel>, #tpu.dimension_semantics<parallel>], iteration_bounds = array<i64: 2, 1, 1>, scalar_prefetch = 0 : i64, scratch_operands = 0 : i64, tpu.core_type = #tpu.core_type<tc>, window_params = [{transform_indices = @transform_0, window_bounds = array<i64: 1, 8, 32>}, {transform_indices = @transform_1, window_bounds = array<i64: 32, 512>}, {transform_indices = @transform_2, window_bounds = array<i64: 1, 8, 512>}]} {
    %c0 = arith.constant 0 : index
    %c0_0 = arith.constant 0 : index
    %c0_1 = arith.constant 0 : index
    %0 = vector.load %arg3[%c0, %c0_0, %c0_1] : memref<1x8x32xf32, #tpu.memory_space<vmem>>, vector<1x8x32xf32>
    %1 = vector.shape_cast %0 : vector<1x8x32xf32> to vector<8x32xf32>
    %2 = arith.truncf %1 : vector<8x32xf32> to vector<8x32xbf16>
    %c0_2 = arith.constant 0 : index
    %c0_3 = arith.constant 0 : index
    %3 = vector.load %arg4[%c0_2, %c0_3] : memref<32x512xbf16, #tpu.memory_space<vmem>>, vector<32x512xbf16>
    %cst = arith.constant dense<0.000000e+00> : vector<8x512xf32>
    %4 = tpu.matmul %2, %3, %cst {dimension_numbers = #tpu.dot_dimension_numbers<[1], [0], [0], [1], [0, 0, 1, 1], [], []>} : vector<8x32xbf16>, vector<32x512xbf16>, vector<8x512xf32> -> vector<8x512xf32>
    %c0_4 = arith.constant 0 : index
    %c0_5 = arith.constant 0 : index
    %c0_6 = arith.constant 0 : index
    %5 = vector.load %arg5[%c0_4, %c0_5, %c0_6] : memref<1x8x512xf32, #tpu.memory_space<vmem>>, vector<1x8x512xf32>
    %6 = vector.shape_cast %5 : vector<1x8x512xf32> to vector<8x512xf32>
    %7 = vector.shape_cast %4 : vector<8x512xf32> to vector<1x8x512xf32>
    tpu.vector_store %arg5[%c0_4, %c0_5, %c0_6], %7 {strides = array<i32>} : memref<1x8x512xf32, #tpu.memory_space<vmem>>, vector<1x8x512xf32>,
    return
  }
  func.func @transform_0(%arg0: i32, %arg1: i32, %arg2: i32) -> (i32, i32, i32) {
    %c0_i32 = arith.constant 0 : i32
    %c0_i32_0 = arith.constant 0 : i32
    return %arg0, %arg1, %c0_i32 : i32, i32, i32
  }
  func.func @transform_1(%arg0: i32, %arg1: i32, %arg2: i32) -> (i32, i32) {
    %c0_i32 = arith.constant 0 : i32
    %c0_i32_0 = arith.constant 0 : i32
    return %c0_i32, %arg2 : i32, i32
  }
  func.func @transform_2(%arg0: i32, %arg1: i32, %arg2: i32) -> (i32, i32, i32) {
    %c0_i32 = arith.constant 0 : i32
    return %arg0, %arg1, %arg2 : i32, i32, i32
  }
}

module attributes {stable_mosaic.version = 11 : i64} {
  func.func @_attn_ffn_kernel(%arg0: i32, %arg1: i32, %arg2: i32, %arg3: memref<1x8x32xf32, #tpu.memory_space<vmem>>, %arg4: memref<32x32xbf16, #tpu.memory_space<vmem>>, %arg5: memref<1x4x8x8xbf16, #tpu.memory_space<vmem>>, %arg6: memref<1x4x8x8xbf16, #tpu.memory_space<vmem>>, %arg7: memref<32x32xbf16, #tpu.memory_space<vmem>>, %arg8: memref<32x64xbf16, #tpu.memory_space<vmem>>, %arg9: memref<1x64xf32, #tpu.memory_space<vmem>>, %arg10: memref<64x32xbf16, #tpu.memory_space<vmem>>, %arg11: memref<1x32xf32, #tpu.memory_space<vmem>>, %arg12: memref<1x32xf32, #tpu.memory_space<vmem>>, %arg13: memref<1x32xf32, #tpu.memory_space<vmem>>, %arg14: memref<1x32xf32, #tpu.memory_space<vmem>>, %arg15: memref<1x32xf32, #tpu.memory_space<vmem>>, %arg16: memref<1x8x32xf32, #tpu.memory_space<vmem>>, %arg17: memref<4x8x8xbf16, #tpu.memory_space<vmem>>, %arg18: memref<4x8x1xf32, #tpu.memory_space<vmem>>, %arg19: memref<4x8x1xf32, #tpu.memory_space<vmem>>, %arg20: memref<4x8x8xf32, #tpu.memory_space<vmem>>, %arg21: memref<8x32xbf16, #tpu.memory_space<vmem>>) attributes {dimension_semantics = [#tpu.dimension_semantics<parallel>, #tpu.dimension_semantics<parallel>, #tpu.dimension_semantics<arbitrary>], iteration_bounds = array<i64: 2, 1, 1>, scalar_prefetch = 0 : i64, scratch_operands = 5 : i64, tpu.core_type = #tpu.core_type<tc>, window_params = [{transform_indices = @transform_0, window_bounds = array<i64: 1, 8, 32>}, {pipeline_mode = #tpu.pipeline_mode<synchronous>, transform_indices = @transform_1, window_bounds = array<i64: 32, 32>}, {transform_indices = @transform_2, window_bounds = array<i64: 1, 4, 8, 8>}, {transform_indices = @transform_3, window_bounds = array<i64: 1, 4, 8, 8>}, {pipeline_mode = #tpu.pipeline_mode<synchronous>, transform_indices = @transform_4, window_bounds = array<i64: 32, 32>}, {pipeline_mode = #tpu.pipeline_mode<synchronous>, transform_indices = @transform_5, window_bounds = array<i64: 32, 64>}, {pipeline_mode = #tpu.pipeline_mode<synchronous>, transform_indices = @transform_6, window_bounds = array<i64: 1, 64>}, {pipeline_mode = #tpu.pipeline_mode<synchronous>, transform_indices = @transform_7, window_bounds = array<i64: 64, 32>}, {pipeline_mode = #tpu.pipeline_mode<synchronous>, transform_indices = @transform_8, window_bounds = array<i64: 1, 32>}, {pipeline_mode = #tpu.pipeline_mode<synchronous>, transform_indices = @transform_9, window_bounds = array<i64: 1, 32>}, {pipeline_mode = #tpu.pipeline_mode<synchronous>, transform_indices = @transform_10, window_bounds = array<i64: 1, 32>}, {pipeline_mode = #tpu.pipeline_mode<synchronous>, transform_indices = @transform_11, window_bounds = array<i64: 1, 32>}, {pipeline_mode = #tpu.pipeline_mode<synchronous>, transform_indices = @transform_12, window_bounds = array<i64: 1, 32>}, {transform_indices = @transform_13, window_bounds = array<i64: 1, 8, 32>}]} {
    %c8_i32 = arith.constant 8 : i32
    %0 = arith.muli %arg1, %c8_i32 : i32
    %c8_i32_0 = arith.constant 8 : i32
    %1 = arith.muli %arg2, %c8_i32_0 : i32
    %c0_i32 = arith.constant 0 : i32
    %2 = arith.cmpi eq, %arg2, %c0_i32 : i32
    %3 = arith.extui %2 : i1 to i32
    %c0_i32_1 = arith.constant 0 : i32
    %4 = arith.cmpi ne, %3, %c0_i32_1 : i32
    scf.if %4 {
      %c0 = arith.constant 0 : index
      %c0_6 = arith.constant 0 : index
      %c0_7 = arith.constant 0 : index
      %13 = vector.load %arg3[%c0, %c0_6, %c0_7] : memref<1x8x32xf32, #tpu.memory_space<vmem>>, vector<1x8x32xf32>
      %14 = vector.shape_cast %13 : vector<1x8x32xf32> to vector<8x32xf32>
      %15 = arith.truncf %14 : vector<8x32xf32> to vector<8x32xbf16>
      %c0_8 = arith.constant 0 : index
      %c0_9 = arith.constant 0 : index
      %16 = vector.load %arg4[%c0_8, %c0_9] : memref<32x32xbf16, #tpu.memory_space<vmem>>, vector<32x32xbf16>
      %cst = arith.constant dense<0.000000e+00> : vector<8x32xf32>
      %17 = tpu.matmul %15, %16, %cst {dimension_numbers = #tpu.dot_dimension_numbers<[1], [0], [0], [1], [0, 0, 1, 1], [], []>} : vector<8x32xbf16>, vector<32x32xbf16>, vector<8x32xf32> -> vector<8x32xf32>
      %18 = vector.extract_strided_slice %17 {offsets = [0, 0], sizes = [8, 8], strides = [1, 1]} : vector<8x32xf32> to vector<8x8xf32>
      %19 = arith.truncf %18 : vector<8x8xf32> to vector<8x8xbf16>
      %c0_10 = arith.constant 0 : index
      %c0_11 = arith.constant 0 : index
      %c0_12 = arith.constant 0 : index
      %20 = vector.load %arg17[%c0_10, %c0_11, %c0_12] : memref<4x8x8xbf16, #tpu.memory_space<vmem>>, vector<1x8x8xbf16>
      %21 = vector.shape_cast %20 : vector<1x8x8xbf16> to vector<8x8xbf16>
      %22 = vector.shape_cast %19 : vector<8x8xbf16> to vector<1x8x8xbf16>
      tpu.vector_store %arg17[%c0_10, %c0_11, %c0_12], %22 {strides = array<i32>} : memref<4x8x8xbf16, #tpu.memory_space<vmem>>, vector<1x8x8xbf16>,
      %23 = vector.extract_strided_slice %17 {offsets = [0, 8], sizes = [8, 8], strides = [1, 1]} : vector<8x32xf32> to vector<8x8xf32>
      %24 = arith.truncf %23 : vector<8x8xf32> to vector<8x8xbf16>
      %c1 = arith.constant 1 : index
      %c0_13 = arith.constant 0 : index
      %c0_14 = arith.constant 0 : index
      %25 = vector.load %arg17[%c1, %c0_13, %c0_14] : memref<4x8x8xbf16, #tpu.memory_space<vmem>>, vector<1x8x8xbf16>
      %26 = vector.shape_cast %25 : vector<1x8x8xbf16> to vector<8x8xbf16>
      %27 = vector.shape_cast %24 : vector<8x8xbf16> to vector<1x8x8xbf16>
      tpu.vector_store %arg17[%c1, %c0_13, %c0_14], %27 {strides = array<i32>} : memref<4x8x8xbf16, #tpu.memory_space<vmem>>, vector<1x8x8xbf16>,
      %28 = vector.extract_strided_slice %17 {offsets = [0, 16], sizes = [8, 8], strides = [1, 1]} : vector<8x32xf32> to vector<8x8xf32>
      %29 = arith.truncf %28 : vector<8x8xf32> to vector<8x8xbf16>
      %c2 = arith.constant 2 : index
      %c0_15 = arith.constant 0 : index
      %c0_16 = arith.constant 0 : index
      %30 = vector.load %arg17[%c2, %c0_15, %c0_16] : memref<4x8x8xbf16, #tpu.memory_space<vmem>>, vector<1x8x8xbf16>
      %31 = vector.shape_cast %30 : vector<1x8x8xbf16> to vector<8x8xbf16>
      %32 = vector.shape_cast %29 : vector<8x8xbf16> to vector<1x8x8xbf16>
      tpu.vector_store %arg17[%c2, %c0_15, %c0_16], %32 {strides = array<i32>} : memref<4x8x8xbf16, #tpu.memory_space<vmem>>, vector<1x8x8xbf16>,
      %33 = vector.extract_strided_slice %17 {offsets = [0, 24], sizes = [8, 8], strides = [1, 1]} : vector<8x32xf32> to vector<8x8xf32>
      %34 = arith.truncf %33 : vector<8x8xf32> to vector<8x8xbf16>
      %c3 = arith.constant 3 : index
      %c0_17 = arith.constant 0 : index
      %c0_18 = arith.constant 0 : index
      %35 = vector.load %arg17[%c3, %c0_17, %c0_18] : memref<4x8x8xbf16, #tpu.memory_space<vmem>>, vector<1x8x8xbf16>
      %36 = vector.shape_cast %35 : vector<1x8x8xbf16> to vector<8x8xbf16>
      %37 = vector.shape_cast %34 : vector<8x8xbf16> to vector<1x8x8xbf16>
      tpu.vector_store %arg17[%c3, %c0_17, %c0_18], %37 {strides = array<i32>} : memref<4x8x8xbf16, #tpu.memory_space<vmem>>, vector<1x8x8xbf16>,
      %cst_19 = arith.constant 0xFF800000 : f32
      %38 = vector.broadcast %cst_19 : f32 to vector<4x8x1xf32>
      %c0_20 = arith.constant 0 : index
      %c0_21 = arith.constant 0 : index
      %c0_22 = arith.constant 0 : index
      %39 = vector.load %arg18[%c0_20, %c0_21, %c0_22] : memref<4x8x1xf32, #tpu.memory_space<vmem>>, vector<4x8x1xf32>
      tpu.vector_store %arg18[%c0_20, %c0_21, %c0_22], %38 {strides = array<i32>} : memref<4x8x1xf32, #tpu.memory_space<vmem>>, vector<4x8x1xf32>,
      %cst_23 = arith.constant 0.000000e+00 : f32
      %40 = vector.broadcast %cst_23 : f32 to vector<4x8x1xf32>
      %c0_24 = arith.constant 0 : index
      %c0_25 = arith.constant 0 : index
      %c0_26 = arith.constant 0 : index
      %41 = vector.load %arg19[%c0_24, %c0_25, %c0_26] : memref<4x8x1xf32, #tpu.memory_space<vmem>>, vector<4x8x1xf32>
      tpu.vector_store %arg19[%c0_24, %c0_25, %c0_26], %40 {strides = array<i32>} : memref<4x8x1xf32, #tpu.memory_space<vmem>>, vector<4x8x1xf32>,
      %cst_27 = arith.constant 0.000000e+00 : f32
      %42 = vector.broadcast %cst_27 : f32 to vector<4x8x8xf32>
      %c0_28 = arith.constant 0 : index
      %c0_29 = arith.constant 0 : index
      %c0_30 = arith.constant 0 : index
      %43 = vector.load %arg20[%c0_28, %c0_29, %c0_30] : memref<4x8x8xf32, #tpu.memory_space<vmem>>, vector<4x8x8xf32>
      tpu.vector_store %arg20[%c0_28, %c0_29, %c0_30], %42 {strides = array<i32>} : memref<4x8x8xf32, #tpu.memory_space<vmem>>, vector<4x8x8xf32>,
    } else {
    }
    %c8_i32_2 = arith.constant 8 : i32
    %5 = arith.addi %0, %c8_i32_2 : i32
    %c1_i32 = arith.constant 1 : i32
    %6 = arith.subi %5, %c1_i32 : i32
    %7 = arith.cmpi sle, %1, %6 : i32
    %8 = arith.extui %7 : i1 to i32
    %c0_i32_3 = arith.constant 0 : i32
    %9 = arith.cmpi ne, %8, %c0_i32_3 : i32
    scf.if %9 {
      %c0 = arith.constant 0 : index
      %c0_6 = arith.constant 0 : index
      %c0_7 = arith.constant 0 : index
      %c0_8 = arith.constant 0 : index
      %13 = vector.load %arg5[%c0, %c0_6, %c0_7, %c0_8] : memref<1x4x8x8xbf16, #tpu.memory_space<vmem>>, vector<1x4x8x8xbf16>
      %14 = vector.shape_cast %13 : vector<1x4x8x8xbf16> to vector<4x8x8xbf16>
      %c0_9 = arith.constant 0 : index
      %c0_10 = arith.constant 0 : index
      %c0_11 = arith.constant 0 : index
      %c0_12 = arith.constant 0 : index
      %15 = vector.load %arg6[%c0_9, %c0_10, %c0_11, %c0_12] : memref<1x4x8x8xbf16, #tpu.memory_space<vmem>>, vector<1x4x8x8xbf16>
      %16 = vector.shape_cast %15 : vector<1x4x8x8xbf16> to vector<4x8x8xbf16>
      %c0_13 = arith.constant 0 : index
      %c0_14 = arith.constant 0 : index
      %c0_15 = arith.constant 0 : index
      %17 = vector.load %arg17[%c0_13, %c0_14, %c0_15] : memref<4x8x8xbf16, #tpu.memory_space<vmem>>, vector<4x8x8xbf16>
      %cst = arith.constant dense<0.000000e+00> : vector<4x8x8xf32>
      %18 = tpu.matmul %17, %14, %cst {dimension_numbers = #tpu.dot_dimension_numbers<[2], [2], [1], [1], [0, 0, 0, 1, 1, 1], [0], [0]>} : vector<4x8x8xbf16>, vector<4x8x8xbf16>, vector<4x8x8xf32> -> vector<4x8x8xf32>
      %19 = tpu.iota {dimensions = array<i32: 0>} : vector<8x8xi32>
      %20 = vector.broadcast %0 : i32 to vector<8x8xi32>
      %21 = arith.addi %20, %19 : vector<8x8xi32>
      %22 = tpu.iota {dimensions = array<i32: 1>} : vector<8x8xi32>
      %23 = vector.broadcast %1 : i32 to vector<8x8xi32>
      %24 = arith.addi %23, %22 : vector<8x8xi32>
      %25 = arith.cmpi sgt, %24, %21 : vector<8x8xi32>
      %cst_16 = arith.constant -1.000000e+30 : f32
      %cst_17 = arith.constant 0.000000e+00 : f32
      %26 = vector.broadcast %cst_16 : f32 to vector<8x8xf32>
      %27 = vector.broadcast %cst_17 : f32 to vector<8x8xf32>
      %28 = arith.select %25, %26, %27 : vector<8x8xi1>, vector<8x8xf32>
      %29 = vector.shape_cast %28 : vector<8x8xf32> to vector<1x8x8xf32>
      %30 = vector.broadcast %29 : vector<1x8x8xf32> to vector<4x8x8xf32>
      %31 = arith.addf %18, %30 : vector<4x8x8xf32>
      %c0_18 = arith.constant 0 : index
      %c0_19 = arith.constant 0 : index
      %c0_20 = arith.constant 0 : index
      %32 = vector.load %arg18[%c0_18, %c0_19, %c0_20] : memref<4x8x1xf32, #tpu.memory_space<vmem>>, vector<4x8x1xf32>
      %cst_21 = arith.constant dense<0xFF800000> : vector<4x8xf32>
      %33 = vector.multi_reduction <maximumf>, %31, %cst_21 [2] : vector<4x8x8xf32> to vector<4x8xf32>
      %34 = vector.shape_cast %33 : vector<4x8xf32> to vector<4x8x1xf32>
      %35 = arith.maximumf %32, %34 : vector<4x8x1xf32>
      %36 = arith.subf %32, %35 : vector<4x8x1xf32>
      %37 = math.exp %36 : vector<4x8x1xf32>
      %38 = vector.broadcast %35 : vector<4x8x1xf32> to vector<4x8x8xf32>
      %39 = arith.subf %31, %38 : vector<4x8x8xf32>
      %40 = math.exp %39 : vector<4x8x8xf32>
      %c0_22 = arith.constant 0 : index
      %c0_23 = arith.constant 0 : index
      %c0_24 = arith.constant 0 : index
      %41 = vector.load %arg19[%c0_22, %c0_23, %c0_24] : memref<4x8x1xf32, #tpu.memory_space<vmem>>, vector<4x8x1xf32>
      %42 = arith.mulf %37, %41 : vector<4x8x1xf32>
      %cst_25 = arith.constant dense<0.000000e+00> : vector<4x8xf32>
      %43 = vector.multi_reduction <add>, %40, %cst_25 [2] : vector<4x8x8xf32> to vector<4x8xf32>
      %44 = vector.shape_cast %43 : vector<4x8xf32> to vector<4x8x1xf32>
      %45 = arith.addf %42, %44 : vector<4x8x1xf32>
      %c0_26 = arith.constant 0 : index
      %c0_27 = arith.constant 0 : index
      %c0_28 = arith.constant 0 : index
      %46 = vector.load %arg19[%c0_26, %c0_27, %c0_28] : memref<4x8x1xf32, #tpu.memory_space<vmem>>, vector<4x8x1xf32>
      tpu.vector_store %arg19[%c0_26, %c0_27, %c0_28], %45 {strides = array<i32>} : memref<4x8x1xf32, #tpu.memory_space<vmem>>, vector<4x8x1xf32>,
      %c0_29 = arith.constant 0 : index
      %c0_30 = arith.constant 0 : index
      %c0_31 = arith.constant 0 : index
      %47 = vector.load %arg20[%c0_29, %c0_30, %c0_31] : memref<4x8x8xf32, #tpu.memory_space<vmem>>, vector<4x8x8xf32>
      %48 = vector.broadcast %37 : vector<4x8x1xf32> to vector<4x8x8xf32>
      %49 = arith.mulf %48, %47 : vector<4x8x8xf32>
      %50 = arith.truncf %40 : vector<4x8x8xf32> to vector<4x8x8xbf16>
      %cst_32 = arith.constant dense<0.000000e+00> : vector<4x8x8xf32>
      %51 = tpu.matmul %50, %16, %cst_32 {dimension_numbers = #tpu.dot_dimension_numbers<[2], [1], [1], [2], [0, 0, 0, 1, 1, 2], [0], [0]>} : vector<4x8x8xbf16>, vector<4x8x8xbf16>, vector<4x8x8xf32> -> vector<4x8x8xf32>
      %52 = arith.addf %49, %51 : vector<4x8x8xf32>
      %c0_33 = arith.constant 0 : index
      %c0_34 = arith.constant 0 : index
      %c0_35 = arith.constant 0 : index
      %53 = vector.load %arg20[%c0_33, %c0_34, %c0_35] : memref<4x8x8xf32, #tpu.memory_space<vmem>>, vector<4x8x8xf32>
      tpu.vector_store %arg20[%c0_33, %c0_34, %c0_35], %52 {strides = array<i32>} : memref<4x8x8xf32, #tpu.memory_space<vmem>>, vector<4x8x8xf32>,
      %c0_36 = arith.constant 0 : index
      %c0_37 = arith.constant 0 : index
      %c0_38 = arith.constant 0 : index
      %54 = vector.load %arg18[%c0_36, %c0_37, %c0_38] : memref<4x8x1xf32, #tpu.memory_space<vmem>>, vector<4x8x1xf32>
      tpu.vector_store %arg18[%c0_36, %c0_37, %c0_38], %35 {strides = array<i32>} : memref<4x8x1xf32, #tpu.memory_space<vmem>>, vector<4x8x1xf32>,
    } else {
    }
    %c0_i32_4 = arith.constant 0 : i32
    %10 = arith.cmpi eq, %arg2, %c0_i32_4 : i32
    %11 = arith.extui %10 : i1 to i32
    %c0_i32_5 = arith.constant 0 : i32
    %12 = arith.cmpi ne, %11, %c0_i32_5 : i32
    scf.if %12 {
      %c0 = arith.constant 0 : index
      %c0_6 = arith.constant 0 : index
      %c0_7 = arith.constant 0 : index
      %13 = vector.load %arg19[%c0, %c0_6, %c0_7] : memref<4x8x1xf32, #tpu.memory_space<vmem>>, vector<4x8x1xf32>
      %14 = tpu.reciprocal %13 {approx = true} : vector<4x8x1xf32> -> vector<4x8x1xf32>
      %c0_8 = arith.constant 0 : index
      %c0_9 = arith.constant 0 : index
      %c0_10 = arith.constant 0 : index
      %15 = vector.load %arg20[%c0_8, %c0_9, %c0_10] : memref<4x8x8xf32, #tpu.memory_space<vmem>>, vector<1x8x8xf32>
      %16 = vector.shape_cast %15 : vector<1x8x8xf32> to vector<8x8xf32>
      %17 = vector.extract_strided_slice %14 {offsets = [0, 0, 0], sizes = [1, 8, 1], strides = [1, 1, 1]} : vector<4x8x1xf32> to vector<1x8x1xf32>
      %18 = vector.shape_cast %17 : vector<1x8x1xf32> to vector<8x1xf32>
      %19 = vector.broadcast %18 : vector<8x1xf32> to vector<8x8xf32>
      %20 = arith.mulf %16, %19 : vector<8x8xf32>
      %21 = arith.truncf %20 : vector<8x8xf32> to vector<8x8xbf16>
      %c0_11 = arith.constant 0 : index
      %c0_12 = arith.constant 0 : index
      %22 = vector.load %arg21[%c0_11, %c0_12] : memref<8x32xbf16, #tpu.memory_space<vmem>>, vector<8x8xbf16>
      tpu.vector_store %arg21[%c0_11, %c0_12], %21 {strides = array<i32>} : memref<8x32xbf16, #tpu.memory_space<vmem>>, vector<8x8xbf16>,
      %c1 = arith.constant 1 : index
      %c0_13 = arith.constant 0 : index
      %c0_14 = arith.constant 0 : index
      %23 = vector.load %arg20[%c1, %c0_13, %c0_14] : memref<4x8x8xf32, #tpu.memory_space<vmem>>, vector<1x8x8xf32>
      %24 = vector.shape_cast %23 : vector<1x8x8xf32> to vector<8x8xf32>
      %25 = vector.extract_strided_slice %14 {offsets = [1, 0, 0], sizes = [1, 8, 1], strides = [1, 1, 1]} : vector<4x8x1xf32> to vector<1x8x1xf32>
      %26 = vector.shape_cast %25 : vector<1x8x1xf32> to vector<8x1xf32>
      %27 = vector.broadcast %26 : vector<8x1xf32> to vector<8x8xf32>
      %28 = arith.mulf %24, %27 : vector<8x8xf32>
      %29 = arith.truncf %28 : vector<8x8xf32> to vector<8x8xbf16>
      %c0_15 = arith.constant 0 : index
      %c8 = arith.constant 8 : index
      %30 = vector.load %arg21[%c0_15, %c8] : memref<8x32xbf16, #tpu.memory_space<vmem>>, vector<8x8xbf16>
      tpu.vector_store %arg21[%c0_15, %c8], %29 {strides = array<i32>} : memref<8x32xbf16, #tpu.memory_space<vmem>>, vector<8x8xbf16>,
      %c2 = arith.constant 2 : index
      %c0_16 = arith.constant 0 : index
      %c0_17 = arith.constant 0 : index
      %31 = vector.load %arg20[%c2, %c0_16, %c0_17] : memref<4x8x8xf32, #tpu.memory_space<vmem>>, vector<1x8x8xf32>
      %32 = vector.shape_cast %31 : vector<1x8x8xf32> to vector<8x8xf32>
      %33 = vector.extract_strided_slice %14 {offsets = [2, 0, 0], sizes = [1, 8, 1], strides = [1, 1, 1]} : vector<4x8x1xf32> to vector<1x8x1xf32>
      %34 = vector.shape_cast %33 : vector<1x8x1xf32> to vector<8x1xf32>
      %35 = vector.broadcast %34 : vector<8x1xf32> to vector<8x8xf32>
      %36 = arith.mulf %32, %35 : vector<8x8xf32>
      %37 = arith.truncf %36 : vector<8x8xf32> to vector<8x8xbf16>
      %c0_18 = arith.constant 0 : index
      %c16 = arith.constant 16 : index
      %38 = vector.load %arg21[%c0_18, %c16] : memref<8x32xbf16, #tpu.memory_space<vmem>>, vector<8x8xbf16>
      tpu.vector_store %arg21[%c0_18, %c16], %37 {strides = array<i32>} : memref<8x32xbf16, #tpu.memory_space<vmem>>, vector<8x8xbf16>,
      %c3 = arith.constant 3 : index
      %c0_19 = arith.constant 0 : index
      %c0_20 = arith.constant 0 : index
      %39 = vector.load %arg20[%c3, %c0_19, %c0_20] : memref<4x8x8xf32, #tpu.memory_space<vmem>>, vector<1x8x8xf32>
      %40 = vector.shape_cast %39 : vector<1x8x8xf32> to vector<8x8xf32>
      %41 = vector.extract_strided_slice %14 {offsets = [3, 0, 0], sizes = [1, 8, 1], strides = [1, 1, 1]} : vector<4x8x1xf32> to vector<1x8x1xf32>
      %42 = vector.shape_cast %41 : vector<1x8x1xf32> to vector<8x1xf32>
      %43 = vector.broadcast %42 : vector<8x1xf32> to vector<8x8xf32>
      %44 = arith.mulf %40, %43 : vector<8x8xf32>
      %45 = arith.truncf %44 : vector<8x8xf32> to vector<8x8xbf16>
      %c0_21 = arith.constant 0 : index
      %c24 = arith.constant 24 : index
      %46 = vector.load %arg21[%c0_21, %c24] : memref<8x32xbf16, #tpu.memory_space<vmem>>, vector<8x8xbf16>
      tpu.vector_store %arg21[%c0_21, %c24], %45 {strides = array<i32>} : memref<8x32xbf16, #tpu.memory_space<vmem>>, vector<8x8xbf16>,
      %c0_22 = arith.constant 0 : index
      %c0_23 = arith.constant 0 : index
      %c0_24 = arith.constant 0 : index
      %47 = vector.load %arg3[%c0_22, %c0_23, %c0_24] : memref<1x8x32xf32, #tpu.memory_space<vmem>>, vector<1x8x32xf32>
      %48 = vector.shape_cast %47 : vector<1x8x32xf32> to vector<8x32xf32>
      %c0_25 = arith.constant 0 : index
      %c0_26 = arith.constant 0 : index
      %49 = vector.load %arg21[%c0_25, %c0_26] : memref<8x32xbf16, #tpu.memory_space<vmem>>, vector<8x32xbf16>
      %c0_27 = arith.constant 0 : index
      %c0_28 = arith.constant 0 : index
      %50 = vector.load %arg7[%c0_27, %c0_28] : memref<32x32xbf16, #tpu.memory_space<vmem>>, vector<32x32xbf16>
      %cst = arith.constant dense<0.000000e+00> : vector<8x32xf32>
      %51 = tpu.matmul %49, %50, %cst {dimension_numbers = #tpu.dot_dimension_numbers<[1], [0], [0], [1], [0, 0, 1, 1], [], []>} : vector<8x32xbf16>, vector<32x32xbf16>, vector<8x32xf32> -> vector<8x32xf32>
      %52 = arith.addf %51, %48 : vector<8x32xf32>
      %cst_29 = arith.constant dense<0.000000e+00> : vector<8xf32>
      %53 = vector.multi_reduction <add>, %52, %cst_29 [1] : vector<8x32xf32> to vector<8xf32>
      %54 = vector.shape_cast %53 : vector<8xf32> to vector<8x1xf32>
      %cst_30 = arith.constant 3.200000e+01 : f32
      %55 = vector.broadcast %cst_30 : f32 to vector<8x1xf32>
      %56 = arith.divf %54, %55 : vector<8x1xf32>
      %57 = vector.broadcast %56 : vector<8x1xf32> to vector<8x32xf32>
      %58 = arith.subf %52, %57 : vector<8x32xf32>
      %59 = arith.mulf %58, %58 : vector<8x32xf32>
      %cst_31 = arith.constant dense<0.000000e+00> : vector<8xf32>
      %60 = vector.multi_reduction <add>, %59, %cst_31 [1] : vector<8x32xf32> to vector<8xf32>
      %61 = vector.shape_cast %60 : vector<8xf32> to vector<8x1xf32>
      %cst_32 = arith.constant 0.0322580636 : f32
      %62 = vector.broadcast %cst_32 : f32 to vector<8x1xf32>
      %63 = arith.mulf %61, %62 : vector<8x1xf32>
      %64 = math.sqrt %63 : vector<8x1xf32>
      %c0_33 = arith.constant 0 : index
      %c0_34 = arith.constant 0 : index
      %65 = vector.load %arg12[%c0_33, %c0_34] : memref<1x32xf32, #tpu.memory_space<vmem>>, vector<1x32xf32>
      %cst_35 = arith.constant 9.99999974E-6 : f32
      %66 = vector.broadcast %cst_35 : f32 to vector<8x1xf32>
      %67 = arith.addf %64, %66 : vector<8x1xf32>
      %68 = vector.broadcast %67 : vector<8x1xf32> to vector<8x32xf32>
      %69 = arith.divf %58, %68 : vector<8x32xf32>
      %70 = vector.broadcast %65 : vector<1x32xf32> to vector<8x32xf32>
      %71 = arith.mulf %70, %69 : vector<8x32xf32>
      %c0_36 = arith.constant 0 : index
      %c0_37 = arith.constant 0 : index
      %72 = vector.load %arg13[%c0_36, %c0_37] : memref<1x32xf32, #tpu.memory_space<vmem>>, vector<1x32xf32>
      %73 = vector.broadcast %72 : vector<1x32xf32> to vector<8x32xf32>
      %74 = arith.addf %71, %73 : vector<8x32xf32>
      %75 = arith.truncf %74 : vector<8x32xf32> to vector<8x32xbf16>
      %c0_38 = arith.constant 0 : index
      %c0_39 = arith.constant 0 : index
      %76 = vector.load %arg8[%c0_38, %c0_39] : memref<32x64xbf16, #tpu.memory_space<vmem>>, vector<32x64xbf16>
      %cst_40 = arith.constant dense<0.000000e+00> : vector<8x64xf32>
      %77 = tpu.matmul %75, %76, %cst_40 {dimension_numbers = #tpu.dot_dimension_numbers<[1], [0], [0], [1], [0, 0, 1, 1], [], []>} : vector<8x32xbf16>, vector<32x64xbf16>, vector<8x64xf32> -> vector<8x64xf32>
      %c0_41 = arith.constant 0 : index
      %c0_42 = arith.constant 0 : index
      %78 = vector.load %arg9[%c0_41, %c0_42] : memref<1x64xf32, #tpu.memory_space<vmem>>, vector<1x64xf32>
      %79 = vector.broadcast %78 : vector<1x64xf32> to vector<8x64xf32>
      %80 = arith.addf %77, %79 : vector<8x64xf32>
      %cst_43 = arith.constant 0.000000e+00 : f32
      %81 = vector.broadcast %cst_43 : f32 to vector<8x64xf32>
      %82 = arith.maximumf %80, %81 : vector<8x64xf32>
      %83 = arith.truncf %82 : vector<8x64xf32> to vector<8x64xbf16>
      %c0_44 = arith.constant 0 : index
      %c0_45 = arith.constant 0 : index
      %84 = vector.load %arg10[%c0_44, %c0_45] : memref<64x32xbf16, #tpu.memory_space<vmem>>, vector<64x32xbf16>
      %cst_46 = arith.constant dense<0.000000e+00> : vector<8x32xf32>
      %85 = tpu.matmul %83, %84, %cst_46 {dimension_numbers = #tpu.dot_dimension_numbers<[1], [0], [0], [1], [0, 0, 1, 1], [], []>} : vector<8x64xbf16>, vector<64x32xbf16>, vector<8x32xf32> -> vector<8x32xf32>
      %c0_47 = arith.constant 0 : index
      %c0_48 = arith.constant 0 : index
      %86 = vector.load %arg11[%c0_47, %c0_48] : memref<1x32xf32, #tpu.memory_space<vmem>>, vector<1x32xf32>
      %87 = vector.broadcast %86 : vector<1x32xf32> to vector<8x32xf32>
      %88 = arith.addf %85, %87 : vector<8x32xf32>
      %89 = arith.addf %88, %74 : vector<8x32xf32>
      %cst_49 = arith.constant dense<0.000000e+00> : vector<8xf32>
      %90 = vector.multi_reduction <add>, %89, %cst_49 [1] : vector<8x32xf32> to vector<8xf32>
      %91 = vector.shape_cast %90 : vector<8xf32> to vector<8x1xf32>
      %cst_50 = arith.constant 3.200000e+01 : f32
      %92 = vector.broadcast %cst_50 : f32 to vector<8x1xf32>
      %93 = arith.divf %91, %92 : vector<8x1xf32>
      %94 = vector.broadcast %93 : vector<8x1xf32> to vector<8x32xf32>
      %95 = arith.subf %89, %94 : vector<8x32xf32>
      %96 = arith.mulf %95, %95 : vector<8x32xf32>
      %cst_51 = arith.constant dense<0.000000e+00> : vector<8xf32>
      %97 = vector.multi_reduction <add>, %96, %cst_51 [1] : vector<8x32xf32> to vector<8xf32>
      %98 = vector.shape_cast %97 : vector<8xf32> to vector<8x1xf32>
      %cst_52 = arith.constant 0.0322580636 : f32
      %99 = vector.broadcast %cst_52 : f32 to vector<8x1xf32>
      %100 = arith.mulf %98, %99 : vector<8x1xf32>
      %101 = math.sqrt %100 : vector<8x1xf32>
      %c0_53 = arith.constant 0 : index
      %c0_54 = arith.constant 0 : index
      %102 = vector.load %arg14[%c0_53, %c0_54] : memref<1x32xf32, #tpu.memory_space<vmem>>, vector<1x32xf32>
      %cst_55 = arith.constant 9.99999974E-6 : f32
      %103 = vector.broadcast %cst_55 : f32 to vector<8x1xf32>
      %104 = arith.addf %101, %103 : vector<8x1xf32>
      %105 = vector.broadcast %104 : vector<8x1xf32> to vector<8x32xf32>
      %106 = arith.divf %95, %105 : vector<8x32xf32>
      %107 = vector.broadcast %102 : vector<1x32xf32> to vector<8x32xf32>
      %108 = arith.mulf %107, %106 : vector<8x32xf32>
      %c0_56 = arith.constant 0 : index
      %c0_57 = arith.constant 0 : index
      %109 = vector.load %arg15[%c0_56, %c0_57] : memref<1x32xf32, #tpu.memory_space<vmem>>, vector<1x32xf32>
      %110 = vector.broadcast %109 : vector<1x32xf32> to vector<8x32xf32>
      %111 = arith.addf %108, %110 : vector<8x32xf32>
      %c0_58 = arith.constant 0 : index
      %c0_59 = arith.constant 0 : index
      %c0_60 = arith.constant 0 : index
      %112 = vector.load %arg16[%c0_58, %c0_59, %c0_60] : memref<1x8x32xf32, #tpu.memory_space<vmem>>, vector<1x8x32xf32>
      %113 = vector.shape_cast %112 : vector<1x8x32xf32> to vector<8x32xf32>
      %114 = vector.shape_cast %111 : vector<8x32xf32> to vector<1x8x32xf32>
      tpu.vector_store %arg16[%c0_58, %c0_59, %c0_60], %114 {strides = array<i32>} : memref<1x8x32xf32, #tpu.memory_space<vmem>>, vector<1x8x32xf32>,
    } else {
    }
    return
  }
  func.func @transform_0(%arg0: i32, %arg1: i32, %arg2: i32) -> (i32, i32, i32) {
    %c0_i32 = arith.constant 0 : i32
    %c0_i32_0 = arith.constant 0 : i32
    return %arg0, %arg1, %c0_i32 : i32, i32, i32
  }
  func.func @transform_1(%arg0: i32, %arg1: i32, %arg2: i32) -> (i32, i32) {
    %c0_i32 = arith.constant 0 : i32
    %c0_i32_0 = arith.constant 0 : i32
    %c0_i32_1 = arith.constant 0 : i32
    return %c0_i32, %c0_i32_0 : i32, i32
  }
  func.func @transform_2(%arg0: i32, %arg1: i32, %arg2: i32) -> (i32, i32, i32, i32) {
    %c0_i32 = arith.constant 0 : i32
    %c0_i32_0 = arith.constant 0 : i32
    %c0_i32_1 = arith.constant 0 : i32
    return %arg0, %c0_i32, %arg2, %c0_i32_0 : i32, i32, i32, i32
  }
  func.func @transform_3(%arg0: i32, %arg1: i32, %arg2: i32) -> (i32, i32, i32, i32) {
    %c0_i32 = arith.constant 0 : i32
    %c0_i32_0 = arith.constant 0 : i32
    %c0_i32_1 = arith.constant 0 : i32
    return %arg0, %c0_i32, %arg2, %c0_i32_0 : i32, i32, i32, i32
  }
  func.func @transform_4(%arg0: i32, %arg1: i32, %arg2: i32) -> (i32, i32) {
    %c0_i32 = arith.constant 0 : i32
    %c0_i32_0 = arith.constant 0 : i32
    %c0_i32_1 = arith.constant 0 : i32
    return %c0_i32, %c0_i32_0 : i32, i32
  }
  func.func @transform_5(%arg0: i32, %arg1: i32, %arg2: i32) -> (i32, i32) {
    %c0_i32 = arith.constant 0 : i32
    %c0_i32_0 = arith.constant 0 : i32
    %c0_i32_1 = arith.constant 0 : i32
    return %c0_i32, %c0_i32_0 : i32, i32
  }
  func.func @transform_6(%arg0: i32, %arg1: i32, %arg2: i32) -> (i32, i32) {
    %c0_i32 = arith.constant 0 : i32
    %c0_i32_0 = arith.constant 0 : i32
    %c0_i32_1 = arith.constant 0 : i32
    return %c0_i32, %c0_i32_0 : i32, i32
  }
  func.func @transform_7(%arg0: i32, %arg1: i32, %arg2: i32) -> (i32, i32) {
    %c0_i32 = arith.constant 0 : i32
    %c0_i32_0 = arith.constant 0 : i32
    %c0_i32_1 = arith.constant 0 : i32
    return %c0_i32, %c0_i32_0 : i32, i32
  }
  func.func @transform_8(%arg0: i32, %arg1: i32, %arg2: i32) -> (i32, i32) {
    %c0_i32 = arith.constant 0 : i32
    %c0_i32_0 = arith.constant 0 : i32
    %c0_i32_1 = arith.constant 0 : i32
    return %c0_i32, %c0_i32_0 : i32, i32
  }
  func.func @transform_9(%arg0: i32, %arg1: i32, %arg2: i32) -> (i32, i32) {
    %c0_i32 = arith.constant 0 : i32
    %c0_i32_0 = arith.constant 0 : i32
    %c0_i32_1 = arith.constant 0 : i32
    return %c0_i32, %c0_i32_0 : i32, i32
  }
  func.func @transform_10(%arg0: i32, %arg1: i32, %arg2: i32) -> (i32, i32) {
    %c0_i32 = arith.constant 0 : i32
    %c0_i32_0 = arith.constant 0 : i32
    %c0_i32_1 = arith.constant 0 : i32
    return %c0_i32, %c0_i32_0 : i32, i32
  }
  func.func @transform_11(%arg0: i32, %arg1: i32, %arg2: i32) -> (i32, i32) {
    %c0_i32 = arith.constant 0 : i32
    %c0_i32_0 = arith.constant 0 : i32
    %c0_i32_1 = arith.constant 0 : i32
    return %c0_i32, %c0_i32_0 : i32, i32
  }
  func.func @transform_12(%arg0: i32, %arg1: i32, %arg2: i32) -> (i32, i32) {
    %c0_i32 = arith.constant 0 : i32
    %c0_i32_0 = arith.constant 0 : i32
    %c0_i32_1 = arith.constant 0 : i32
    return %c0_i32, %c0_i32_0 : i32, i32
  }
  func.func @transform_13(%arg0: i32, %arg1: i32, %arg2: i32) -> (i32, i32, i32) {
    %c0_i32 = arith.constant 0 : i32
    %c0_i32_0 = arith.constant 0 : i32
    return %arg0, %arg1, %c0_i32 : i32, i32, i32
  }
}

</mosaic_0001>

<llo_original>
// kernel: tpu_custom_call.1
$region0: #{tpu_custom_call.1}
  #allocation0 [shape = 'u32[]', space=smem, size = 0x4, offset = 0x4, fixed_abs, tag = 'smem constant byte address 0x4 - core index']
  #allocation1 [shape = 'u32[144,128]{1,0:T(1,128)}', space=vmem, size = 0x12000, scoped, tag = 'internal scratch']
  %s0 = inlined_call_operand.hbm [shape: f32[8,128], index: 0, kind: input, shape index: {}]
  %s1 = inlined_call_operand.hbm [shape: f32[8,128], index: 1, kind: output, shape index: {}]
  %s2 = sld [smem:[#allocation0]]
  $region41: #{tpu_custom_call.1} parent=0
    _
  %s4 = ssub.s32 1, %s2
  %s5 = scalar_select 0, %s4, %s2
  $region1: #{tpu_custom_call.1} parent=0
    #allocation2 [shape = 'u8[4096]{0}', space=vmem, size = 0x1000, scoped, tag = 'input window, operand 0, single buffered']
    #allocation3 [shape = 's32[2]{0}', space=sflag, size = 0x8, scoped, tag = 'scoped memory for tpu_custom_call.1']
    #allocation4 [shape = 's32[2]{0}', space=sflag, size = 0x8, scoped, tag = 'scoped memory for tpu_custom_call.1']
    #allocation5 [shape = 'u8[4096]{0}', space=vmem, size = 0x1000, scoped, tag = 'output window, operand 0, single buffered']
    %6 = vsyncpa [#allocation3], 0
    %7 = vsyncpa [#allocation4], 0
    loop: start=0, step=1, limit=4
    $region2: #{tpu_custom_call.1} parent=1 // loop_pre_header
      _
    $region3: #{tpu_custom_call.1} parent=1 // loop_header
      %s9 = sphi 0, %s13
      %p10 = scmp.ge.s32.totalorder %s9, 4
      %s17 = sphi 0, %s17
      %s19 = sphi 0, %s17
      %s20 = sphi 0, %s19
      %s34 = sphi 0, %s20
      %s38 = sphi 0, %s38
      %s40 = sphi 0, %s38
      %s41 = sphi 0, %s40
      %s55 = sphi 0, %s41
    $region4: #{tpu_custom_call.1} parent=1 // loop_header_branch
      %12 = sbr.rel (%p10) target = $region8
    $region5: #{tpu_custom_call.1} parent=1 // loop_body
      %s14 = ssub.s32 %s9, 1
      %s15 = ssub.s32 %s9, 2
      %s16 = sadd.s32 %s9, 1
      %s18 = sadd.s32 %s17, 1
      %p21 = scmp.eq.s32.totalorder %s9, 1
      %p22 = scmp.ne.s32.totalorder %s17, %s19
      %p23 = scmp.eq.s32.totalorder %s9, 0
      %p24 = por %p22, %p23
      %p25 = scmp.ne.s32.totalorder %s17, %s19
      %p26 = scmp.eq.s32.totalorder %s14, 1
      %p27 = por %p25, %p26
      %p28 = scmp.ne.s32.totalorder %s19, %s20
      %p29 = scmp.eq.s32.totalorder %s14, 0
      %p30 = por %p28, %p29
      %p31 = scmp.ne.s32.totalorder %s19, %s20
      %p32 = scmp.eq.s32.totalorder %s15, 1
      %p33 = por %p31, %p32
      %p35 = scmp.ne.s32.totalorder %s20, %s34
      %p36 = scmp.eq.s32.totalorder %s15, 0
      %p37 = por %p35, %p36
      %s39 = sadd.s32 %s38, 1
      %p42 = scmp.eq.s32.totalorder %s9, 1
      %p43 = scmp.ne.s32.totalorder %s38, %s40
      %p44 = scmp.eq.s32.totalorder %s9, 0
      %p45 = por %p43, %p44
      %p46 = scmp.ne.s32.totalorder %s38, %s40
      %p47 = scmp.eq.s32.totalorder %s14, 1
      %p48 = por %p46, %p47
      %p49 = scmp.ne.s32.totalorder %s40, %s41
      %p50 = scmp.eq.s32.totalorder %s14, 0
      %p51 = por %p49, %p50
      %p52 = scmp.ne.s32.totalorder %s40, %s41
      %p53 = scmp.eq.s32.totalorder %s15, 1
      %p54 = por %p52, %p53
      %p56 = scmp.ne.s32.totalorder %s41, %s55
      %p57 = scmp.eq.s32.totalorder %s15, 0
      %p58 = por %p56, %p57
      %p59 = scmp.le.s32.totalorder 1, %s9
      %p60 = scmp.lt.s32.totalorder %s9, 3
      %p61 = pnand %p59, %p60
      %p62 = pneg %p61
      // Predicated region
      $region9: #{tpu_custom_call.1} parent=5 // pred_check
        _
      $region10: #{tpu_custom_call.1} parent=5 // pred_check_branch
        %64 = sbr.rel (%p61) target = $region12
      $region11: #{tpu_custom_call.1} parent=5 // pred_region
        %s65 = ssub.s32 %s9, 1
        // Predicated region
        $region13: #{tpu_custom_call.1} parent=11 // pred_check
          %p66 = pneg %p30
        $region14: #{tpu_custom_call.1} parent=11 // pred_check_branch
          %68 = sbr.rel (%p66) target = $region16
        $region15: #{tpu_custom_call.1} parent=11 // pred_region
          %s70 = ssub.s32 128, 128
          %71 = vsyncadd [#allocation3], %s70
          %s73 = sshll.u32 [#allocation2], 4
          %s74 = int_to_ptr.vmem [resolvable:$true] %s73
          %76 = dma.hbm_to_vmem [thread:$0]  %s0, 128, %s74, [#allocation3]
        $region16: #{tpu_custom_call.1} parent=11 // pred_fallthru
          _
      $region12: #{tpu_custom_call.1} parent=5 // pred_fallthru
        _
      %p77 = scmp.lt.s32.totalorder %s9, 2
      // Predicated region
      $region17: #{tpu_custom_call.1} parent=5 // pred_check
        %p78 = pneg %p77
      $region18: #{tpu_custom_call.1} parent=5 // pred_check_branch
        %80 = sbr.rel (%p78) target = $region20
      $region19: #{tpu_custom_call.1} parent=5 // pred_region
        _
      $region20: #{tpu_custom_call.1} parent=5 // pred_fallthru
        _
      %p81 = scmp.le.s32.totalorder 1, %s9
      %p82 = scmp.lt.s32.totalorder %s9, 3
      %p83 = pnand %p81, %p82
      %p84 = pneg %p83
      // Predicated region
      $region21: #{tpu_custom_call.1} parent=5 // pred_check
        _
      $region22: #{tpu_custom_call.1} parent=5 // pred_check_branch
        %86 = sbr.rel (%p83) target = $region24
      $region23: #{tpu_custom_call.1} parent=5 // pred_region
        %s87 = ssub.s32 %s9, 1
        // Predicated region
        $region25: #{tpu_custom_call.1} parent=23 // pred_check
          %p88 = pneg %p30
        $region26: #{tpu_custom_call.1} parent=23 // pred_check_branch
          %90 = sbr.rel (%p88) target = $region28
        $region27: #{tpu_custom_call.1} parent=23 // pred_region
          %91 = dma.done [#allocation3], 128
        $region28: #{tpu_custom_call.1} parent=23 // pred_fallthru
          _
        %p92 = pneg %p30
        %p93 = pneg %p27
        %p94 = pneg %p51
        %p95 = pneg %p48
        %v96 = vld [vmem:[#allocation2] sm:$0xff]
        %v97 = vadd.f32 %v96, 1.0
        %98 = vst [vmem:[#allocation5] sm:$0xff] %v97
        // Predicated region
        $region29: #{tpu_custom_call.1} parent=23 // pred_check
          %p99 = pneg %p48
        $region30: #{tpu_custom_call.1} parent=23 // pred_check_branch
          %101 = sbr.rel (%p99) target = $region32
        $region31: #{tpu_custom_call.1} parent=23 // pred_region
          %s103 = ssub.s32 128, 128
          %104 = vsyncadd [#allocation4], %s103
          %s106 = sshll.u32 [#allocation5], 4
          %s107 = int_to_ptr.vmem [resolvable:$true] %s106
          %109 = dma.vmem_to_hbm [thread:$0]  %s107, 128, %s1, [#allocation4]
        $region32: #{tpu_custom_call.1} parent=23 // pred_fallthru
          _
        // Predicated region
        $region33: #{tpu_custom_call.1} parent=23 // pred_check
          %p110 = pneg %p48
        $region34: #{tpu_custom_call.1} parent=23 // pred_check_branch
          %112 = sbr.rel (%p110) target = $region36
        $region35: #{tpu_custom_call.1} parent=23 // pred_region
          %113 = dma.done [#allocation4], 128
        $region36: #{tpu_custom_call.1} parent=23 // pred_fallthru
          _
      $region24: #{tpu_custom_call.1} parent=5 // pred_fallthru
        _
      %p114 = scmp.le.s32.totalorder 2, %s9
      // Predicated region
      $region37: #{tpu_custom_call.1} parent=5 // pred_check
        %p115 = pneg %p114
      $region38: #{tpu_custom_call.1} parent=5 // pred_check_branch
        %117 = sbr.rel (%p115) target = $region40
      $region39: #{tpu_custom_call.1} parent=5 // pred_region
        %s118 = ssub.s32 %s9, 2
      $region40: #{tpu_custom_call.1} parent=5 // pred_fallthru
        _
    $region6: #{tpu_custom_call.1} parent=1 // loop_footer
      %s13 = sadd.s32 1, %s9
    $region7: #{tpu_custom_call.1} parent=1 // loop_footer_branch
      %8 = sbr.rel target = $region3
    $region8: #{tpu_custom_call.1} parent=1 // loop_exit
      _
    %119 = vsyncpa [#allocation3], 1
    %s120 = scalar_lea.sflag [#allocation3], 1
    %121 = vsyncpa %s120, 1
    %122 = vsyncpa [#allocation4], 1
    %s123 = scalar_lea.sflag [#allocation4], 1
    %124 = vsyncpa %s123, 1

// kernel: transformer_wrapper_forward.5
$region0: #{transformer_wrapper_forward.5}
  #allocation0 [shape = 'u32[]', space=smem, size = 0x4, offset = 0x4, fixed_abs, tag = 'smem constant byte address 0x4 - core index']
  #allocation1 [shape = 'u32[144,128]{1,0:T(1,128)}', space=vmem, size = 0x12000, scoped, tag = 'internal scratch']
  %s0 = inlined_call_operand.vmem [shape: f32[2,8,32], index: 0, kind: input, shape index: {}]
  %s1 = inlined_call_operand.vmem [shape: bf16[32,64], index: 1, kind: input, shape index: {}]
  %s2 = inlined_call_operand.vmem [shape: bf16[2,4,8,8], index: 2, kind: output, shape index: {0}]
  %s3 = inlined_call_operand.vmem [shape: bf16[2,4,8,8], index: 3, kind: output, shape index: {1}]
  %4 = xla_tuple %s2, %s3
  %s5 = sld [smem:[#allocation0]]
  $region49: #{transformer_wrapper_forward.5} parent=0
    _
  %s7 = ssub.s32 1, %s5
  %s8 = scalar_select 0, %s7, %s5
  loop: start=0, step=1, limit=4
  $region2: #{transformer_wrapper_forward.5} parent=0 // loop_pre_header
    _
  $region3: #{transformer_wrapper_forward.5} parent=0 // loop_header
    %s10 = sphi 0, %s14
    %p11 = scmp.ge.s32.totalorder %s10, 4
    %s17 = sphi 0, %s29
    %s18 = sphi 0, %s25
    %s19 = sphi 0, %s17
    %s20 = sphi 0, %s18
    %s21 = sphi 0, %s19
    %s22 = sphi 0, %s20
    %s34 = sphi 0, %s36
    %s37 = sphi 0, %s34
    %s38 = sphi 0, %s37
    %s54 = sphi 0, %s38
    %s58 = sphi 0, %s58
    %s60 = sphi 0, %s58
    %s61 = sphi 0, %s60
    %s75 = sphi 0, %s61
    %s83 = sphi 0, %s85
    %s86 = sphi 0, %s83
    %s87 = sphi 0, %s86
    %s103 = sphi 0, %s87
    %s111 = sphi 0, %s113
    %s114 = sphi 0, %s111
    %s115 = sphi 0, %s114
    %s131 = sphi 0, %s115
  $region4: #{transformer_wrapper_forward.5} parent=0 // loop_header_branch
    %13 = sbr.rel (%p11) target = $region8
  $region5: #{transformer_wrapper_forward.5} parent=0 // loop_body
    %s15 = ssub.s32 %s10, 1
    %s16 = ssub.s32 %s10, 2
    %s23 = sadd.s32 1, %s18
    %p24 = scmp.ge.s32.totalorder %s23, 1
    %s25 = scalar_select %p24, 0, %s23
    %s26 = sadd.s32 1, %s17
    %s27 = scalar_select %p24, %s26, %s17
    %p28 = scmp.ge.s32.totalorder %s27, 2
    %s29 = scalar_select %p28, 0, %s27
    %s30 = ssub.s32 %s17, %s29
    %s31 = ssub.s32 %s18, %s25
    %s32 = sor.u32 %s30, %s31
    %p33 = scmp.eq.s32.totalorder %s32, 0
    %s35 = sadd.s32 %s34, 1
    %s36 = scalar_select %p33, %s34, %s35
    %p39 = pneg %p33
    %p40 = scmp.eq.s32.totalorder %s10, 1
    %p41 = por %p39, %p40
    %p42 = scmp.ne.s32.totalorder %s34, %s37
    %p43 = scmp.eq.s32.totalorder %s10, 0
    %p44 = por %p42, %p43
    %p45 = scmp.ne.s32.totalorder %s34, %s37
    %p46 = scmp.eq.s32.totalorder %s15, 1
    %p47 = por %p45, %p46
    %p48 = scmp.ne.s32.totalorder %s37, %s38
    %p49 = scmp.eq.s32.totalorder %s15, 0
    %p50 = por %p48, %p49
    %p51 = scmp.ne.s32.totalorder %s37, %s38
    %p52 = scmp.eq.s32.totalorder %s16, 1
    %p53 = por %p51, %p52
    %p55 = scmp.ne.s32.totalorder %s38, %s54
    %p56 = scmp.eq.s32.totalorder %s16, 0
    %p57 = por %p55, %p56
    %s59 = sadd.s32 %s58, 1
    %p62 = scmp.eq.s32.totalorder %s10, 1
    %p63 = scmp.ne.s32.totalorder %s58, %s60
    %p64 = scmp.eq.s32.totalorder %s10, 0
    %p65 = por %p63, %p64
    %p66 = scmp.ne.s32.totalorder %s58, %s60
    %p67 = scmp.eq.s32.totalorder %s15, 1
    %p68 = por %p66, %p67
    %p69 = scmp.ne.s32.totalorder %s60, %s61
    %p70 = scmp.eq.s32.totalorder %s15, 0
    %p71 = por %p69, %p70
    %p72 = scmp.ne.s32.totalorder %s60, %s61
    %p73 = scmp.eq.s32.totalorder %s16, 1
    %p74 = por %p72, %p73
    %p76 = scmp.ne.s32.totalorder %s61, %s75
    %p77 = scmp.eq.s32.totalorder %s16, 0
    %p78 = por %p76, %p77
    %s79 = ssub.s32 %s17, %s29
    %s80 = ssub.s32 %s18, %s25
    %s81 = sor.u32 %s79, %s80
    %p82 = scmp.eq.s32.totalorder %s81, 0
    %s84 = sadd.s32 %s83, 1
    %s85 = scalar_select %p82, %s83, %s84
    %p88 = pneg %p82
    %p89 = scmp.eq.s32.totalorder %s10, 1
    %p90 = por %p88, %p89
    %p91 = scmp.ne.s32.totalorder %s83, %s86
    %p92 = scmp.eq.s32.totalorder %s10, 0
    %p93 = por %p91, %p92
    %p94 = scmp.ne.s32.totalorder %s83, %s86
    %p95 = scmp.eq.s32.totalorder %s15, 1
    %p96 = por %p94, %p95
    %p97 = scmp.ne.s32.totalorder %s86, %s87
    %p98 = scmp.eq.s32.totalorder %s15, 0
    %p99 = por %p97, %p98
    %p100 = scmp.ne.s32.totalorder %s86, %s87
    %p101 = scmp.eq.s32.totalorder %s16, 1
    %p102 = por %p100, %p101
    %p104 = scmp.ne.s32.totalorder %s87, %s103
    %p105 = scmp.eq.s32.totalorder %s16, 0
    %p106 = por %p104, %p105
    %s107 = ssub.s32 %s17, %s29
    %s108 = ssub.s32 %s18, %s25
    %s109 = sor.u32 %s107, %s108
    %p110 = scmp.eq.s32.totalorder %s109, 0
    %s112 = sadd.s32 %s111, 1
    %s113 = scalar_select %p110, %s111, %s112
    %p116 = pneg %p110
    %p117 = scmp.eq.s32.totalorder %s10, 1
    %p118 = por %p116, %p117
    %p119 = scmp.ne.s32.totalorder %s111, %s114
    %p120 = scmp.eq.s32.totalorder %s10, 0
    %p121 = por %p119, %p120
    %p122 = scmp.ne.s32.totalorder %s111, %s114
    %p123 = scmp.eq.s32.totalorder %s15, 1
    %p124 = por %p122, %p123
    %p125 = scmp.ne.s32.totalorder %s114, %s115
    %p126 = scmp.eq.s32.totalorder %s15, 0
    %p127 = por %p125, %p126
    %p128 = scmp.ne.s32.totalorder %s114, %s115
    %p129 = scmp.eq.s32.totalorder %s16, 1
    %p130 = por %p128, %p129
    %p132 = scmp.ne.s32.totalorder %s115, %s131
    %p133 = scmp.eq.s32.totalorder %s16, 0
    %p134 = por %p132, %p133
    %p135 = scmp.le.s32.totalorder 1, %s10
    %p136 = scmp.lt.s32.totalorder %s10, 3
    %p137 = pnand %p135, %p136
    %p138 = pneg %p137
    // Predicated region
    $region9: #{transformer_wrapper_forward.5} parent=5 // pred_check
      _
    $region10: #{transformer_wrapper_forward.5} parent=5 // pred_check_branch
      %140 = sbr.rel (%p137) target = $region12
    $region11: #{transformer_wrapper_forward.5} parent=5 // pred_region
      %s141 = ssub.s32 %s10, 1
      // Predicated region
      $region13: #{transformer_wrapper_forward.5} parent=11 // pred_check
        %p142 = pneg %p71
      $region14: #{transformer_wrapper_forward.5} parent=11 // pred_check_branch
        %144 = sbr.rel (%p142) target = $region16
      $region15: #{transformer_wrapper_forward.5} parent=11 // pred_region
        _
      $region16: #{transformer_wrapper_forward.5} parent=11 // pred_fallthru
        _
    $region12: #{transformer_wrapper_forward.5} parent=5 // pred_fallthru
      _
    %p145 = scmp.lt.s32.totalorder %s10, 2
    // Predicated region
    $region17: #{transformer_wrapper_forward.5} parent=5 // pred_check
      %p146 = pneg %p145
    $region18: #{transformer_wrapper_forward.5} parent=5 // pred_check_branch
      %148 = sbr.rel (%p146) target = $region20
    $region19: #{transformer_wrapper_forward.5} parent=5 // pred_region
      // Predicated region
      $region21: #{transformer_wrapper_forward.5} parent=19 // pred_check
        %p149 = pneg %p44
      $region22: #{transformer_wrapper_forward.5} parent=19 // pred_check_branch
        %151 = sbr.rel (%p149) target = $region24
      $region23: #{transformer_wrapper_forward.5} parent=19 // pred_region
        %p152 = scmp.lt.s32.totalorder %s17, 1
        %s153 = scalar_select %p152, %s17, 1
        %p154 = scmp.lt.s32.totalorder %s18, 0
        %s155 = scalar_select %p154, %s18, 0
        %s156 = sadd.s32 %s155, %s153
        %s157 = smul.addr %s156, 8
        %s158 = scalar_lea.vmem %s0, %s157
      $region24: #{transformer_wrapper_forward.5} parent=19 // pred_fallthru
        _
    $region20: #{transformer_wrapper_forward.5} parent=5 // pred_fallthru
      _
    %p159 = scmp.le.s32.totalorder 1, %s10
    %p160 = scmp.lt.s32.totalorder %s10, 3
    %p161 = pnand %p159, %p160
    %p162 = pneg %p161
    // Predicated region
    $region25: #{transformer_wrapper_forward.5} parent=5 // pred_check
      _
    $region26: #{transformer_wrapper_forward.5} parent=5 // pred_check_branch
      %164 = sbr.rel (%p161) target = $region28
    $region27: #{transformer_wrapper_forward.5} parent=5 // pred_region
      %s165 = ssub.s32 %s10, 1
      %p166 = scmp.lt.s32.totalorder %s19, 1
      %s167 = scalar_select %p166, %s19, 1
      %p168 = scmp.lt.s32.totalorder %s20, 0
      %s169 = scalar_select %p168, %s20, 0
      %s170 = sadd.s32 %s169, %s167
      %s171 = smul.addr %s170, 8
      %s172 = scalar_lea.vmem %s0, %s171
      %p173 = pneg %p50
      %p174 = pneg %p47
      %p175 = pneg %p71
      %p176 = pneg %p68
      %p177 = pneg %p99
      %p178 = pneg %p96
      %p179 = scmp.lt.s32.totalorder %s19, 1
      %s180 = scalar_select %p179, %s19, 1
      %p181 = scmp.lt.s32.totalorder %s20, 0
      %s182 = scalar_select %p181, %s20, 0
      %s183 = smul.addr %s180, 4
      %s184 = sadd.s32 %s182, %s183
      %s185 = smul.addr %s184, 4
      %s186 = scalar_lea.vmem %s2, %s185
      %p187 = pneg %p127
      %p188 = pneg %p124
      %p189 = scmp.lt.s32.totalorder %s19, 1
      %s190 = scalar_select %p189, %s19, 1
      %p191 = scmp.lt.s32.totalorder %s20, 0
      %s192 = scalar_select %p191, %s20, 0
      %s193 = smul.addr %s190, 4
      %s194 = sadd.s32 %s192, %s193
      %s195 = smul.addr %s194, 4
      %s196 = scalar_lea.vmem %s3, %s195
      %p197 = scmp.lt.s32.totalorder %s19, 1
      %s198 = scalar_select %p197, %s19, 1
      %p199 = scmp.lt.s32.totalorder %s20, 0
      %s200 = scalar_select %p199, %s20, 0
      %s201 = sadd.s32 %s200, %s198
      %s202 = smul.addr %s201, 8
      %s203 = scalar_lea.vmem %s0, %s202
      %p204 = scmp.lt.s32.totalorder %s19, 1
      %s205 = scalar_select %p204, %s19, 1
      %p206 = scmp.lt.s32.totalorder %s20, 0
      %s207 = scalar_select %p206, %s20, 0
      %s208 = smul.addr %s205, 4
      %s209 = sadd.s32 %s207, %s208
      %s210 = smul.addr %s209, 4
      %s211 = scalar_lea.vmem %s2, %s210
      %p212 = scmp.lt.s32.totalorder %s19, 1
      %s213 = scalar_select %p212, %s19, 1
      %p214 = scmp.lt.s32.totalorder %s20, 0
      %s215 = scalar_select %p214, %s20, 0
      %s216 = smul.addr %s213, 4
      %s217 = sadd.s32 %s215, %s216
      %s218 = smul.addr %s217, 4
      %s219 = scalar_lea.vmem %s3, %s218
      %v221 = vld [vmem:[%s203] sm:$0xff]
      %v222 = vpack.c.bf16 %v221, %v221
      %v223 = vld [vmem:[%s1] sm:$0xf]
      %v224 = vld [vmem:[%s1 + $0x4] sm:$0xf]
      %v225 = vld [vmem:[%s1 + $0x8] sm:$0xf]
      %v226 = vld [vmem:[%s1 + $0xc] sm:$0xf]
      %v231 = vunpack.c.l.b16 %v223
      %v232 = vunpack.c.l.b16 %v224
      %v233 = vunpack.c.l.b16 %v225
      %v234 = vunpack.c.l.b16 %v226
      %v235 = vpack.c.b16 %v232, %v231
      %v236 = vpack.c.b16 %v234, %v233
      %vm239 = vcmask 261120
      %v241 = vsel %vm239, %v222, 0
      %243 = vmatprep.subr.bf16.mxu0 0
      %244 = vmatpush1.bf16.msra.mxu0 %v235
      %245 = vmatprep.subr.bf16.mxu0 0
      %246 = vmatpush1.bf16.msra.mxu0 %v236
      %247 = vmatprep.subr.bf16.mxu0 0
      %248 = vmatpush1.bf16.msra.mxu0 0
      %249 = vmatprep.subr.bf16.mxu0 0
      %250 = vmatpush1.bf16.msra.mxu0 0
      %251 = vmatprep.subr.bf16.mxu0 0
      %252 = vmatpush1.bf16.msra.mxu0 0
      %253 = vmatprep.subr.bf16.mxu0 0
      %254 = vmatpush1.bf16.msra.mxu0 0
      %255 = vmatprep.subr.bf16.mxu0 0
      %256 = vmatpush1.bf16.msra.mxu0 0
      %257 = vmatprep.subr.bf16.mxu0 0
      %258 = vmatpush1.bf16.msra.mxu0 0
      %259 = vmatprep.subr.bf16.mxu0 0
      %260 = vmatpush1.bf16.msra.mxu0 0
      %261 = vmatprep.subr.bf16.mxu0 0
      %262 = vmatpush1.bf16.msra.mxu0 0
      %263 = vmatprep.subr.bf16.mxu0 0
      %264 = vmatpush1.bf16.msra.mxu0 0
      %265 = vmatprep.subr.bf16.mxu0 0
      %266 = vmatpush1.bf16.msra.mxu0 0
      %267 = vmatprep.subr.bf16.mxu0 0
      %268 = vmatpush1.bf16.msra.mxu0 0
      %269 = vmatprep.subr.bf16.mxu0 0
      %270 = vmatpush1.bf16.msra.mxu0 0
      %271 = vmatprep.subr.bf16.mxu0 0
      %272 = vmatpush1.bf16.msra.mxu0 0
      %273 = vmatprep.subr.bf16.mxu0 0
      %274 = vmatpush1.bf16.msra.mxu0 0
      %275 = vmatprep.mubr.bf16.mxu0 0
      %276 = vmatmul.mubr.bf16.gmra.mrb[0].mxu0 %v241
      %v277 = vpop.f32.mrb[0].mxu0
      %v278 = vadd.f32 0.0, %v277
      %v279 = vpop.f32.mrb[0].mxu0
      %v280 = vpop.f32.mrb[0].mxu0
      %v281 = vpop.f32.mrb[0].mxu0
      %282 = vdwg.mxu0
      %v283 = vpack.c.bf16 %v278, %v278
      %vm284 = vcmask 60416
      %285 = vst.msk [vmem:[%s211] sm:$0xf] %vm284, %v283
      %v287 = vunpack.c.l.b16 %v283
      %v288 = vpack.c.b16 %v287, %v287
      %289 = vrot.lane.b32.xlu0 %v288, 96
      %v290 = vpop.permute.xlu0 %289
      %292 = vst.msk [vmem:[%s219] sm:$0xf] %vm284, %v290
      %293 = vrot.lane.b32.xlu0 %v288, 120
      %v294 = vpop.permute.xlu0 %293
      %s296 = scalar_lea.vmem %s211, 4
      %297 = vst.msk [vmem:[%s296] sm:$0xf] %vm284, %v294
      %298 = vrot.lane.b32.xlu0 %v288, 88
      %v299 = vpop.permute.xlu0 %298
      %s301 = scalar_lea.vmem %s219, 4
      %302 = vst.msk [vmem:[%s301] sm:$0xf] %vm284, %v299
      %303 = vrot.lane.b32.xlu0 %v288, 112
      %v304 = vpop.permute.xlu0 %303
      %s306 = scalar_lea.vmem %s211, 8
      %307 = vst.msk [vmem:[%s306] sm:$0xf] %vm284, %v304
      %308 = vrot.lane.b32.xlu0 %v288, 80
      %v309 = vpop.permute.xlu0 %308
      %s311 = scalar_lea.vmem %s219, 8
      %312 = vst.msk [vmem:[%s311] sm:$0xf] %vm284, %v309
      %313 = vrot.lane.b32.xlu0 %v288, 104
      %v314 = vpop.permute.xlu0 %313
      %s316 = scalar_lea.vmem %s211, 12
      %317 = vst.msk [vmem:[%s316] sm:$0xf] %vm284, %v314
      %318 = vrot.lane.b32.xlu0 %v288, 72
      %v319 = vpop.permute.xlu0 %318
      %s321 = scalar_lea.vmem %s219, 12
      %322 = vst.msk [vmem:[%s321] sm:$0xf] %vm284, %v319
      %p323 = scmp.lt.s32.totalorder %s19, 1
      %s324 = scalar_select %p323, %s19, 1
      %p325 = scmp.lt.s32.totalorder %s20, 0
      %s326 = scalar_select %p325, %s20, 0
      %s327 = smul.addr %s324, 4
      %s328 = sadd.s32 %s326, %s327
      %s329 = smul.addr %s328, 4
      %s330 = scalar_lea.vmem %s2, %s329
      %p331 = scmp.lt.s32.totalorder %s19, 1
      %s332 = scalar_select %p331, %s19, 1
      %p333 = scmp.lt.s32.totalorder %s20, 0
      %s334 = scalar_select %p333, %s20, 0
      %s335 = smul.addr %s332, 4
      %s336 = sadd.s32 %s334, %s335
      %s337 = smul.addr %s336, 4
      %s338 = scalar_lea.vmem %s3, %s337
      // Predicated region
      $region29: #{transformer_wrapper_forward.5} parent=27 // pred_check
        %p339 = pneg %p96
      $region30: #{transformer_wrapper_forward.5} parent=27 // pred_check_branch
        %341 = sbr.rel (%p339) target = $region32
      $region31: #{transformer_wrapper_forward.5} parent=27 // pred_region
        _
      $region32: #{transformer_wrapper_forward.5} parent=27 // pred_fallthru
        _
      // Predicated region
      $region33: #{transformer_wrapper_forward.5} parent=27 // pred_check
        %p342 = pneg %p124
      $region34: #{transformer_wrapper_forward.5} parent=27 // pred_check_branch
        %344 = sbr.rel (%p342) target = $region36
      $region35: #{transformer_wrapper_forward.5} parent=27 // pred_region
        _
      $region36: #{transformer_wrapper_forward.5} parent=27 // pred_fallthru
        _
    $region28: #{transformer_wrapper_forward.5} parent=5 // pred_fallthru
      _
    %p345 = scmp.le.s32.totalorder 2, %s10
    // Predicated region
    $region37: #{transformer_wrapper_forward.5} parent=5 // pred_check
      %p346 = pneg %p345
    $region38: #{transformer_wrapper_forward.5} parent=5 // pred_check_branch
      %348 = sbr.rel (%p346) target = $region40
    $region39: #{transformer_wrapper_forward.5} parent=5 // pred_region
      %s349 = ssub.s32 %s10, 2
      // Predicated region
      $region41: #{transformer_wrapper_forward.5} parent=39 // pred_check
        %p350 = pneg %p102
      $region42: #{transformer_wrapper_forward.5} parent=39 // pred_check_branch
        %352 = sbr.rel (%p350) target = $region44
      $region43: #{transformer_wrapper_forward.5} parent=39 // pred_region
        %p353 = scmp.lt.s32.totalorder %s21, 1
        %s354 = scalar_select %p353, %s21, 1
        %p355 = scmp.lt.s32.totalorder %s22, 0
        %s356 = scalar_select %p355, %s22, 0
        %s357 = smul.addr %s354, 4
        %s358 = sadd.s32 %s356, %s357
        %s359 = smul.addr %s358, 4
        %s360 = scalar_lea.vmem %s2, %s359
      $region44: #{transformer_wrapper_forward.5} parent=39 // pred_fallthru
        _
      // Predicated region
      $region45: #{transformer_wrapper_forward.5} parent=39 // pred_check
        %p361 = pneg %p130
      $region46: #{transformer_wrapper_forward.5} parent=39 // pred_check_branch
        %363 = sbr.rel (%p361) target = $region48
      $region47: #{transformer_wrapper_forward.5} parent=39 // pred_region
        %p364 = scmp.lt.s32.totalorder %s21, 1
        %s365 = scalar_select %p364, %s21, 1
        %p366 = scmp.lt.s32.totalorder %s22, 0
        %s367 = scalar_select %p366, %s22, 0
        %s368 = smul.addr %s365, 4
        %s369 = sadd.s32 %s367, %s368
        %s370 = smul.addr %s369, 4
        %s371 = scalar_lea.vmem %s3, %s370
      $region48: #{transformer_wrapper_forward.5} parent=39 // pred_fallthru
        _
    $region40: #{transformer_wrapper_forward.5} parent=5 // pred_fallthru
      _
  $region6: #{transformer_wrapper_forward.5} parent=0 // loop_footer
    %s14 = sadd.s32 1, %s10
  $region7: #{transformer_wrapper_forward.5} parent=0 // loop_footer_branch
    %9 = sbr.rel target = $region3
  $region8: #{transformer_wrapper_forward.5} parent=0 // loop_exit
    _

// kernel: transformer_wrapper_forward.9
$region0: #{transformer_wrapper_forward.9}
  #allocation0 [shape = 'u32[]', space=smem, size = 0x4, offset = 0x4, fixed_abs, tag = 'smem constant byte address 0x4 - core index']
  #allocation1 [shape = 'u32[144,128]{1,0:T(1,128)}', space=vmem, size = 0x12000, scoped, tag = 'internal scratch']
  %s0 = inlined_call_operand.vmem [shape: f32[2,8,32], index: 0, kind: input, shape index: {}]
  %s1 = inlined_call_operand.vmem [shape: bf16[32,512], index: 1, kind: input, shape index: {}]
  %s2 = inlined_call_operand.vmem [shape: f32[2,8,512], index: 2, kind: output, shape index: {}]
  %s3 = sld [smem:[#allocation0]]
  $region41: #{transformer_wrapper_forward.9} parent=0
    _
  %s5 = ssub.s32 1, %s3
  %s6 = scalar_select 0, %s5, %s3
  loop: start=0, step=1, limit=4
  $region2: #{transformer_wrapper_forward.9} parent=0 // loop_pre_header
    _
  $region3: #{transformer_wrapper_forward.9} parent=0 // loop_header
    %s8 = sphi 0, %s12
    %p9 = scmp.ge.s32.totalorder %s8, 4
    %s15 = sphi 0, %s34
    %s16 = sphi 0, %s30
    %s17 = sphi 0, %s26
    %s18 = sphi 0, %s15
    %s19 = sphi 0, %s16
    %s20 = sphi 0, %s17
    %s21 = sphi 0, %s18
    %s22 = sphi 0, %s19
    %s23 = sphi 0, %s20
    %s39 = sphi 0, %s41
    %s42 = sphi 0, %s39
    %s43 = sphi 0, %s42
    %s59 = sphi 0, %s43
    %s65 = sphi 0, %s67
    %s68 = sphi 0, %s65
    %s69 = sphi 0, %s68
    %s85 = sphi 0, %s69
    %s95 = sphi 0, %s97
    %s98 = sphi 0, %s95
    %s99 = sphi 0, %s98
    %s115 = sphi 0, %s99
  $region4: #{transformer_wrapper_forward.9} parent=0 // loop_header_branch
    %11 = sbr.rel (%p9) target = $region8
  $region5: #{transformer_wrapper_forward.9} parent=0 // loop_body
    %s13 = ssub.s32 %s8, 1
    %s14 = ssub.s32 %s8, 2
    %s24 = sadd.s32 1, %s17
    %p25 = scmp.ge.s32.totalorder %s24, 1
    %s26 = scalar_select %p25, 0, %s24
    %s27 = sadd.s32 1, %s16
    %s28 = scalar_select %p25, %s27, %s16
    %p29 = scmp.ge.s32.totalorder %s28, 1
    %s30 = scalar_select %p29, 0, %s28
    %s31 = sadd.s32 1, %s15
    %s32 = scalar_select %p29, %s31, %s15
    %p33 = scmp.ge.s32.totalorder %s32, 2
    %s34 = scalar_select %p33, 0, %s32
    %s35 = ssub.s32 %s15, %s34
    %s36 = ssub.s32 %s16, %s30
    %s37 = sor.u32 %s35, %s36
    %p38 = scmp.eq.s32.totalorder %s37, 0
    %s40 = sadd.s32 %s39, 1
    %s41 = scalar_select %p38, %s39, %s40
    %p44 = pneg %p38
    %p45 = scmp.eq.s32.totalorder %s8, 1
    %p46 = por %p44, %p45
    %p47 = scmp.ne.s32.totalorder %s39, %s42
    %p48 = scmp.eq.s32.totalorder %s8, 0
    %p49 = por %p47, %p48
    %p50 = scmp.ne.s32.totalorder %s39, %s42
    %p51 = scmp.eq.s32.totalorder %s13, 1
    %p52 = por %p50, %p51
    %p53 = scmp.ne.s32.totalorder %s42, %s43
    %p54 = scmp.eq.s32.totalorder %s13, 0
    %p55 = por %p53, %p54
    %p56 = scmp.ne.s32.totalorder %s42, %s43
    %p57 = scmp.eq.s32.totalorder %s14, 1
    %p58 = por %p56, %p57
    %p60 = scmp.ne.s32.totalorder %s43, %s59
    %p61 = scmp.eq.s32.totalorder %s14, 0
    %p62 = por %p60, %p61
    %s63 = ssub.s32 %s17, %s26
    %p64 = scmp.eq.s32.totalorder %s63, 0
    %s66 = sadd.s32 %s65, 1
    %s67 = scalar_select %p64, %s65, %s66
    %p70 = pneg %p64
    %p71 = scmp.eq.s32.totalorder %s8, 1
    %p72 = por %p70, %p71
    %p73 = scmp.ne.s32.totalorder %s65, %s68
    %p74 = scmp.eq.s32.totalorder %s8, 0
    %p75 = por %p73, %p74
    %p76 = scmp.ne.s32.totalorder %s65, %s68
    %p77 = scmp.eq.s32.totalorder %s13, 1
    %p78 = por %p76, %p77
    %p79 = scmp.ne.s32.totalorder %s68, %s69
    %p80 = scmp.eq.s32.totalorder %s13, 0
    %p81 = por %p79, %p80
    %p82 = scmp.ne.s32.totalorder %s68, %s69
    %p83 = scmp.eq.s32.totalorder %s14, 1
    %p84 = por %p82, %p83
    %p86 = scmp.ne.s32.totalorder %s69, %s85
    %p87 = scmp.eq.s32.totalorder %s14, 0
    %p88 = por %p86, %p87
    %s89 = ssub.s32 %s15, %s34
    %s90 = ssub.s32 %s16, %s30
    %s91 = sor.u32 %s89, %s90
    %s92 = ssub.s32 %s17, %s26
    %s93 = sor.u32 %s91, %s92
    %p94 = scmp.eq.s32.totalorder %s93, 0
    %s96 = sadd.s32 %s95, 1
    %s97 = scalar_select %p94, %s95, %s96
    %p100 = pneg %p94
    %p101 = scmp.eq.s32.totalorder %s8, 1
    %p102 = por %p100, %p101
    %p103 = scmp.ne.s32.totalorder %s95, %s98
    %p104 = scmp.eq.s32.totalorder %s8, 0
    %p105 = por %p103, %p104
    %p106 = scmp.ne.s32.totalorder %s95, %s98
    %p107 = scmp.eq.s32.totalorder %s13, 1
    %p108 = por %p106, %p107
    %p109 = scmp.ne.s32.totalorder %s98, %s99
    %p110 = scmp.eq.s32.totalorder %s13, 0
    %p111 = por %p109, %p110
    %p112 = scmp.ne.s32.totalorder %s98, %s99
    %p113 = scmp.eq.s32.totalorder %s14, 1
    %p114 = por %p112, %p113
    %p116 = scmp.ne.s32.totalorder %s99, %s115
    %p117 = scmp.eq.s32.totalorder %s14, 0
    %p118 = por %p116, %p117
    %p119 = scmp.le.s32.totalorder 1, %s8
    %p120 = scmp.lt.s32.totalorder %s8, 3
    %p121 = pnand %p119, %p120
    %p122 = pneg %p121
    // Predicated region
    $region9: #{transformer_wrapper_forward.9} parent=5 // pred_check
      _
    $region10: #{transformer_wrapper_forward.9} parent=5 // pred_check_branch
      %124 = sbr.rel (%p121) target = $region12
    $region11: #{transformer_wrapper_forward.9} parent=5 // pred_region
      %s125 = ssub.s32 %s8, 1
      // Predicated region
      $region13: #{transformer_wrapper_forward.9} parent=11 // pred_check
        %p126 = pneg %p81
      $region14: #{transformer_wrapper_forward.9} parent=11 // pred_check_branch
        %128 = sbr.rel (%p126) target = $region16
      $region15: #{transformer_wrapper_forward.9} parent=11 // pred_region
        %s129 = smul.u32 4, %s20
        %p130 = scmp.lt.s32.totalorder %s129, 3
        %s131 = scalar_select %p130, %s129, 3
        %s132 = smul.addr %s131, 4
        %s133 = scalar_lea.vmem %s1, %s132
        %s134 = smul.u32 4, %s20
      $region16: #{transformer_wrapper_forward.9} parent=11 // pred_fallthru
        _
    $region12: #{transformer_wrapper_forward.9} parent=5 // pred_fallthru
      _
    %p135 = scmp.lt.s32.totalorder %s8, 2
    // Predicated region
    $region17: #{transformer_wrapper_forward.9} parent=5 // pred_check
      %p136 = pneg %p135
    $region18: #{transformer_wrapper_forward.9} parent=5 // pred_check_branch
      %138 = sbr.rel (%p136) target = $region20
    $region19: #{transformer_wrapper_forward.9} parent=5 // pred_region
      // Predicated region
      $region21: #{transformer_wrapper_forward.9} parent=19 // pred_check
        %p139 = pneg %p49
      $region22: #{transformer_wrapper_forward.9} parent=19 // pred_check_branch
        %141 = sbr.rel (%p139) target = $region24
      $region23: #{transformer_wrapper_forward.9} parent=19 // pred_region
        %p142 = scmp.lt.s32.totalorder %s15, 1
        %s143 = scalar_select %p142, %s15, 1
        %p144 = scmp.lt.s32.totalorder %s16, 0
        %s145 = scalar_select %p144, %s16, 0
        %s146 = sadd.s32 %s145, %s143
        %s147 = smul.addr %s146, 8
        %s148 = scalar_lea.vmem %s0, %s147
      $region24: #{transformer_wrapper_forward.9} parent=19 // pred_fallthru
        _
    $region20: #{transformer_wrapper_forward.9} parent=5 // pred_fallthru
      _
    %p149 = scmp.le.s32.totalorder 1, %s8
    %p150 = scmp.lt.s32.totalorder %s8, 3
    %p151 = pnand %p149, %p150
    %p152 = pneg %p151
    // Predicated region
    $region25: #{transformer_wrapper_forward.9} parent=5 // pred_check
      _
    $region26: #{transformer_wrapper_forward.9} parent=5 // pred_check_branch
      %154 = sbr.rel (%p151) target = $region28
    $region27: #{transformer_wrapper_forward.9} parent=5 // pred_region
      %s155 = ssub.s32 %s8, 1
      %p156 = scmp.lt.s32.totalorder %s18, 1
      %s157 = scalar_select %p156, %s18, 1
      %p158 = scmp.lt.s32.totalorder %s19, 0
      %s159 = scalar_select %p158, %s19, 0
      %s160 = sadd.s32 %s159, %s157
      %s161 = smul.addr %s160, 8
      %s162 = scalar_lea.vmem %s0, %s161
      %p163 = pneg %p55
      %p164 = pneg %p52
      %s165 = smul.u32 4, %s20
      %p166 = scmp.lt.s32.totalorder %s165, 3
      %s167 = scalar_select %p166, %s165, 3
      %s168 = smul.addr %s167, 4
      %s169 = scalar_lea.vmem %s1, %s168
      %p170 = pneg %p81
      %p171 = pneg %p78
      %p172 = pneg %p111
      %p173 = pneg %p108
      %s174 = smul.u32 4, %s20
      %p175 = scmp.lt.s32.totalorder %s18, 1
      %s176 = scalar_select %p175, %s18, 1
      %p177 = scmp.lt.s32.totalorder %s19, 0
      %s178 = scalar_select %p177, %s19, 0
      %p179 = scmp.lt.s32.totalorder %s174, 3
      %s180 = scalar_select %p179, %s174, 3
      %s181 = smul.addr %s178, 4
      %s182 = sadd.s32 %s180, %s181
      %s183 = smul.addr %s176, 4
      %s184 = sadd.s32 %s182, %s183
      %s185 = smul.addr %s184, 8
      %s186 = scalar_lea.vmem %s2, %s185
      %p187 = scmp.lt.s32.totalorder %s18, 1
      %s188 = scalar_select %p187, %s18, 1
      %p189 = scmp.lt.s32.totalorder %s19, 0
      %s190 = scalar_select %p189, %s19, 0
      %s191 = sadd.s32 %s190, %s188
      %s192 = smul.addr %s191, 8
      %s193 = scalar_lea.vmem %s0, %s192
      %s194 = smul.u32 4, %s20
      %p195 = scmp.lt.s32.totalorder %s194, 3
      %s196 = scalar_select %p195, %s194, 3
      %s197 = smul.addr %s196, 4
      %s198 = scalar_lea.vmem %s1, %s197
      %s199 = smul.u32 4, %s20
      %s200 = smul.u32 4, %s20
      %p201 = scmp.lt.s32.totalorder %s18, 1
      %s202 = scalar_select %p201, %s18, 1
      %p203 = scmp.lt.s32.totalorder %s19, 0
      %s204 = scalar_select %p203, %s19, 0
      %p205 = scmp.lt.s32.totalorder %s200, 3
      %s206 = scalar_select %p205, %s200, 3
      %s207 = smul.addr %s204, 4
      %s208 = sadd.s32 %s206, %s207
      %s209 = smul.addr %s202, 4
      %s210 = sadd.s32 %s208, %s209
      %s211 = smul.addr %s210, 8
      %s212 = scalar_lea.vmem %s2, %s211
      %s213 = smul.u32 4, %s20
      %v215 = vld [vmem:[%s193] sm:$0xff]
      %v216 = vpack.c.bf16 %v215, %v215
      %v217 = vld [vmem:[%s198] sm:$0xff]
      %v218 = vld [vmem:[%s198 + $0x8] sm:$0xff]
      %v219 = vld [vmem:[%s198 + $0x10] sm:$0xff]
      %v220 = vld [vmem:[%s198 + $0x18] sm:$0xff]
      %v221 = vld [vmem:[%s198 + $0x20] sm:$0xff]
      %v222 = vld [vmem:[%s198 + $0x28] sm:$0xff]
      %v223 = vld [vmem:[%s198 + $0x30] sm:$0xff]
      %v224 = vld [vmem:[%s198 + $0x38] sm:$0xff]
      %v233 = vunpack.c.l.b16 %v217
      %v234 = vunpack.c.h.b16 %v217
      %v235 = vunpack.c.l.b16 %v218
      %v236 = vunpack.c.h.b16 %v218
      %v237 = vunpack.c.l.b16 %v219
      %v238 = vunpack.c.h.b16 %v219
      %v239 = vunpack.c.l.b16 %v220
      %v240 = vunpack.c.h.b16 %v220
      %v241 = vunpack.c.l.b16 %v221
      %v242 = vunpack.c.h.b16 %v221
      %v243 = vunpack.c.l.b16 %v222
      %v244 = vunpack.c.h.b16 %v222
      %v245 = vunpack.c.l.b16 %v223
      %v246 = vunpack.c.h.b16 %v223
      %v247 = vunpack.c.l.b16 %v224
      %v248 = vunpack.c.h.b16 %v224
      %v249 = vpack.c.b16 %v237, %v233
      %v250 = vpack.c.b16 %v238, %v234
      %v251 = vpack.c.b16 %v239, %v235
      %v252 = vpack.c.b16 %v240, %v236
      %v253 = vpack.c.b16 %v245, %v241
      %v254 = vpack.c.b16 %v246, %v242
      %v255 = vpack.c.b16 %v247, %v243
      %v256 = vpack.c.b16 %v248, %v244
      %vm265 = vcmask 261120
      %v267 = vsel %vm265, %v216, 0
      %269 = vmatprep.subr.bf16.mxu0 %v250
      %270 = vmatpush1.bf16.msra.mxu0 %v249
      %271 = vmatprep.subr.bf16.mxu0 %v254
      %272 = vmatpush1.bf16.msra.mxu0 %v253
      %273 = vmatprep.subr.bf16.mxu0 0
      %274 = vmatpush1.bf16.msra.mxu0 0
      %275 = vmatprep.subr.bf16.mxu0 0
      %276 = vmatpush1.bf16.msra.mxu0 0
      %277 = vmatprep.subr.bf16.mxu0 0
      %278 = vmatpush1.bf16.msra.mxu0 0
      %279 = vmatprep.subr.bf16.mxu0 0
      %280 = vmatpush1.bf16.msra.mxu0 0
      %281 = vmatprep.subr.bf16.mxu0 0
      %282 = vmatpush1.bf16.msra.mxu0 0
      %283 = vmatprep.subr.bf16.mxu0 0
      %284 = vmatpush1.bf16.msra.mxu0 0
      %285 = vmatprep.subr.bf16.mxu0 0
      %286 = vmatpush1.bf16.msra.mxu0 0
      %287 = vmatprep.subr.bf16.mxu0 0
      %288 = vmatpush1.bf16.msra.mxu0 0
      %289 = vmatprep.subr.bf16.mxu0 0
      %290 = vmatpush1.bf16.msra.mxu0 0
      %291 = vmatprep.subr.bf16.mxu0 0
      %292 = vmatpush1.bf16.msra.mxu0 0
      %293 = vmatprep.subr.bf16.mxu0 0
      %294 = vmatpush1.bf16.msra.mxu0 0
      %295 = vmatprep.subr.bf16.mxu0 0
      %296 = vmatpush1.bf16.msra.mxu0 0
      %297 = vmatprep.subr.bf16.mxu0 0
      %298 = vmatpush1.bf16.msra.mxu0 0
      %299 = vmatprep.subr.bf16.mxu0 0
      %300 = vmatpush1.bf16.msra.mxu0 0
      %301 = vmatprep.mubr.bf16.mxu0 0
      %302 = vmatmul.mubr.bf16.gmra.mrb[0].mxu0 %v267
      %v303 = vpop.f32.mrb[0].mxu0
      %v304 = vadd.f32 0.0, %v303
      %v305 = vpop.f32.mrb[0].mxu0
      %v306 = vadd.f32 0.0, %v305
      %v307 = vpop.f32.mrb[0].mxu0
      %v308 = vpop.f32.mrb[0].mxu0
      %309 = vdwg.mxu0
      %310 = vmatprep.subr.bf16.mxu0 %v252
      %311 = vmatpush1.bf16.msra.mxu0 %v251
      %312 = vmatprep.subr.bf16.mxu0 %v256
      %313 = vmatpush1.bf16.msra.mxu0 %v255
      %314 = vmatprep.subr.bf16.mxu0 0
      %315 = vmatpush1.bf16.msra.mxu0 0
      %316 = vmatprep.subr.bf16.mxu0 0
      %317 = vmatpush1.bf16.msra.mxu0 0
      %318 = vmatprep.subr.bf16.mxu0 0
      %319 = vmatpush1.bf16.msra.mxu0 0
      %320 = vmatprep.subr.bf16.mxu0 0
      %321 = vmatpush1.bf16.msra.mxu0 0
      %322 = vmatprep.subr.bf16.mxu0 0
      %323 = vmatpush1.bf16.msra.mxu0 0
      %324 = vmatprep.subr.bf16.mxu0 0
      %325 = vmatpush1.bf16.msra.mxu0 0
      %326 = vmatprep.subr.bf16.mxu0 0
      %327 = vmatpush1.bf16.msra.mxu0 0
      %328 = vmatprep.subr.bf16.mxu0 0
      %329 = vmatpush1.bf16.msra.mxu0 0
      %330 = vmatprep.subr.bf16.mxu0 0
      %331 = vmatpush1.bf16.msra.mxu0 0
      %332 = vmatprep.subr.bf16.mxu0 0
      %333 = vmatpush1.bf16.msra.mxu0 0
      %334 = vmatprep.subr.bf16.mxu0 0
      %335 = vmatpush1.bf16.msra.mxu0 0
      %336 = vmatprep.subr.bf16.mxu0 0
      %337 = vmatpush1.bf16.msra.mxu0 0
      %338 = vmatprep.subr.bf16.mxu0 0
      %339 = vmatpush1.bf16.msra.mxu0 0
      %340 = vmatprep.subr.bf16.mxu0 0
      %341 = vmatpush1.bf16.msra.mxu0 0
      %342 = vmatprep.mubr.bf16.mxu0 0
      %343 = vmatmul.mubr.bf16.gmra.mrb[0].mxu0 %v267
      %v344 = vpop.f32.mrb[0].mxu0
      %v345 = vadd.f32 0.0, %v344
      %v346 = vpop.f32.mrb[0].mxu0
      %v347 = vadd.f32 0.0, %v346
      %v348 = vpop.f32.mrb[0].mxu0
      %v349 = vpop.f32.mrb[0].mxu0
      %350 = vdwg.mxu0
      %351 = vst [vmem:[%s212] sm:$0xff] %v304
      %352 = vst [vmem:[%s212 + $0x8] sm:$0xff] %v306
      %353 = vst [vmem:[%s212 + $0x10] sm:$0xff] %v345
      %354 = vst [vmem:[%s212 + $0x18] sm:$0xff] %v347
      %s355 = smul.u32 4, %s20
      %p356 = scmp.lt.s32.totalorder %s18, 1
      %s357 = scalar_select %p356, %s18, 1
      %p358 = scmp.lt.s32.totalorder %s19, 0
      %s359 = scalar_select %p358, %s19, 0
      %p360 = scmp.lt.s32.totalorder %s355, 3
      %s361 = scalar_select %p360, %s355, 3
      %s362 = smul.addr %s359, 4
      %s363 = sadd.s32 %s361, %s362
      %s364 = smul.addr %s357, 4
      %s365 = sadd.s32 %s363, %s364
      %s366 = smul.addr %s365, 8
      %s367 = scalar_lea.vmem %s2, %s366
      // Predicated region
      $region29: #{transformer_wrapper_forward.9} parent=27 // pred_check
        %p368 = pneg %p108
      $region30: #{transformer_wrapper_forward.9} parent=27 // pred_check_branch
        %370 = sbr.rel (%p368) target = $region32
      $region31: #{transformer_wrapper_forward.9} parent=27 // pred_region
        %s371 = smul.u32 4, %s20
      $region32: #{transformer_wrapper_forward.9} parent=27 // pred_fallthru
        _
    $region28: #{transformer_wrapper_forward.9} parent=5 // pred_fallthru
      _
    %p372 = scmp.le.s32.totalorder 2, %s8
    // Predicated region
    $region33: #{transformer_wrapper_forward.9} parent=5 // pred_check
      %p373 = pneg %p372
    $region34: #{transformer_wrapper_forward.9} parent=5 // pred_check_branch
      %375 = sbr.rel (%p373) target = $region36
    $region35: #{transformer_wrapper_forward.9} parent=5 // pred_region
      %s376 = ssub.s32 %s8, 2
      // Predicated region
      $region37: #{transformer_wrapper_forward.9} parent=35 // pred_check
        %p377 = pneg %p114
      $region38: #{transformer_wrapper_forward.9} parent=35 // pred_check_branch
        %379 = sbr.rel (%p377) target = $region40
      $region39: #{transformer_wrapper_forward.9} parent=35 // pred_region
        %s380 = smul.u32 4, %s23
        %p381 = scmp.lt.s32.totalorder %s21, 1
        %s382 = scalar_select %p381, %s21, 1
        %p383 = scmp.lt.s32.totalorder %s22, 0
        %s384 = scalar_select %p383, %s22, 0
        %p385 = scmp.lt.s32.totalorder %s380, 3
        %s386 = scalar_select %p385, %s380, 3
        %s387 = smul.addr %s384, 4
        %s388 = sadd.s32 %s386, %s387
        %s389 = smul.addr %s382, 4
        %s390 = sadd.s32 %s388, %s389
        %s391 = smul.addr %s390, 8
        %s392 = scalar_lea.vmem %s2, %s391
      $region40: #{transformer_wrapper_forward.9} parent=35 // pred_fallthru
        _
    $region36: #{transformer_wrapper_forward.9} parent=5 // pred_fallthru
      _
  $region6: #{transformer_wrapper_forward.9} parent=0 // loop_footer
    %s12 = sadd.s32 1, %s8
  $region7: #{transformer_wrapper_forward.9} parent=0 // loop_footer_branch
    %7 = sbr.rel target = $region3
  $region8: #{transformer_wrapper_forward.9} parent=0 // loop_exit
    _

// kernel: transformer_wrapper_forward.6
$region0: #{transformer_wrapper_forward.6}
  #allocation0 [shape = 'u32[]', space=smem, size = 0x4, offset = 0x4, fixed_abs, tag = 'smem constant byte address 0x4 - core index']
  #allocation1 [shape = 'u32[144,128]{1,0:T(1,128)}', space=vmem, size = 0x12000, scoped, tag = 'internal scratch']
  #allocation2 [shape = 'bf16[4,8,8]{2,1,0:T(8,128)(2,1)}', space=vmem, size = 0x2000, scoped, tag = 'scratch operand']
  #allocation3 [shape = 'f32[4,8,1]{2,1,0:T(8,128)}', space=vmem, size = 0x4000, scoped, tag = 'scratch operand']
  #allocation4 [shape = 'f32[4,8,1]{2,1,0:T(8,128)}', space=vmem, size = 0x4000, scoped, tag = 'scratch operand']
  #allocation5 [shape = 'f32[4,8,8]{2,1,0:T(8,128)}', space=vmem, size = 0x4000, scoped, tag = 'scratch operand']
  #allocation6 [shape = 'bf16[8,32]{1,0:T(8,128)(2,1)}', space=vmem, size = 0x800, scoped, tag = 'scratch operand']
  %s0 = inlined_call_operand.vmem [shape: f32[2,8,32], index: 0, kind: input, shape index: {}]
  %s1 = inlined_call_operand.vmem [shape: bf16[32,32], index: 1, kind: input, shape index: {}]
  %s2 = inlined_call_operand.vmem [shape: bf16[2,4,8,8], index: 2, kind: input, shape index: {}]
  %s3 = inlined_call_operand.vmem [shape: bf16[2,4,8,8], index: 3, kind: input, shape index: {}]
  %s4 = inlined_call_operand.vmem [shape: bf16[32,32], index: 4, kind: input, shape index: {}]
  %s5 = inlined_call_operand.vmem [shape: bf16[32,64], index: 5, kind: input, shape index: {}]
  %s6 = inlined_call_operand.vmem [shape: f32[1,64], index: 6, kind: input, shape index: {}]
  %s7 = inlined_call_operand.vmem [shape: bf16[64,32], index: 7, kind: input, shape index: {}]
  %s8 = inlined_call_operand.vmem [shape: f32[1,32], index: 8, kind: input, shape index: {}]
  %s9 = inlined_call_operand.vmem [shape: f32[1,32], index: 9, kind: input, shape index: {}]
  %s10 = inlined_call_operand.vmem [shape: f32[1,32], index: 10, kind: input, shape index: {}]
  %s11 = inlined_call_operand.vmem [shape: f32[1,32], index: 11, kind: input, shape index: {}]
  %s12 = inlined_call_operand.vmem [shape: f32[1,32], index: 12, kind: input, shape index: {}]
  %s13 = inlined_call_operand.vmem [shape: f32[2,8,32], index: 13, kind: output, shape index: {}]
  %s14 = sld [smem:[#allocation0]]
  $region97: #{transformer_wrapper_forward.6} parent=0
    _
  %s16 = ssub.s32 1, %s14
  %s17 = scalar_select 0, %s16, %s14
  loop: start=0, step=1, limit=4
  $region2: #{transformer_wrapper_forward.6} parent=0 // loop_pre_header
    _
  $region3: #{transformer_wrapper_forward.6} parent=0 // loop_header
    %s19 = sphi 0, %s23
    %p20 = scmp.ge.s32.totalorder %s19, 4
    %s26 = sphi 0, %s45
    %s27 = sphi 0, %s41
    %s28 = sphi 0, %s37
    %s29 = sphi 0, %s26
    %s30 = sphi 0, %s27
    %s31 = sphi 0, %s28
    %s32 = sphi 0, %s29
    %s33 = sphi 0, %s30
    %s34 = sphi 0, %s31
    %s50 = sphi 0, %s52
    %s53 = sphi 0, %s50
    %s54 = sphi 0, %s53
    %s70 = sphi 0, %s54
    %s74 = sphi 0, %s74
    %s76 = sphi 0, %s74
    %s77 = sphi 0, %s76
    %s91 = sphi 0, %s77
    %s99 = sphi 0, %s101
    %s102 = sphi 0, %s99
    %s103 = sphi 0, %s102
    %s119 = sphi 0, %s103
    %s127 = sphi 0, %s129
    %s130 = sphi 0, %s127
    %s131 = sphi 0, %s130
    %s147 = sphi 0, %s131
    %s151 = sphi 0, %s151
    %s153 = sphi 0, %s151
    %s154 = sphi 0, %s153
    %s168 = sphi 0, %s154
    %s172 = sphi 0, %s172
    %s174 = sphi 0, %s172
    %s175 = sphi 0, %s174
    %s189 = sphi 0, %s175
    %s193 = sphi 0, %s193
    %s195 = sphi 0, %s193
    %s196 = sphi 0, %s195
    %s210 = sphi 0, %s196
    %s214 = sphi 0, %s214
    %s216 = sphi 0, %s214
    %s217 = sphi 0, %s216
    %s231 = sphi 0, %s217
    %s235 = sphi 0, %s235
    %s237 = sphi 0, %s235
    %s238 = sphi 0, %s237
    %s252 = sphi 0, %s238
    %s256 = sphi 0, %s256
    %s258 = sphi 0, %s256
    %s259 = sphi 0, %s258
    %s273 = sphi 0, %s259
    %s277 = sphi 0, %s277
    %s279 = sphi 0, %s277
    %s280 = sphi 0, %s279
    %s294 = sphi 0, %s280
    %s298 = sphi 0, %s298
    %s300 = sphi 0, %s298
    %s301 = sphi 0, %s300
    %s315 = sphi 0, %s301
    %s319 = sphi 0, %s319
    %s321 = sphi 0, %s319
    %s322 = sphi 0, %s321
    %s336 = sphi 0, %s322
    %s344 = sphi 0, %s346
    %s347 = sphi 0, %s344
    %s348 = sphi 0, %s347
    %s364 = sphi 0, %s348
  $region4: #{transformer_wrapper_forward.6} parent=0 // loop_header_branch
    %22 = sbr.rel (%p20) target = $region8
  $region5: #{transformer_wrapper_forward.6} parent=0 // loop_body
    %s24 = ssub.s32 %s19, 1
    %s25 = ssub.s32 %s19, 2
    %s35 = sadd.s32 1, %s28
    %p36 = scmp.ge.s32.totalorder %s35, 1
    %s37 = scalar_select %p36, 0, %s35
    %s38 = sadd.s32 1, %s27
    %s39 = scalar_select %p36, %s38, %s27
    %p40 = scmp.ge.s32.totalorder %s39, 1
    %s41 = scalar_select %p40, 0, %s39
    %s42 = sadd.s32 1, %s26
    %s43 = scalar_select %p40, %s42, %s26
    %p44 = scmp.ge.s32.totalorder %s43, 2
    %s45 = scalar_select %p44, 0, %s43
    %s46 = ssub.s32 %s26, %s45
    %s47 = ssub.s32 %s27, %s41
    %s48 = sor.u32 %s46, %s47
    %p49 = scmp.eq.s32.totalorder %s48, 0
    %s51 = sadd.s32 %s50, 1
    %s52 = scalar_select %p49, %s50, %s51
    %p55 = pneg %p49
    %p56 = scmp.eq.s32.totalorder %s19, 1
    %p57 = por %p55, %p56
    %p58 = scmp.ne.s32.totalorder %s50, %s53
    %p59 = scmp.eq.s32.totalorder %s19, 0
    %p60 = por %p58, %p59
    %p61 = scmp.ne.s32.totalorder %s50, %s53
    %p62 = scmp.eq.s32.totalorder %s24, 1
    %p63 = por %p61, %p62
    %p64 = scmp.ne.s32.totalorder %s53, %s54
    %p65 = scmp.eq.s32.totalorder %s24, 0
    %p66 = por %p64, %p65
    %p67 = scmp.ne.s32.totalorder %s53, %s54
    %p68 = scmp.eq.s32.totalorder %s25, 1
    %p69 = por %p67, %p68
    %p71 = scmp.ne.s32.totalorder %s54, %s70
    %p72 = scmp.eq.s32.totalorder %s25, 0
    %p73 = por %p71, %p72
    %s75 = sadd.s32 %s74, 1
    %p78 = scmp.eq.s32.totalorder %s19, 1
    %p79 = scmp.ne.s32.totalorder %s74, %s76
    %p80 = scmp.eq.s32.totalorder %s19, 0
    %p81 = por %p79, %p80
    %p82 = scmp.ne.s32.totalorder %s74, %s76
    %p83 = scmp.eq.s32.totalorder %s24, 1
    %p84 = por %p82, %p83
    %p85 = scmp.ne.s32.totalorder %s76, %s77
    %p86 = scmp.eq.s32.totalorder %s24, 0
    %p87 = por %p85, %p86
    %p88 = scmp.ne.s32.totalorder %s76, %s77
    %p89 = scmp.eq.s32.totalorder %s25, 1
    %p90 = por %p88, %p89
    %p92 = scmp.ne.s32.totalorder %s77, %s91
    %p93 = scmp.eq.s32.totalorder %s25, 0
    %p94 = por %p92, %p93
    %s95 = ssub.s32 %s26, %s45
    %s96 = ssub.s32 %s28, %s37
    %s97 = sor.u32 %s95, %s96
    %p98 = scmp.eq.s32.totalorder %s97, 0
    %s100 = sadd.s32 %s99, 1
    %s101 = scalar_select %p98, %s99, %s100
    %p104 = pneg %p98
    %p105 = scmp.eq.s32.totalorder %s19, 1
    %p106 = por %p104, %p105
    %p107 = scmp.ne.s32.totalorder %s99, %s102
    %p108 = scmp.eq.s32.totalorder %s19, 0
    %p109 = por %p107, %p108
    %p110 = scmp.ne.s32.totalorder %s99, %s102
    %p111 = scmp.eq.s32.totalorder %s24, 1
    %p112 = por %p110, %p111
    %p113 = scmp.ne.s32.totalorder %s102, %s103
    %p114 = scmp.eq.s32.totalorder %s24, 0
    %p115 = por %p113, %p114
    %p116 = scmp.ne.s32.totalorder %s102, %s103
    %p117 = scmp.eq.s32.totalorder %s25, 1
    %p118 = por %p116, %p117
    %p120 = scmp.ne.s32.totalorder %s103, %s119
    %p121 = scmp.eq.s32.totalorder %s25, 0
    %p122 = por %p120, %p121
    %s123 = ssub.s32 %s26, %s45
    %s124 = ssub.s32 %s28, %s37
    %s125 = sor.u32 %s123, %s124
    %p126 = scmp.eq.s32.totalorder %s125, 0
    %s128 = sadd.s32 %s127, 1
    %s129 = scalar_select %p126, %s127, %s128
    %p132 = pneg %p126
    %p133 = scmp.eq.s32.totalorder %s19, 1
    %p134 = por %p132, %p133
    %p135 = scmp.ne.s32.totalorder %s127, %s130
    %p136 = scmp.eq.s32.totalorder %s19, 0
    %p137 = por %p135, %p136
    %p138 = scmp.ne.s32.totalorder %s127, %s130
    %p139 = scmp.eq.s32.totalorder %s24, 1
    %p140 = por %p138, %p139
    %p141 = scmp.ne.s32.totalorder %s130, %s131
    %p142 = scmp.eq.s32.totalorder %s24, 0
    %p143 = por %p141, %p142
    %p144 = scmp.ne.s32.totalorder %s130, %s131
    %p145 = scmp.eq.s32.totalorder %s25, 1
    %p146 = por %p144, %p145
    %p148 = scmp.ne.s32.totalorder %s131, %s147
    %p149 = scmp.eq.s32.totalorder %s25, 0
    %p150 = por %p148, %p149
    %s152 = sadd.s32 %s151, 1
    %p155 = scmp.eq.s32.totalorder %s19, 1
    %p156 = scmp.ne.s32.totalorder %s151, %s153
    %p157 = scmp.eq.s32.totalorder %s19, 0
    %p158 = por %p156, %p157
    %p159 = scmp.ne.s32.totalorder %s151, %s153
    %p160 = scmp.eq.s32.totalorder %s24, 1
    %p161 = por %p159, %p160
    %p162 = scmp.ne.s32.totalorder %s153, %s154
    %p163 = scmp.eq.s32.totalorder %s24, 0
    %p164 = por %p162, %p163
    %p165 = scmp.ne.s32.totalorder %s153, %s154
    %p166 = scmp.eq.s32.totalorder %s25, 1
    %p167 = por %p165, %p166
    %p169 = scmp.ne.s32.totalorder %s154, %s168
    %p170 = scmp.eq.s32.totalorder %s25, 0
    %p171 = por %p169, %p170
    %s173 = sadd.s32 %s172, 1
    %p176 = scmp.eq.s32.totalorder %s19, 1
    %p177 = scmp.ne.s32.totalorder %s172, %s174
    %p178 = scmp.eq.s32.totalorder %s19, 0
    %p179 = por %p177, %p178
    %p180 = scmp.ne.s32.totalorder %s172, %s174
    %p181 = scmp.eq.s32.totalorder %s24, 1
    %p182 = por %p180, %p181
    %p183 = scmp.ne.s32.totalorder %s174, %s175
    %p184 = scmp.eq.s32.totalorder %s24, 0
    %p185 = por %p183, %p184
    %p186 = scmp.ne.s32.totalorder %s174, %s175
    %p187 = scmp.eq.s32.totalorder %s25, 1
    %p188 = por %p186, %p187
    %p190 = scmp.ne.s32.totalorder %s175, %s189
    %p191 = scmp.eq.s32.totalorder %s25, 0
    %p192 = por %p190, %p191
    %s194 = sadd.s32 %s193, 1
    %p197 = scmp.eq.s32.totalorder %s19, 1
    %p198 = scmp.ne.s32.totalorder %s193, %s195
    %p199 = scmp.eq.s32.totalorder %s19, 0
    %p200 = por %p198, %p199
    %p201 = scmp.ne.s32.totalorder %s193, %s195
    %p202 = scmp.eq.s32.totalorder %s24, 1
    %p203 = por %p201, %p202
    %p204 = scmp.ne.s32.totalorder %s195, %s196
    %p205 = scmp.eq.s32.totalorder %s24, 0
    %p206 = por %p204, %p205
    %p207 = scmp.ne.s32.totalorder %s195, %s196
    %p208 = scmp.eq.s32.totalorder %s25, 1
    %p209 = por %p207, %p208
    %p211 = scmp.ne.s32.totalorder %s196, %s210
    %p212 = scmp.eq.s32.totalorder %s25, 0
    %p213 = por %p211, %p212
    %s215 = sadd.s32 %s214, 1
    %p218 = scmp.eq.s32.totalorder %s19, 1
    %p219 = scmp.ne.s32.totalorder %s214, %s216
    %p220 = scmp.eq.s32.totalorder %s19, 0
    %p221 = por %p219, %p220
    %p222 = scmp.ne.s32.totalorder %s214, %s216
    %p223 = scmp.eq.s32.totalorder %s24, 1
    %p224 = por %p222, %p223
    %p225 = scmp.ne.s32.totalorder %s216, %s217
    %p226 = scmp.eq.s32.totalorder %s24, 0
    %p227 = por %p225, %p226
    %p228 = scmp.ne.s32.totalorder %s216, %s217
    %p229 = scmp.eq.s32.totalorder %s25, 1
    %p230 = por %p228, %p229
    %p232 = scmp.ne.s32.totalorder %s217, %s231
    %p233 = scmp.eq.s32.totalorder %s25, 0
    %p234 = por %p232, %p233
    %s236 = sadd.s32 %s235, 1
    %p239 = scmp.eq.s32.totalorder %s19, 1
    %p240 = scmp.ne.s32.totalorder %s235, %s237
    %p241 = scmp.eq.s32.totalorder %s19, 0
    %p242 = por %p240, %p241
    %p243 = scmp.ne.s32.totalorder %s235, %s237
    %p244 = scmp.eq.s32.totalorder %s24, 1
    %p245 = por %p243, %p244
    %p246 = scmp.ne.s32.totalorder %s237, %s238
    %p247 = scmp.eq.s32.totalorder %s24, 0
    %p248 = por %p246, %p247
    %p249 = scmp.ne.s32.totalorder %s237, %s238
    %p250 = scmp.eq.s32.totalorder %s25, 1
    %p251 = por %p249, %p250
    %p253 = scmp.ne.s32.totalorder %s238, %s252
    %p254 = scmp.eq.s32.totalorder %s25, 0
    %p255 = por %p253, %p254
    %s257 = sadd.s32 %s256, 1
    %p260 = scmp.eq.s32.totalorder %s19, 1
    %p261 = scmp.ne.s32.totalorder %s256, %s258
    %p262 = scmp.eq.s32.totalorder %s19, 0
    %p263 = por %p261, %p262
    %p264 = scmp.ne.s32.totalorder %s256, %s258
    %p265 = scmp.eq.s32.totalorder %s24, 1
    %p266 = por %p264, %p265
    %p267 = scmp.ne.s32.totalorder %s258, %s259
    %p268 = scmp.eq.s32.totalorder %s24, 0
    %p269 = por %p267, %p268
    %p270 = scmp.ne.s32.totalorder %s258, %s259
    %p271 = scmp.eq.s32.totalorder %s25, 1
    %p272 = por %p270, %p271
    %p274 = scmp.ne.s32.totalorder %s259, %s273
    %p275 = scmp.eq.s32.totalorder %s25, 0
    %p276 = por %p274, %p275
    %s278 = sadd.s32 %s277, 1
    %p281 = scmp.eq.s32.totalorder %s19, 1
    %p282 = scmp.ne.s32.totalorder %s277, %s279
    %p283 = scmp.eq.s32.totalorder %s19, 0
    %p284 = por %p282, %p283
    %p285 = scmp.ne.s32.totalorder %s277, %s279
    %p286 = scmp.eq.s32.totalorder %s24, 1
    %p287 = por %p285, %p286
    %p288 = scmp.ne.s32.totalorder %s279, %s280
    %p289 = scmp.eq.s32.totalorder %s24, 0
    %p290 = por %p288, %p289
    %p291 = scmp.ne.s32.totalorder %s279, %s280
    %p292 = scmp.eq.s32.totalorder %s25, 1
    %p293 = por %p291, %p292
    %p295 = scmp.ne.s32.totalorder %s280, %s294
    %p296 = scmp.eq.s32.totalorder %s25, 0
    %p297 = por %p295, %p296
    %s299 = sadd.s32 %s298, 1
    %p302 = scmp.eq.s32.totalorder %s19, 1
    %p303 = scmp.ne.s32.totalorder %s298, %s300
    %p304 = scmp.eq.s32.totalorder %s19, 0
    %p305 = por %p303, %p304
    %p306 = scmp.ne.s32.totalorder %s298, %s300
    %p307 = scmp.eq.s32.totalorder %s24, 1
    %p308 = por %p306, %p307
    %p309 = scmp.ne.s32.totalorder %s300, %s301
    %p310 = scmp.eq.s32.totalorder %s24, 0
    %p311 = por %p309, %p310
    %p312 = scmp.ne.s32.totalorder %s300, %s301
    %p313 = scmp.eq.s32.totalorder %s25, 1
    %p314 = por %p312, %p313
    %p316 = scmp.ne.s32.totalorder %s301, %s315
    %p317 = scmp.eq.s32.totalorder %s25, 0
    %p318 = por %p316, %p317
    %s320 = sadd.s32 %s319, 1
    %p323 = scmp.eq.s32.totalorder %s19, 1
    %p324 = scmp.ne.s32.totalorder %s319, %s321
    %p325 = scmp.eq.s32.totalorder %s19, 0
    %p326 = por %p324, %p325
    %p327 = scmp.ne.s32.totalorder %s319, %s321
    %p328 = scmp.eq.s32.totalorder %s24, 1
    %p329 = por %p327, %p328
    %p330 = scmp.ne.s32.totalorder %s321, %s322
    %p331 = scmp.eq.s32.totalorder %s24, 0
    %p332 = por %p330, %p331
    %p333 = scmp.ne.s32.totalorder %s321, %s322
    %p334 = scmp.eq.s32.totalorder %s25, 1
    %p335 = por %p333, %p334
    %p337 = scmp.ne.s32.totalorder %s322, %s336
    %p338 = scmp.eq.s32.totalorder %s25, 0
    %p339 = por %p337, %p338
    %s340 = ssub.s32 %s26, %s45
    %s341 = ssub.s32 %s27, %s41
    %s342 = sor.u32 %s340, %s341
    %p343 = scmp.eq.s32.totalorder %s342, 0
    %s345 = sadd.s32 %s344, 1
    %s346 = scalar_select %p343, %s344, %s345
    %p349 = pneg %p343
    %p350 = scmp.eq.s32.totalorder %s19, 1
    %p351 = por %p349, %p350
    %p352 = scmp.ne.s32.totalorder %s344, %s347
    %p353 = scmp.eq.s32.totalorder %s19, 0
    %p354 = por %p352, %p353
    %p355 = scmp.ne.s32.totalorder %s344, %s347
    %p356 = scmp.eq.s32.totalorder %s24, 1
    %p357 = por %p355, %p356
    %p358 = scmp.ne.s32.totalorder %s347, %s348
    %p359 = scmp.eq.s32.totalorder %s24, 0
    %p360 = por %p358, %p359
    %p361 = scmp.ne.s32.totalorder %s347, %s348
    %p362 = scmp.eq.s32.totalorder %s25, 1
    %p363 = por %p361, %p362
    %p365 = scmp.ne.s32.totalorder %s348, %s364
    %p366 = scmp.eq.s32.totalorder %s25, 0
    %p367 = por %p365, %p366
    %p368 = scmp.le.s32.totalorder 1, %s19
    %p369 = scmp.lt.s32.totalorder %s19, 3
    %p370 = pnand %p368, %p369
    %p371 = pneg %p370
    // Predicated region
    $region9: #{transformer_wrapper_forward.6} parent=5 // pred_check
      _
    $region10: #{transformer_wrapper_forward.6} parent=5 // pred_check_branch
      %373 = sbr.rel (%p370) target = $region12
    $region11: #{transformer_wrapper_forward.6} parent=5 // pred_region
      %s374 = ssub.s32 %s19, 1
      // Predicated region
      $region13: #{transformer_wrapper_forward.6} parent=11 // pred_check
        %p375 = pneg %p87
      $region14: #{transformer_wrapper_forward.6} parent=11 // pred_check_branch
        %377 = sbr.rel (%p375) target = $region16
      $region15: #{transformer_wrapper_forward.6} parent=11 // pred_region
        _
      $region16: #{transformer_wrapper_forward.6} parent=11 // pred_fallthru
        _
      // Predicated region
      $region17: #{transformer_wrapper_forward.6} parent=11 // pred_check
        %p378 = pneg %p164
      $region18: #{transformer_wrapper_forward.6} parent=11 // pred_check_branch
        %380 = sbr.rel (%p378) target = $region20
      $region19: #{transformer_wrapper_forward.6} parent=11 // pred_region
        _
      $region20: #{transformer_wrapper_forward.6} parent=11 // pred_fallthru
        _
      // Predicated region
      $region21: #{transformer_wrapper_forward.6} parent=11 // pred_check
        %p381 = pneg %p185
      $region22: #{transformer_wrapper_forward.6} parent=11 // pred_check_branch
        %383 = sbr.rel (%p381) target = $region24
      $region23: #{transformer_wrapper_forward.6} parent=11 // pred_region
        _
      $region24: #{transformer_wrapper_forward.6} parent=11 // pred_fallthru
        _
      // Predicated region
      $region25: #{transformer_wrapper_forward.6} parent=11 // pred_check
        %p384 = pneg %p206
      $region26: #{transformer_wrapper_forward.6} parent=11 // pred_check_branch
        %386 = sbr.rel (%p384) target = $region28
      $region27: #{transformer_wrapper_forward.6} parent=11 // pred_region
        _
      $region28: #{transformer_wrapper_forward.6} parent=11 // pred_fallthru
        _
      // Predicated region
      $region29: #{transformer_wrapper_forward.6} parent=11 // pred_check
        %p387 = pneg %p227
      $region30: #{transformer_wrapper_forward.6} parent=11 // pred_check_branch
        %389 = sbr.rel (%p387) target = $region32
      $region31: #{transformer_wrapper_forward.6} parent=11 // pred_region
        _
      $region32: #{transformer_wrapper_forward.6} parent=11 // pred_fallthru
        _
      // Predicated region
      $region33: #{transformer_wrapper_forward.6} parent=11 // pred_check
        %p390 = pneg %p248
      $region34: #{transformer_wrapper_forward.6} parent=11 // pred_check_branch
        %392 = sbr.rel (%p390) target = $region36
      $region35: #{transformer_wrapper_forward.6} parent=11 // pred_region
        _
      $region36: #{transformer_wrapper_forward.6} parent=11 // pred_fallthru
        _
      // Predicated region
      $region37: #{transformer_wrapper_forward.6} parent=11 // pred_check
        %p393 = pneg %p269
      $region38: #{transformer_wrapper_forward.6} parent=11 // pred_check_branch
        %395 = sbr.rel (%p393) target = $region40
      $region39: #{transformer_wrapper_forward.6} parent=11 // pred_region
        _
      $region40: #{transformer_wrapper_forward.6} parent=11 // pred_fallthru
        _
      // Predicated region
      $region41: #{transformer_wrapper_forward.6} parent=11 // pred_check
        %p396 = pneg %p290
      $region42: #{transformer_wrapper_forward.6} parent=11 // pred_check_branch
        %398 = sbr.rel (%p396) target = $region44
      $region43: #{transformer_wrapper_forward.6} parent=11 // pred_region
        _
      $region44: #{transformer_wrapper_forward.6} parent=11 // pred_fallthru
        _
      // Predicated region
      $region45: #{transformer_wrapper_forward.6} parent=11 // pred_check
        %p399 = pneg %p311
      $region46: #{transformer_wrapper_forward.6} parent=11 // pred_check_branch
        %401 = sbr.rel (%p399) target = $region48
      $region47: #{transformer_wrapper_forward.6} parent=11 // pred_region
        _
      $region48: #{transformer_wrapper_forward.6} parent=11 // pred_fallthru
        _
      // Predicated region
      $region49: #{transformer_wrapper_forward.6} parent=11 // pred_check
        %p402 = pneg %p332
      $region50: #{transformer_wrapper_forward.6} parent=11 // pred_check_branch
        %404 = sbr.rel (%p402) target = $region52
      $region51: #{transformer_wrapper_forward.6} parent=11 // pred_region
        _
      $region52: #{transformer_wrapper_forward.6} parent=11 // pred_fallthru
        _
    $region12: #{transformer_wrapper_forward.6} parent=5 // pred_fallthru
      _
    %p405 = scmp.lt.s32.totalorder %s19, 2
    // Predicated region
    $region53: #{transformer_wrapper_forward.6} parent=5 // pred_check
      %p406 = pneg %p405
    $region54: #{transformer_wrapper_forward.6} parent=5 // pred_check_branch
      %408 = sbr.rel (%p406) target = $region56
    $region55: #{transformer_wrapper_forward.6} parent=5 // pred_region
      // Predicated region
      $region57: #{transformer_wrapper_forward.6} parent=55 // pred_check
        %p409 = pneg %p60
      $region58: #{transformer_wrapper_forward.6} parent=55 // pred_check_branch
        %411 = sbr.rel (%p409) target = $region60
      $region59: #{transformer_wrapper_forward.6} parent=55 // pred_region
        %p412 = scmp.lt.s32.totalorder %s26, 1
        %s413 = scalar_select %p412, %s26, 1
        %p414 = scmp.lt.s32.totalorder %s27, 0
        %s415 = scalar_select %p414, %s27, 0
        %s416 = sadd.s32 %s415, %s413
        %s417 = smul.addr %s416, 8
        %s418 = scalar_lea.vmem %s0, %s417
      $region60: #{transformer_wrapper_forward.6} parent=55 // pred_fallthru
        _
      // Predicated region
      $region61: #{transformer_wrapper_forward.6} parent=55 // pred_check
        %p419 = pneg %p109
      $region62: #{transformer_wrapper_forward.6} parent=55 // pred_check_branch
        %421 = sbr.rel (%p419) target = $region64
      $region63: #{transformer_wrapper_forward.6} parent=55 // pred_region
        %p422 = scmp.lt.s32.totalorder %s26, 1
        %s423 = scalar_select %p422, %s26, 1
        %p424 = scmp.lt.s32.totalorder %s28, 0
        %s425 = scalar_select %p424, %s28, 0
        %s426 = smul.addr %s423, 4
        %s427 = sadd.s32 %s425, %s426
        %s428 = smul.addr %s427, 4
        %s429 = scalar_lea.vmem %s2, %s428
      $region64: #{transformer_wrapper_forward.6} parent=55 // pred_fallthru
        _
      // Predicated region
      $region65: #{transformer_wrapper_forward.6} parent=55 // pred_check
        %p430 = pneg %p137
      $region66: #{transformer_wrapper_forward.6} parent=55 // pred_check_branch
        %432 = sbr.rel (%p430) target = $region68
      $region67: #{transformer_wrapper_forward.6} parent=55 // pred_region
        %p433 = scmp.lt.s32.totalorder %s26, 1
        %s434 = scalar_select %p433, %s26, 1
        %p435 = scmp.lt.s32.totalorder %s28, 0
        %s436 = scalar_select %p435, %s28, 0
        %s437 = smul.addr %s434, 4
        %s438 = sadd.s32 %s436, %s437
        %s439 = smul.addr %s438, 4
        %s440 = scalar_lea.vmem %s3, %s439
      $region68: #{transformer_wrapper_forward.6} parent=55 // pred_fallthru
        _
    $region56: #{transformer_wrapper_forward.6} parent=5 // pred_fallthru
      _
    %p441 = scmp.le.s32.totalorder 1, %s19
    %p442 = scmp.lt.s32.totalorder %s19, 3
    %p443 = pnand %p441, %p442
    %p444 = pneg %p443
    // Predicated region
    $region69: #{transformer_wrapper_forward.6} parent=5 // pred_check
      _
    $region70: #{transformer_wrapper_forward.6} parent=5 // pred_check_branch
      %446 = sbr.rel (%p443) target = $region72
    $region71: #{transformer_wrapper_forward.6} parent=5 // pred_region
      %s447 = ssub.s32 %s19, 1
      %p448 = scmp.lt.s32.totalorder %s29, 1
      %s449 = scalar_select %p448, %s29, 1
      %p450 = scmp.lt.s32.totalorder %s30, 0
      %s451 = scalar_select %p450, %s30, 0
      %s452 = sadd.s32 %s451, %s449
      %s453 = smul.addr %s452, 8
      %s454 = scalar_lea.vmem %s0, %s453
      %p455 = pneg %p66
      %p456 = pneg %p63
      %p457 = pneg %p87
      %p458 = pneg %p84
      %p459 = scmp.lt.s32.totalorder %s29, 1
      %s460 = scalar_select %p459, %s29, 1
      %p461 = scmp.lt.s32.totalorder %s31, 0
      %s462 = scalar_select %p461, %s31, 0
      %s463 = smul.addr %s460, 4
      %s464 = sadd.s32 %s462, %s463
      %s465 = smul.addr %s464, 4
      %s466 = scalar_lea.vmem %s2, %s465
      %p467 = pneg %p115
      %p468 = pneg %p112
      %p469 = scmp.lt.s32.totalorder %s29, 1
      %s470 = scalar_select %p469, %s29, 1
      %p471 = scmp.lt.s32.totalorder %s31, 0
      %s472 = scalar_select %p471, %s31, 0
      %s473 = smul.addr %s470, 4
      %s474 = sadd.s32 %s472, %s473
      %s475 = smul.addr %s474, 4
      %s476 = scalar_lea.vmem %s3, %s475
      %p477 = pneg %p143
      %p478 = pneg %p140
      %p479 = pneg %p164
      %p480 = pneg %p161
      %p481 = pneg %p185
      %p482 = pneg %p182
      %p483 = pneg %p206
      %p484 = pneg %p203
      %p485 = pneg %p227
      %p486 = pneg %p224
      %p487 = pneg %p248
      %p488 = pneg %p245
      %p489 = pneg %p269
      %p490 = pneg %p266
      %p491 = pneg %p290
      %p492 = pneg %p287
      %p493 = pneg %p311
      %p494 = pneg %p308
      %p495 = pneg %p332
      %p496 = pneg %p329
      %p497 = pneg %p360
      %p498 = pneg %p357
      %p499 = scmp.lt.s32.totalorder %s29, 1
      %s500 = scalar_select %p499, %s29, 1
      %p501 = scmp.lt.s32.totalorder %s30, 0
      %s502 = scalar_select %p501, %s30, 0
      %s503 = sadd.s32 %s502, %s500
      %s504 = smul.addr %s503, 8
      %s505 = scalar_lea.vmem %s13, %s504
      %p506 = scmp.lt.s32.totalorder %s29, 1
      %s507 = scalar_select %p506, %s29, 1
      %p508 = scmp.lt.s32.totalorder %s30, 0
      %s509 = scalar_select %p508, %s30, 0
      %s510 = sadd.s32 %s509, %s507
      %s511 = smul.addr %s510, 8
      %s512 = scalar_lea.vmem %s0, %s511
      %p513 = scmp.lt.s32.totalorder %s29, 1
      %s514 = scalar_select %p513, %s29, 1
      %p515 = scmp.lt.s32.totalorder %s31, 0
      %s516 = scalar_select %p515, %s31, 0
      %s517 = smul.addr %s514, 4
      %s518 = sadd.s32 %s516, %s517
      %s519 = smul.addr %s518, 4
      %s520 = scalar_lea.vmem %s2, %s519
      %p521 = scmp.lt.s32.totalorder %s29, 1
      %s522 = scalar_select %p521, %s29, 1
      %p523 = scmp.lt.s32.totalorder %s31, 0
      %s524 = scalar_select %p523, %s31, 0
      %s525 = smul.addr %s522, 4
      %s526 = sadd.s32 %s524, %s525
      %s527 = smul.addr %s526, 4
      %s528 = scalar_lea.vmem %s3, %s527
      %p529 = scmp.lt.s32.totalorder %s29, 1
      %s530 = scalar_select %p529, %s29, 1
      %p531 = scmp.lt.s32.totalorder %s30, 0
      %s532 = scalar_select %p531, %s30, 0
      %s533 = sadd.s32 %s532, %s530
      %s534 = smul.addr %s533, 8
      %s535 = scalar_lea.vmem %s13, %s534
      %s537 = smul.u32 %s30, 8
      %s538 = smul.u32 %s31, 8
      %p539 = scmp.eq.s32.totalorder %s31, 0
      // Predicated region
      $region73: #{transformer_wrapper_forward.6} parent=71 // pred_check
        %p540 = pneg %p539
      $region74: #{transformer_wrapper_forward.6} parent=71 // pred_check_branch
        %542 = sbr.rel (%p540) target = $region76
      $region75: #{transformer_wrapper_forward.6} parent=71 // pred_region
        %v543 = vld [vmem:[%s512] sm:$0xff]
        %v544 = vpack.c.bf16 %v543, %v543
        %v545 = vld [vmem:[%s1] sm:$0xf]
        %v546 = vld [vmem:[%s1 + $0x4] sm:$0xf]
        %v547 = vld [vmem:[%s1 + $0x8] sm:$0xf]
        %v548 = vld [vmem:[%s1 + $0xc] sm:$0xf]
        %v553 = vunpack.c.l.b16 %v545
        %v554 = vunpack.c.l.b16 %v546
        %v555 = vunpack.c.l.b16 %v547
        %v556 = vunpack.c.l.b16 %v548
        %v557 = vpack.c.b16 %v554, %v553
        %v558 = vpack.c.b16 %v556, %v555
        %vm561 = vcmask 261120
        %v563 = vsel %vm561, %v544, 0
        %565 = vmatprep.subr.bf16.mxu0 0
        %566 = vmatpush1.bf16.msra.mxu0 %v557
        %567 = vmatprep.subr.bf16.mxu0 0
        %568 = vmatpush1.bf16.msra.mxu0 %v558
        %569 = vmatprep.subr.bf16.mxu0 0
        %570 = vmatpush1.bf16.msra.mxu0 0
        %571 = vmatprep.subr.bf16.mxu0 0
        %572 = vmatpush1.bf16.msra.mxu0 0
        %573 = vmatprep.subr.bf16.mxu0 0
        %574 = vmatpush1.bf16.msra.mxu0 0
        %575 = vmatprep.subr.bf16.mxu0 0
        %576 = vmatpush1.bf16.msra.mxu0 0
        %577 = vmatprep.subr.bf16.mxu0 0
        %578 = vmatpush1.bf16.msra.mxu0 0
        %579 = vmatprep.subr.bf16.mxu0 0
        %580 = vmatpush1.bf16.msra.mxu0 0
        %581 = vmatprep.subr.bf16.mxu0 0
        %582 = vmatpush1.bf16.msra.mxu0 0
        %583 = vmatprep.subr.bf16.mxu0 0
        %584 = vmatpush1.bf16.msra.mxu0 0
        %585 = vmatprep.subr.bf16.mxu0 0
        %586 = vmatpush1.bf16.msra.mxu0 0
        %587 = vmatprep.subr.bf16.mxu0 0
        %588 = vmatpush1.bf16.msra.mxu0 0
        %589 = vmatprep.subr.bf16.mxu0 0
        %590 = vmatpush1.bf16.msra.mxu0 0
        %591 = vmatprep.subr.bf16.mxu0 0
        %592 = vmatpush1.bf16.msra.mxu0 0
        %593 = vmatprep.subr.bf16.mxu0 0
        %594 = vmatpush1.bf16.msra.mxu0 0
        %595 = vmatprep.subr.bf16.mxu0 0
        %596 = vmatpush1.bf16.msra.mxu0 0
        %597 = vmatprep.mubr.bf16.mxu0 0
        %598 = vmatmul.mubr.bf16.gmra.mrb[0].mxu0 %v563
        %v599 = vpop.f32.mrb[0].mxu0
        %v600 = vadd.f32 0.0, %v599
        %v601 = vpop.f32.mrb[0].mxu0
        %v602 = vpop.f32.mrb[0].mxu0
        %v603 = vpop.f32.mrb[0].mxu0
        %604 = vdwg.mxu0
        %v605 = vpack.c.bf16 %v600, %v600
        %vm606 = vcmask 60416
        %607 = vst.msk [vmem:[#allocation2] sm:$0xf] %vm606, %v605
        %v609 = vunpack.c.l.b16 %v605
        %v610 = vpack.c.b16 %v609, %v609
        %611 = vrot.lane.b32.xlu0 %v610, 120
        %v612 = vpop.permute.xlu0 %611
        %s614 = scalar_lea.vmem [#allocation2], 4
        %615 = vst.msk [vmem:[%s614] sm:$0xf] %vm606, %v612
        %616 = vrot.lane.b32.xlu0 %v610, 112
        %v617 = vpop.permute.xlu0 %616
        %s619 = scalar_lea.vmem [#allocation2], 8
        %620 = vst.msk [vmem:[%s619] sm:$0xf] %vm606, %v617
        %621 = vrot.lane.b32.xlu0 %v610, 104
        %v622 = vpop.permute.xlu0 %621
        %s624 = scalar_lea.vmem [#allocation2], 12
        %625 = vst.msk [vmem:[%s624] sm:$0xf] %vm606, %v622
        %vm626 = vcmask 7168
        %627 = vst.msk [vmem:[#allocation3] sm:$0xff] %vm626, -inf
        %628 = vst.msk [vmem:[#allocation3 + $0x8] sm:$0xff] %vm626, -inf
        %629 = vst.msk [vmem:[#allocation3 + $0x10] sm:$0xff] %vm626, -inf
        %630 = vst.msk [vmem:[#allocation3 + $0x18] sm:$0xff] %vm626, -inf
        %631 = vst.msk [vmem:[#allocation4] sm:$0xff] %vm626, 0.0
        %632 = vst.msk [vmem:[#allocation4 + $0x8] sm:$0xff] %vm626, 0.0
        %633 = vst.msk [vmem:[#allocation4 + $0x10] sm:$0xff] %vm626, 0.0
        %634 = vst.msk [vmem:[#allocation4 + $0x18] sm:$0xff] %vm626, 0.0
        %vm635 = vcmask 64512
        %636 = vst.msk [vmem:[#allocation5] sm:$0xff] %vm635, 0.0
        %637 = vst.msk [vmem:[#allocation5 + $0x8] sm:$0xff] %vm635, 0.0
        %638 = vst.msk [vmem:[#allocation5 + $0x10] sm:$0xff] %vm635, 0.0
        %639 = vst.msk [vmem:[#allocation5 + $0x18] sm:$0xff] %vm635, 0.0
      $region76: #{transformer_wrapper_forward.6} parent=71 // pred_fallthru
        _
      %s640 = sadd.s32 %s537, 7
      %p641 = scmp.le.s32.totalorder %s538, %s640
      // Predicated region
      $region77: #{transformer_wrapper_forward.6} parent=71 // pred_check
        %p642 = pneg %p641
      $region78: #{transformer_wrapper_forward.6} parent=71 // pred_check_branch
        %644 = sbr.rel (%p642) target = $region80
      $region79: #{transformer_wrapper_forward.6} parent=71 // pred_region
        %v645 = vld [vmem:[%s520] sm:$0xf]
        %v646 = vld [vmem:[%s520 + $0x4] sm:$0xf]
        %v647 = vld [vmem:[%s520 + $0x8] sm:$0xf]
        %v648 = vld [vmem:[%s520 + $0xc] sm:$0xf]
        %v649 = vld [vmem:[%s528] sm:$0xf]
        %v650 = vld [vmem:[%s528 + $0x4] sm:$0xf]
        %v651 = vld [vmem:[%s528 + $0x8] sm:$0xf]
        %v652 = vld [vmem:[%s528 + $0xc] sm:$0xf]
        %v653 = vld [vmem:[#allocation2] sm:$0xf]
        %v654 = vld [vmem:[#allocation2 + $0x4] sm:$0xf]
        %v655 = vld [vmem:[#allocation2 + $0x8] sm:$0xf]
        %v656 = vld [vmem:[#allocation2 + $0xc] sm:$0xf]
        %v657 = vlaneseq
        %v658 = vshrl.u32 %v657, 7
        %v659 = vstv %s537
        %v660 = vadd.s32 %v659, %v658
        %v661 = vlaneseq
        %v662 = vand.u32 %v661, 127
        %v663 = vstv %s538
        %v664 = vadd.s32 %v663, %v662
        %vm665 = vcmp.gt.s32.totalorder %v664, %v660
        %v666 = vsel %vm665, -1e+30, 0.0
        %vm667 = vcmask 64512
        %v669 = vsel %vm667, %v653, 0
        %v672 = vsel %vm667, %v645, 0
        %674 = vmatprep.subr.bf16.mxu0 0
        %675 = vmatpush1.bf16.xpose.msra.mxu0 %v672
        %676 = vmatprep.subr.bf16.mxu0 0
        %677 = vmatpush1.bf16.xpose.msra.mxu0 0
        %678 = vmatprep.subr.bf16.mxu0 0
        %679 = vmatpush1.bf16.xpose.msra.mxu0 0
        %680 = vmatprep.subr.bf16.mxu0 0
        %681 = vmatpush1.bf16.xpose.msra.mxu0 0
        %682 = vmatprep.subr.bf16.mxu0 0
        %683 = vmatpush1.bf16.xpose.msra.mxu0 0
        %684 = vmatprep.subr.bf16.mxu0 0
        %685 = vmatpush1.bf16.xpose.msra.mxu0 0
        %686 = vmatprep.subr.bf16.mxu0 0
        %687 = vmatpush1.bf16.xpose.msra.mxu0 0
        %688 = vmatprep.subr.bf16.mxu0 0
        %689 = vmatpush1.bf16.xpose.msra.mxu0 0
        %690 = vmatprep.subr.bf16.mxu0 0
        %691 = vmatpush1.bf16.xpose.msra.mxu0 0
        %692 = vmatprep.subr.bf16.mxu0 0
        %693 = vmatpush1.bf16.xpose.msra.mxu0 0
        %694 = vmatprep.subr.bf16.mxu0 0
        %695 = vmatpush1.bf16.xpose.msra.mxu0 0
        %696 = vmatprep.subr.bf16.mxu0 0
        %697 = vmatpush1.bf16.xpose.msra.mxu0 0
        %698 = vmatprep.subr.bf16.mxu0 0
        %699 = vmatpush1.bf16.xpose.msra.mxu0 0
        %700 = vmatprep.subr.bf16.mxu0 0
        %701 = vmatpush1.bf16.xpose.msra.mxu0 0
        %702 = vmatprep.subr.bf16.mxu0 0
        %703 = vmatpush1.bf16.xpose.msra.mxu0 0
        %704 = vmatprep.subr.bf16.mxu0 0
        %705 = vmatpush1.bf16.xpose.msra.mxu0 0
        %706 = vmatprep.mubr.bf16.mxu0 0
        %707 = vmatmul.mubr.bf16.gmra.mrb[0].mxu0 %v669
        %v708 = vpop.f32.mrb[0].mxu0
        %v709 = vadd.f32 %v666, %v708
        %v710 = vpop.f32.mrb[0].mxu0
        %v711 = vpop.f32.mrb[0].mxu0
        %v712 = vpop.f32.mrb[0].mxu0
        %713 = vdwg.mxu0
        %v715 = vsel %vm667, %v654, 0
        %v718 = vsel %vm667, %v646, 0
        %720 = vmatprep.subr.bf16.mxu0 0
        %721 = vmatpush1.bf16.xpose.msra.mxu0 %v718
        %722 = vmatprep.subr.bf16.mxu0 0
        %723 = vmatpush1.bf16.xpose.msra.mxu0 0
        %724 = vmatprep.subr.bf16.mxu0 0
        %725 = vmatpush1.bf16.xpose.msra.mxu0 0
        %726 = vmatprep.subr.bf16.mxu0 0
        %727 = vmatpush1.bf16.xpose.msra.mxu0 0
        %728 = vmatprep.subr.bf16.mxu0 0
        %729 = vmatpush1.bf16.xpose.msra.mxu0 0
        %730 = vmatprep.subr.bf16.mxu0 0
        %731 = vmatpush1.bf16.xpose.msra.mxu0 0
        %732 = vmatprep.subr.bf16.mxu0 0
        %733 = vmatpush1.bf16.xpose.msra.mxu0 0
        %734 = vmatprep.subr.bf16.mxu0 0
        %735 = vmatpush1.bf16.xpose.msra.mxu0 0
        %736 = vmatprep.subr.bf16.mxu0 0
        %737 = vmatpush1.bf16.xpose.msra.mxu0 0
        %738 = vmatprep.subr.bf16.mxu0 0
        %739 = vmatpush1.bf16.xpose.msra.mxu0 0
        %740 = vmatprep.subr.bf16.mxu0 0
        %741 = vmatpush1.bf16.xpose.msra.mxu0 0
        %742 = vmatprep.subr.bf16.mxu0 0
        %743 = vmatpush1.bf16.xpose.msra.mxu0 0
        %744 = vmatprep.subr.bf16.mxu0 0
        %745 = vmatpush1.bf16.xpose.msra.mxu0 0
        %746 = vmatprep.subr.bf16.mxu0 0
        %747 = vmatpush1.bf16.xpose.msra.mxu0 0
        %748 = vmatprep.subr.bf16.mxu0 0
        %749 = vmatpush1.bf16.xpose.msra.mxu0 0
        %750 = vmatprep.subr.bf16.mxu0 0
        %751 = vmatpush1.bf16.xpose.msra.mxu0 0
        %752 = vmatprep.mubr.bf16.mxu0 0
        %753 = vmatmul.mubr.bf16.gmra.mrb[0].mxu0 %v715
        %v754 = vpop.f32.mrb[0].mxu0
        %v755 = vadd.f32 %v666, %v754
        %v756 = vpop.f32.mrb[0].mxu0
        %v757 = vpop.f32.mrb[0].mxu0
        %v758 = vpop.f32.mrb[0].mxu0
        %759 = vdwg.mxu0
        %v761 = vsel %vm667, %v655, 0
        %v764 = vsel %vm667, %v647, 0
        %766 = vmatprep.subr.bf16.mxu0 0
        %767 = vmatpush1.bf16.xpose.msra.mxu0 %v764
        %768 = vmatprep.subr.bf16.mxu0 0
        %769 = vmatpush1.bf16.xpose.msra.mxu0 0
        %770 = vmatprep.subr.bf16.mxu0 0
        %771 = vmatpush1.bf16.xpose.msra.mxu0 0
        %772 = vmatprep.subr.bf16.mxu0 0
        %773 = vmatpush1.bf16.xpose.msra.mxu0 0
        %774 = vmatprep.subr.bf16.mxu0 0
        %775 = vmatpush1.bf16.xpose.msra.mxu0 0
        %776 = vmatprep.subr.bf16.mxu0 0
        %777 = vmatpush1.bf16.xpose.msra.mxu0 0
        %778 = vmatprep.subr.bf16.mxu0 0
        %779 = vmatpush1.bf16.xpose.msra.mxu0 0
        %780 = vmatprep.subr.bf16.mxu0 0
        %781 = vmatpush1.bf16.xpose.msra.mxu0 0
        %782 = vmatprep.subr.bf16.mxu0 0
        %783 = vmatpush1.bf16.xpose.msra.mxu0 0
        %784 = vmatprep.subr.bf16.mxu0 0
        %785 = vmatpush1.bf16.xpose.msra.mxu0 0
        %786 = vmatprep.subr.bf16.mxu0 0
        %787 = vmatpush1.bf16.xpose.msra.mxu0 0
        %788 = vmatprep.subr.bf16.mxu0 0
        %789 = vmatpush1.bf16.xpose.msra.mxu0 0
        %790 = vmatprep.subr.bf16.mxu0 0
        %791 = vmatpush1.bf16.xpose.msra.mxu0 0
        %792 = vmatprep.subr.bf16.mxu0 0
        %793 = vmatpush1.bf16.xpose.msra.mxu0 0
        %794 = vmatprep.subr.bf16.mxu0 0
        %795 = vmatpush1.bf16.xpose.msra.mxu0 0
        %796 = vmatprep.subr.bf16.mxu0 0
        %797 = vmatpush1.bf16.xpose.msra.mxu0 0
        %798 = vmatprep.mubr.bf16.mxu0 0
        %799 = vmatmul.mubr.bf16.gmra.mrb[0].mxu0 %v761
        %v800 = vpop.f32.mrb[0].mxu0
        %v801 = vadd.f32 %v666, %v800
        %v802 = vpop.f32.mrb[0].mxu0
        %v803 = vpop.f32.mrb[0].mxu0
        %v804 = vpop.f32.mrb[0].mxu0
        %805 = vdwg.mxu0
        %v807 = vsel %vm667, %v656, 0
        %v810 = vsel %vm667, %v648, 0
        %812 = vmatprep.subr.bf16.mxu0 0
        %813 = vmatpush1.bf16.xpose.msra.mxu0 %v810
        %814 = vmatprep.subr.bf16.mxu0 0
        %815 = vmatpush1.bf16.xpose.msra.mxu0 0
        %816 = vmatprep.subr.bf16.mxu0 0
        %817 = vmatpush1.bf16.xpose.msra.mxu0 0
        %818 = vmatprep.subr.bf16.mxu0 0
        %819 = vmatpush1.bf16.xpose.msra.mxu0 0
        %820 = vmatprep.subr.bf16.mxu0 0
        %821 = vmatpush1.bf16.xpose.msra.mxu0 0
        %822 = vmatprep.subr.bf16.mxu0 0
        %823 = vmatpush1.bf16.xpose.msra.mxu0 0
        %824 = vmatprep.subr.bf16.mxu0 0
        %825 = vmatpush1.bf16.xpose.msra.mxu0 0
        %826 = vmatprep.subr.bf16.mxu0 0
        %827 = vmatpush1.bf16.xpose.msra.mxu0 0
        %828 = vmatprep.subr.bf16.mxu0 0
        %829 = vmatpush1.bf16.xpose.msra.mxu0 0
        %830 = vmatprep.subr.bf16.mxu0 0
        %831 = vmatpush1.bf16.xpose.msra.mxu0 0
        %832 = vmatprep.subr.bf16.mxu0 0
        %833 = vmatpush1.bf16.xpose.msra.mxu0 0
        %834 = vmatprep.subr.bf16.mxu0 0
        %835 = vmatpush1.bf16.xpose.msra.mxu0 0
        %836 = vmatprep.subr.bf16.mxu0 0
        %837 = vmatpush1.bf16.xpose.msra.mxu0 0
        %838 = vmatprep.subr.bf16.mxu0 0
        %839 = vmatpush1.bf16.xpose.msra.mxu0 0
        %840 = vmatprep.subr.bf16.mxu0 0
        %841 = vmatpush1.bf16.xpose.msra.mxu0 0
        %842 = vmatprep.subr.bf16.mxu0 0
        %843 = vmatpush1.bf16.xpose.msra.mxu0 0
        %844 = vmatprep.mubr.bf16.mxu0 0
        %845 = vmatmul.mubr.bf16.gmra.mrb[0].mxu0 %v807
        %v846 = vpop.f32.mrb[0].mxu0
        %v847 = vadd.f32 %v666, %v846
        %v848 = vpop.f32.mrb[0].mxu0
        %v849 = vpop.f32.mrb[0].mxu0
        %v850 = vpop.f32.mrb[0].mxu0
        %851 = vdwg.mxu0
        %v852 = vld [vmem:[#allocation3] sm:$0xff]
        %v853 = vld [vmem:[#allocation3 + $0x8] sm:$0xff]
        %v854 = vld [vmem:[#allocation3 + $0x10] sm:$0xff]
        %v855 = vld [vmem:[#allocation3 + $0x18] sm:$0xff]
        %v856 = vsel %vm667, %v709, -inf
        %857 = vmax.xlane.f32.xlu0 %v856
        %v858 = vpop.xlane.xlu0 %857
        %v859 = vsel %vm667, %v755, -inf
        %860 = vmax.xlane.f32.xlu0 %v859
        %v861 = vpop.xlane.xlu0 %860
        %v862 = vsel %vm667, %v801, -inf
        %863 = vmax.xlane.f32.xlu0 %v862
        %v864 = vpop.xlane.xlu0 %863
        %v865 = vsel %vm667, %v847, -inf
        %866 = vmax.xlane.f32.xlu0 %v865
        %v867 = vpop.xlane.xlu0 %866
        %v868 = vmax.f32 %v852, %v858
        %v869 = vmax.f32 %v853, %v861
        %v870 = vmax.f32 %v854, %v864
        %v871 = vmax.f32 %v855, %v867
        %v872 = vsub.f32 %v852, %v868
        %v873 = vsub.f32 %v853, %v869
        %v874 = vsub.f32 %v854, %v870
        %v875 = vsub.f32 %v855, %v871
        %v876 = vmul.f32 %v872, 1.442695
        %v877 = vpow.pop %v876
        %v878 = vmul.f32 %v873, 1.442695
        %v879 = vpow.pop %v878
        %v880 = vmul.f32 %v874, 1.442695
        %v881 = vpow.pop %v880
        %v882 = vmul.f32 %v875, 1.442695
        %v883 = vpow.pop %v882
        %885 = vset.pattern.permute.xlu0 0
        %886 = vperm.xlu0 %885, %v868
        %v887 = vpop.permute.xlu0 %886
        %890 = vset.pattern.permute.xlu0 0
        %891 = vperm.xlu0 %890, %v869
        %v892 = vpop.permute.xlu0 %891
        %895 = vset.pattern.permute.xlu0 0
        %896 = vperm.xlu0 %895, %v870
        %v897 = vpop.permute.xlu0 %896
        %900 = vset.pattern.permute.xlu0 0
        %901 = vperm.xlu0 %900, %v871
        %v902 = vpop.permute.xlu0 %901
        %v904 = vsub.f32 %v709, %v887
        %v905 = vsub.f32 %v755, %v892
        %v906 = vsub.f32 %v801, %v897
        %v907 = vsub.f32 %v847, %v902
        %v908 = vmul.f32 %v904, 1.442695
        %v909 = vpow.pop %v908
        %v910 = vmul.f32 %v905, 1.442695
        %v911 = vpow.pop %v910
        %v912 = vmul.f32 %v906, 1.442695
        %v913 = vpow.pop %v912
        %v914 = vmul.f32 %v907, 1.442695
        %v915 = vpow.pop %v914
        %v916 = vld [vmem:[#allocation4] sm:$0xff]
        %v917 = vld [vmem:[#allocation4 + $0x8] sm:$0xff]
        %v918 = vld [vmem:[#allocation4 + $0x10] sm:$0xff]
        %v919 = vld [vmem:[#allocation4 + $0x18] sm:$0xff]
        %v920 = vmul.f32 %v877, %v916
        %v921 = vmul.f32 %v879, %v917
        %v922 = vmul.f32 %v881, %v918
        %v923 = vmul.f32 %v883, %v919
        %v924 = vsel %vm667, %v909, 0.0
        %925 = vadd.xlane.f32.xlu0 %v924
        %v926 = vpop.xlane.xlu0 %925
        %v927 = vsel %vm667, %v911, 0.0
        %928 = vadd.xlane.f32.xlu0 %v927
        %v929 = vpop.xlane.xlu0 %928
        %v930 = vsel %vm667, %v913, 0.0
        %931 = vadd.xlane.f32.xlu0 %v930
        %v932 = vpop.xlane.xlu0 %931
        %v933 = vsel %vm667, %v915, 0.0
        %934 = vadd.xlane.f32.xlu0 %v933
        %v935 = vpop.xlane.xlu0 %934
        %v936 = vadd.f32 %v920, %v926
        %v937 = vadd.f32 %v921, %v929
        %v938 = vadd.f32 %v922, %v932
        %v939 = vadd.f32 %v923, %v935
        %vm940 = vcmask 7168
        %941 = vst.msk [vmem:[#allocation4] sm:$0xff] %vm940, %v936
        %942 = vst.msk [vmem:[#allocation4 + $0x8] sm:$0xff] %vm940, %v937
        %943 = vst.msk [vmem:[#allocation4 + $0x10] sm:$0xff] %vm940, %v938
        %944 = vst.msk [vmem:[#allocation4 + $0x18] sm:$0xff] %vm940, %v939
        %v945 = vld [vmem:[#allocation5] sm:$0xff]
        %v946 = vld [vmem:[#allocation5 + $0x8] sm:$0xff]
        %v947 = vld [vmem:[#allocation5 + $0x10] sm:$0xff]
        %v948 = vld [vmem:[#allocation5 + $0x18] sm:$0xff]
        %950 = vset.pattern.permute.xlu0 0
        %951 = vperm.xlu0 %950, %v877
        %v952 = vpop.permute.xlu0 %951
        %955 = vset.pattern.permute.xlu0 0
        %956 = vperm.xlu0 %955, %v879
        %v957 = vpop.permute.xlu0 %956
        %960 = vset.pattern.permute.xlu0 0
        %961 = vperm.xlu0 %960, %v881
        %v962 = vpop.permute.xlu0 %961
        %965 = vset.pattern.permute.xlu0 0
        %966 = vperm.xlu0 %965, %v883
        %v967 = vpop.permute.xlu0 %966
        %v969 = vmul.f32 %v952, %v945
        %v970 = vmul.f32 %v957, %v946
        %v971 = vmul.f32 %v962, %v947
        %v972 = vmul.f32 %v967, %v948
        %v973 = vpack.c.bf16 %v909, %v909
        %v974 = vpack.c.bf16 %v911, %v911
        %v975 = vpack.c.bf16 %v913, %v913
        %v976 = vpack.c.bf16 %v915, %v915
        %v978 = vsel %vm667, %v973, 0
        %vm980 = vcmask 1043456
        %v982 = vsel %vm980, %v649, 0
        %984 = vmatprep.subr.bf16.mxu0 0
        %985 = vmatpush1.bf16.msra.mxu0 %v982
        %986 = vmatprep.subr.bf16.mxu0 0
        %987 = vmatpush1.bf16.msra.mxu0 0
        %988 = vmatprep.subr.bf16.mxu0 0
        %989 = vmatpush1.bf16.msra.mxu0 0
        %990 = vmatprep.subr.bf16.mxu0 0
        %991 = vmatpush1.bf16.msra.mxu0 0
        %992 = vmatprep.subr.bf16.mxu0 0
        %993 = vmatpush1.bf16.msra.mxu0 0
        %994 = vmatprep.subr.bf16.mxu0 0
        %995 = vmatpush1.bf16.msra.mxu0 0
        %996 = vmatprep.subr.bf16.mxu0 0
        %997 = vmatpush1.bf16.msra.mxu0 0
        %998 = vmatprep.subr.bf16.mxu0 0
        %999 = vmatpush1.bf16.msra.mxu0 0
        %1000 = vmatprep.subr.bf16.mxu0 0
        %1001 = vmatpush1.bf16.msra.mxu0 0
        %1002 = vmatprep.subr.bf16.mxu0 0
        %1003 = vmatpush1.bf16.msra.mxu0 0
        %1004 = vmatprep.subr.bf16.mxu0 0
        %1005 = vmatpush1.bf16.msra.mxu0 0
        %1006 = vmatprep.subr.bf16.mxu0 0
        %1007 = vmatpush1.bf16.msra.mxu0 0
        %1008 = vmatprep.subr.bf16.mxu0 0
        %1009 = vmatpush1.bf16.msra.mxu0 0
        %1010 = vmatprep.subr.bf16.mxu0 0
        %1011 = vmatpush1.bf16.msra.mxu0 0
        %1012 = vmatprep.subr.bf16.mxu0 0
        %1013 = vmatpush1.bf16.msra.mxu0 0
        %1014 = vmatprep.subr.bf16.mxu0 0
        %1015 = vmatpush1.bf16.msra.mxu0 0
        %1016 = vmatprep.mubr.bf16.mxu0 0
        %1017 = vmatmul.mubr.bf16.gmra.mrb[0].mxu0 %v978
        %v1018 = vpop.f32.mrb[0].mxu0
        %v1019 = vadd.f32 0.0, %v1018
        %v1020 = vpop.f32.mrb[0].mxu0
        %v1021 = vpop.f32.mrb[0].mxu0
        %v1022 = vpop.f32.mrb[0].mxu0
        %1023 = vdwg.mxu0
        %v1025 = vsel %vm667, %v974, 0
        %v1028 = vsel %vm980, %v650, 0
        %1030 = vmatprep.subr.bf16.mxu0 0
        %1031 = vmatpush1.bf16.msra.mxu0 %v1028
        %1032 = vmatprep.subr.bf16.mxu0 0
        %1033 = vmatpush1.bf16.msra.mxu0 0
        %1034 = vmatprep.subr.bf16.mxu0 0
        %1035 = vmatpush1.bf16.msra.mxu0 0
        %1036 = vmatprep.subr.bf16.mxu0 0
        %1037 = vmatpush1.bf16.msra.mxu0 0
        %1038 = vmatprep.subr.bf16.mxu0 0
        %1039 = vmatpush1.bf16.msra.mxu0 0
        %1040 = vmatprep.subr.bf16.mxu0 0
        %1041 = vmatpush1.bf16.msra.mxu0 0
        %1042 = vmatprep.subr.bf16.mxu0 0
        %1043 = vmatpush1.bf16.msra.mxu0 0
        %1044 = vmatprep.subr.bf16.mxu0 0
        %1045 = vmatpush1.bf16.msra.mxu0 0
        %1046 = vmatprep.subr.bf16.mxu0 0
        %1047 = vmatpush1.bf16.msra.mxu0 0
        %1048 = vmatprep.subr.bf16.mxu0 0
        %1049 = vmatpush1.bf16.msra.mxu0 0
        %1050 = vmatprep.subr.bf16.mxu0 0
        %1051 = vmatpush1.bf16.msra.mxu0 0
        %1052 = vmatprep.subr.bf16.mxu0 0
        %1053 = vmatpush1.bf16.msra.mxu0 0
        %1054 = vmatprep.subr.bf16.mxu0 0
        %1055 = vmatpush1.bf16.msra.mxu0 0
        %1056 = vmatprep.subr.bf16.mxu0 0
        %1057 = vmatpush1.bf16.msra.mxu0 0
        %1058 = vmatprep.subr.bf16.mxu0 0
        %1059 = vmatpush1.bf16.msra.mxu0 0
        %1060 = vmatprep.subr.bf16.mxu0 0
        %1061 = vmatpush1.bf16.msra.mxu0 0
        %1062 = vmatprep.mubr.bf16.mxu0 0
        %1063 = vmatmul.mubr.bf16.gmra.mrb[0].mxu0 %v1025
        %v1064 = vpop.f32.mrb[0].mxu0
        %v1065 = vadd.f32 0.0, %v1064
        %v1066 = vpop.f32.mrb[0].mxu0
        %v1067 = vpop.f32.mrb[0].mxu0
        %v1068 = vpop.f32.mrb[0].mxu0
        %1069 = vdwg.mxu0
        %v1071 = vsel %vm667, %v975, 0
        %v1074 = vsel %vm980, %v651, 0
        %1076 = vmatprep.subr.bf16.mxu0 0
        %1077 = vmatpush1.bf16.msra.mxu0 %v1074
        %1078 = vmatprep.subr.bf16.mxu0 0
        %1079 = vmatpush1.bf16.msra.mxu0 0
        %1080 = vmatprep.subr.bf16.mxu0 0
        %1081 = vmatpush1.bf16.msra.mxu0 0
        %1082 = vmatprep.subr.bf16.mxu0 0
        %1083 = vmatpush1.bf16.msra.mxu0 0
        %1084 = vmatprep.subr.bf16.mxu0 0
        %1085 = vmatpush1.bf16.msra.mxu0 0
        %1086 = vmatprep.subr.bf16.mxu0 0
        %1087 = vmatpush1.bf16.msra.mxu0 0
        %1088 = vmatprep.subr.bf16.mxu0 0
        %1089 = vmatpush1.bf16.msra.mxu0 0
        %1090 = vmatprep.subr.bf16.mxu0 0
        %1091 = vmatpush1.bf16.msra.mxu0 0
        %1092 = vmatprep.subr.bf16.mxu0 0
        %1093 = vmatpush1.bf16.msra.mxu0 0
        %1094 = vmatprep.subr.bf16.mxu0 0
        %1095 = vmatpush1.bf16.msra.mxu0 0
        %1096 = vmatprep.subr.bf16.mxu0 0
        %1097 = vmatpush1.bf16.msra.mxu0 0
        %1098 = vmatprep.subr.bf16.mxu0 0
        %1099 = vmatpush1.bf16.msra.mxu0 0
        %1100 = vmatprep.subr.bf16.mxu0 0
        %1101 = vmatpush1.bf16.msra.mxu0 0
        %1102 = vmatprep.subr.bf16.mxu0 0
        %1103 = vmatpush1.bf16.msra.mxu0 0
        %1104 = vmatprep.subr.bf16.mxu0 0
        %1105 = vmatpush1.bf16.msra.mxu0 0
        %1106 = vmatprep.subr.bf16.mxu0 0
        %1107 = vmatpush1.bf16.msra.mxu0 0
        %1108 = vmatprep.mubr.bf16.mxu0 0
        %1109 = vmatmul.mubr.bf16.gmra.mrb[0].mxu0 %v1071
        %v1110 = vpop.f32.mrb[0].mxu0
        %v1111 = vadd.f32 0.0, %v1110
        %v1112 = vpop.f32.mrb[0].mxu0
        %v1113 = vpop.f32.mrb[0].mxu0
        %v1114 = vpop.f32.mrb[0].mxu0
        %1115 = vdwg.mxu0
        %v1117 = vsel %vm667, %v976, 0
        %v1120 = vsel %vm980, %v652, 0
        %1122 = vmatprep.subr.bf16.mxu0 0
        %1123 = vmatpush1.bf16.msra.mxu0 %v1120
        %1124 = vmatprep.subr.bf16.mxu0 0
        %1125 = vmatpush1.bf16.msra.mxu0 0
        %1126 = vmatprep.subr.bf16.mxu0 0
        %1127 = vmatpush1.bf16.msra.mxu0 0
        %1128 = vmatprep.subr.bf16.mxu0 0
        %1129 = vmatpush1.bf16.msra.mxu0 0
        %1130 = vmatprep.subr.bf16.mxu0 0
        %1131 = vmatpush1.bf16.msra.mxu0 0
        %1132 = vmatprep.subr.bf16.mxu0 0
        %1133 = vmatpush1.bf16.msra.mxu0 0
        %1134 = vmatprep.subr.bf16.mxu0 0
        %1135 = vmatpush1.bf16.msra.mxu0 0
        %1136 = vmatprep.subr.bf16.mxu0 0
        %1137 = vmatpush1.bf16.msra.mxu0 0
        %1138 = vmatprep.subr.bf16.mxu0 0
        %1139 = vmatpush1.bf16.msra.mxu0 0
        %1140 = vmatprep.subr.bf16.mxu0 0
        %1141 = vmatpush1.bf16.msra.mxu0 0
        %1142 = vmatprep.subr.bf16.mxu0 0
        %1143 = vmatpush1.bf16.msra.mxu0 0
        %1144 = vmatprep.subr.bf16.mxu0 0
        %1145 = vmatpush1.bf16.msra.mxu0 0
        %1146 = vmatprep.subr.bf16.mxu0 0
        %1147 = vmatpush1.bf16.msra.mxu0 0
        %1148 = vmatprep.subr.bf16.mxu0 0
        %1149 = vmatpush1.bf16.msra.mxu0 0
        %1150 = vmatprep.subr.bf16.mxu0 0
        %1151 = vmatpush1.bf16.msra.mxu0 0
        %1152 = vmatprep.subr.bf16.mxu0 0
        %1153 = vmatpush1.bf16.msra.mxu0 0
        %1154 = vmatprep.mubr.bf16.mxu0 0
        %1155 = vmatmul.mubr.bf16.gmra.mrb[0].mxu0 %v1117
        %v1156 = vpop.f32.mrb[0].mxu0
        %v1157 = vadd.f32 0.0, %v1156
        %v1158 = vpop.f32.mrb[0].mxu0
        %v1159 = vpop.f32.mrb[0].mxu0
        %v1160 = vpop.f32.mrb[0].mxu0
        %1161 = vdwg.mxu0
        %v1162 = vadd.f32 %v969, %v1019
        %v1163 = vadd.f32 %v970, %v1065
        %v1164 = vadd.f32 %v971, %v1111
        %v1165 = vadd.f32 %v972, %v1157
        %1166 = vst.msk [vmem:[#allocation5] sm:$0xff] %vm667, %v1162
        %1167 = vst.msk [vmem:[#allocation5 + $0x8] sm:$0xff] %vm667, %v1163
        %1168 = vst.msk [vmem:[#allocation5 + $0x10] sm:$0xff] %vm667, %v1164
        %1169 = vst.msk [vmem:[#allocation5 + $0x18] sm:$0xff] %vm667, %v1165
        %1170 = vst.msk [vmem:[#allocation3] sm:$0xff] %vm940, %v868
        %1171 = vst.msk [vmem:[#allocation3 + $0x8] sm:$0xff] %vm940, %v869
        %1172 = vst.msk [vmem:[#allocation3 + $0x10] sm:$0xff] %vm940, %v870
        %1173 = vst.msk [vmem:[#allocation3 + $0x18] sm:$0xff] %vm940, %v871
      $region80: #{transformer_wrapper_forward.6} parent=71 // pred_fallthru
        _
      // Predicated region
      $region81: #{transformer_wrapper_forward.6} parent=71 // pred_check
        %p1174 = pneg %p539
      $region82: #{transformer_wrapper_forward.6} parent=71 // pred_check_branch
        %1176 = sbr.rel (%p1174) target = $region84
      $region83: #{transformer_wrapper_forward.6} parent=71 // pred_region
        %v1177 = vld [vmem:[#allocation4] sm:$0xff]
        %v1178 = vld [vmem:[#allocation4 + $0x8] sm:$0xff]
        %v1179 = vld [vmem:[#allocation4 + $0x10] sm:$0xff]
        %v1180 = vld [vmem:[#allocation4 + $0x18] sm:$0xff]
        %v1181 = vrcp.pop %v1177
        %v1182 = vrcp.pop %v1178
        %v1183 = vrcp.pop %v1179
        %v1184 = vrcp.pop %v1180
        %v1185 = vld [vmem:[#allocation5] sm:$0xff]
        %1187 = vset.pattern.permute.xlu0 0
        %1188 = vperm.xlu0 %1187, %v1181
        %v1189 = vpop.permute.xlu0 %1188
        %v1191 = vmul.f32 %v1185, %v1189
        %v1192 = vpack.c.bf16 %v1191, %v1191
        %vm1193 = vcmask 60416
        %1194 = vst.msk [vmem:[#allocation6] sm:$0xf] %vm1193, %v1192
        %s1195 = scalar_lea.vmem [#allocation5], 8
        %v1196 = vld [vmem:[%s1195] sm:$0xff]
        %1198 = vset.pattern.permute.xlu0 0
        %1199 = vperm.xlu0 %1198, %v1182
        %v1200 = vpop.permute.xlu0 %1199
        %v1202 = vmul.f32 %v1196, %v1200
        %v1203 = vpack.c.bf16 %v1202, %v1202
        %v1205 = vunpack.c.l.b16 %v1203
        %v1206 = vpack.c.b16 %v1205, %v1205
        %1207 = vrot.lane.b32.xlu0 %v1206, 8
        %v1208 = vpop.permute.xlu0 %1207
        %vm1210 = vcmask 126016
        %1211 = vst.msk [vmem:[#allocation6] sm:$0xf] %vm1210, %v1208
        %s1212 = scalar_lea.vmem [#allocation5], 16
        %v1213 = vld [vmem:[%s1212] sm:$0xff]
        %1215 = vset.pattern.permute.xlu0 0
        %1216 = vperm.xlu0 %1215, %v1183
        %v1217 = vpop.permute.xlu0 %1216
        %v1219 = vmul.f32 %v1213, %v1217
        %v1220 = vpack.c.bf16 %v1219, %v1219
        %v1222 = vunpack.c.l.b16 %v1220
        %v1223 = vpack.c.b16 %v1222, %v1222
        %1224 = vrot.lane.b32.xlu0 %v1223, 16
        %v1225 = vpop.permute.xlu0 %1224
        %vm1227 = vcmask 191616
        %1228 = vst.msk [vmem:[#allocation6] sm:$0xf] %vm1227, %v1225
        %s1229 = scalar_lea.vmem [#allocation5], 24
        %v1230 = vld [vmem:[%s1229] sm:$0xff]
        %1232 = vset.pattern.permute.xlu0 0
        %1233 = vperm.xlu0 %1232, %v1184
        %v1234 = vpop.permute.xlu0 %1233
        %v1236 = vmul.f32 %v1230, %v1234
        %v1237 = vpack.c.bf16 %v1236, %v1236
        %v1239 = vunpack.c.l.b16 %v1237
        %v1240 = vpack.c.b16 %v1239, %v1239
        %1241 = vrot.lane.b32.xlu0 %v1240, 24
        %v1242 = vpop.permute.xlu0 %1241
        %vm1244 = vcmask 257216
        %1245 = vst.msk [vmem:[#allocation6] sm:$0xf] %vm1244, %v1242
        %v1246 = vld [vmem:[%s512] sm:$0xff]
        %v1247 = vld [vmem:[#allocation6] sm:$0xf]
        %v1248 = vld [vmem:[%s4] sm:$0xf]
        %v1249 = vld [vmem:[%s4 + $0x4] sm:$0xf]
        %v1250 = vld [vmem:[%s4 + $0x8] sm:$0xf]
        %v1251 = vld [vmem:[%s4 + $0xc] sm:$0xf]
        %v1256 = vunpack.c.l.b16 %v1248
        %v1257 = vunpack.c.l.b16 %v1249
        %v1258 = vunpack.c.l.b16 %v1250
        %v1259 = vunpack.c.l.b16 %v1251
        %v1260 = vpack.c.b16 %v1257, %v1256
        %v1261 = vpack.c.b16 %v1259, %v1258
        %vm1264 = vcmask 261120
        %v1266 = vsel %vm1264, %v1247, 0
        %1268 = vmatprep.subr.bf16.mxu0 0
        %1269 = vmatpush1.bf16.msra.mxu0 %v1260
        %1270 = vmatprep.subr.bf16.mxu0 0
        %1271 = vmatpush1.bf16.msra.mxu0 %v1261
        %1272 = vmatprep.subr.bf16.mxu0 0
        %1273 = vmatpush1.bf16.msra.mxu0 0
        %1274 = vmatprep.subr.bf16.mxu0 0
        %1275 = vmatpush1.bf16.msra.mxu0 0
        %1276 = vmatprep.subr.bf16.mxu0 0
        %1277 = vmatpush1.bf16.msra.mxu0 0
        %1278 = vmatprep.subr.bf16.mxu0 0
        %1279 = vmatpush1.bf16.msra.mxu0 0
        %1280 = vmatprep.subr.bf16.mxu0 0
        %1281 = vmatpush1.bf16.msra.mxu0 0
        %1282 = vmatprep.subr.bf16.mxu0 0
        %1283 = vmatpush1.bf16.msra.mxu0 0
        %1284 = vmatprep.subr.bf16.mxu0 0
        %1285 = vmatpush1.bf16.msra.mxu0 0
        %1286 = vmatprep.subr.bf16.mxu0 0
        %1287 = vmatpush1.bf16.msra.mxu0 0
        %1288 = vmatprep.subr.bf16.mxu0 0
        %1289 = vmatpush1.bf16.msra.mxu0 0
        %1290 = vmatprep.subr.bf16.mxu0 0
        %1291 = vmatpush1.bf16.msra.mxu0 0
        %1292 = vmatprep.subr.bf16.mxu0 0
        %1293 = vmatpush1.bf16.msra.mxu0 0
        %1294 = vmatprep.subr.bf16.mxu0 0
        %1295 = vmatpush1.bf16.msra.mxu0 0
        %1296 = vmatprep.subr.bf16.mxu0 0
        %1297 = vmatpush1.bf16.msra.mxu0 0
        %1298 = vmatprep.subr.bf16.mxu0 0
        %1299 = vmatpush1.bf16.msra.mxu0 0
        %1300 = vmatprep.mubr.bf16.mxu0 0
        %1301 = vmatmul.mubr.bf16.gmra.mrb[0].mxu0 %v1266
        %v1302 = vpop.f32.mrb[0].mxu0
        %v1303 = vadd.f32 %v1246, %v1302
        %v1304 = vpop.f32.mrb[0].mxu0
        %v1305 = vpop.f32.mrb[0].mxu0
        %v1306 = vpop.f32.mrb[0].mxu0
        %1307 = vdwg.mxu0
        %v1308 = vsel %vm1264, %v1303, 0.0
        %1309 = vadd.xlane.f32.xlu0 %v1308
        %v1310 = vpop.xlane.xlu0 %1309
        %v1311 = vrcp.pop 32.0
        %v1312 = vmul.f32 %v1310, %v1311
        %v1313 = vsub.f32 %v1303, %v1312
        %v1314 = vmul.f32 %v1313, %v1313
        %v1315 = vsel %vm1264, %v1314, 0.0
        %1316 = vadd.xlane.f32.xlu0 %v1315
        %v1317 = vpop.xlane.xlu0 %1316
        %v1318 = vmul.f32 %v1317, 0.032258064
        %v1319 = vrsqrt.pop %v1318
        %v1320 = vmul.f32 %v1318, %v1319
        %vm1321 = vcmp.eq.f32.partialorder %v1318, inf
        %v1322 = vsel %vm1321, %v1318, %v1320
        %vm1323 = vcmp.eq.f32.partialorder %v1318, 0.0
        %v1324 = vand.u32 %v1318, 2147483648
        %v1325 = vsel %vm1323, %v1324, %v1322
        %v1326 = vld [vmem:[%s9] sm:$0x1]
        %v1327 = vadd.f32 %v1325, 1e-05
        %v1328 = vrcp.pop %v1327
        %v1329 = vmul.f32 %v1313, %v1328
        %v1331 = vlaneseq
        %v1332 = vshrl.u32 %v1331, 7
        %v1333 = vsub.s32 0, %v1332
        %v1334 = vrot.slane %v1326, %v1333
        %v1336 = vmul.f32 %v1334, %v1329
        %v1337 = vld [vmem:[%s10] sm:$0x1]
        %v1339 = vlaneseq
        %v1340 = vshrl.u32 %v1339, 7
        %v1341 = vsub.s32 0, %v1340
        %v1342 = vrot.slane %v1337, %v1341
        %v1344 = vadd.f32 %v1336, %v1342
        %v1345 = vpack.c.bf16 %v1344, %v1344
        %v1346 = vld [vmem:[%s5] sm:$0xf]
        %v1347 = vld [vmem:[%s5 + $0x4] sm:$0xf]
        %v1348 = vld [vmem:[%s5 + $0x8] sm:$0xf]
        %v1349 = vld [vmem:[%s5 + $0xc] sm:$0xf]
        %v1350 = vld [vmem:[%s6] sm:$0x1]
        %v1352 = vlaneseq
        %v1353 = vshrl.u32 %v1352, 7
        %v1354 = vsub.s32 0, %v1353
        %v1355 = vrot.slane %v1350, %v1354
        %v1361 = vunpack.c.l.b16 %v1346
        %v1362 = vunpack.c.l.b16 %v1347
        %v1363 = vunpack.c.l.b16 %v1348
        %v1364 = vunpack.c.l.b16 %v1349
        %v1365 = vpack.c.b16 %v1362, %v1361
        %v1366 = vpack.c.b16 %v1364, %v1363
        %v1370 = vsel %vm1264, %v1345, 0
        %1372 = vmatprep.subr.bf16.mxu0 0
        %1373 = vmatpush1.bf16.msra.mxu0 %v1365
        %1374 = vmatprep.subr.bf16.mxu0 0
        %1375 = vmatpush1.bf16.msra.mxu0 %v1366
        %1376 = vmatprep.subr.bf16.mxu0 0
        %1377 = vmatpush1.bf16.msra.mxu0 0
        %1378 = vmatprep.subr.bf16.mxu0 0
        %1379 = vmatpush1.bf16.msra.mxu0 0
        %1380 = vmatprep.subr.bf16.mxu0 0
        %1381 = vmatpush1.bf16.msra.mxu0 0
        %1382 = vmatprep.subr.bf16.mxu0 0
        %1383 = vmatpush1.bf16.msra.mxu0 0
        %1384 = vmatprep.subr.bf16.mxu0 0
        %1385 = vmatpush1.bf16.msra.mxu0 0
        %1386 = vmatprep.subr.bf16.mxu0 0
        %1387 = vmatpush1.bf16.msra.mxu0 0
        %1388 = vmatprep.subr.bf16.mxu0 0
        %1389 = vmatpush1.bf16.msra.mxu0 0
        %1390 = vmatprep.subr.bf16.mxu0 0
        %1391 = vmatpush1.bf16.msra.mxu0 0
        %1392 = vmatprep.subr.bf16.mxu0 0
        %1393 = vmatpush1.bf16.msra.mxu0 0
        %1394 = vmatprep.subr.bf16.mxu0 0
        %1395 = vmatpush1.bf16.msra.mxu0 0
        %1396 = vmatprep.subr.bf16.mxu0 0
        %1397 = vmatpush1.bf16.msra.mxu0 0
        %1398 = vmatprep.subr.bf16.mxu0 0
        %1399 = vmatpush1.bf16.msra.mxu0 0
        %1400 = vmatprep.subr.bf16.mxu0 0
        %1401 = vmatpush1.bf16.msra.mxu0 0
        %1402 = vmatprep.subr.bf16.mxu0 0
        %1403 = vmatpush1.bf16.msra.mxu0 0
        %1404 = vmatprep.mubr.bf16.mxu0 0
        %1405 = vmatmul.mubr.bf16.gmra.mrb[0].mxu0 %v1370
        %v1406 = vpop.f32.mrb[0].mxu0
        %v1407 = vadd.f32 %v1355, %v1406
        %v1408 = vpop.f32.mrb[0].mxu0
        %v1409 = vpop.f32.mrb[0].mxu0
        %v1410 = vpop.f32.mrb[0].mxu0
        %1411 = vdwg.mxu0
        %v1412 = vmax.f32 %v1407, 0.0
        %v1413 = vpack.c.bf16 %v1412, %v1412
        %v1414 = vld [vmem:[%s7] sm:$0xf]
        %v1415 = vld [vmem:[%s7 + $0x4] sm:$0xf]
        %v1416 = vld [vmem:[%s7 + $0x8] sm:$0xf]
        %v1417 = vld [vmem:[%s7 + $0xc] sm:$0xf]
        %v1418 = vld [vmem:[%s7 + $0x10] sm:$0xf]
        %v1419 = vld [vmem:[%s7 + $0x14] sm:$0xf]
        %v1420 = vld [vmem:[%s7 + $0x18] sm:$0xf]
        %v1421 = vld [vmem:[%s7 + $0x1c] sm:$0xf]
        %v1422 = vld [vmem:[%s8] sm:$0x1]
        %v1424 = vlaneseq
        %v1425 = vshrl.u32 %v1424, 7
        %v1426 = vsub.s32 0, %v1425
        %v1427 = vrot.slane %v1422, %v1426
        %v1437 = vunpack.c.l.b16 %v1414
        %v1438 = vunpack.c.l.b16 %v1415
        %v1439 = vunpack.c.l.b16 %v1416
        %v1440 = vunpack.c.l.b16 %v1417
        %v1441 = vunpack.c.l.b16 %v1418
        %v1442 = vunpack.c.l.b16 %v1419
        %v1443 = vunpack.c.l.b16 %v1420
        %v1444 = vunpack.c.l.b16 %v1421
        %v1445 = vpack.c.b16 %v1438, %v1437
        %v1446 = vpack.c.b16 %v1440, %v1439
        %v1447 = vpack.c.b16 %v1442, %v1441
        %v1448 = vpack.c.b16 %v1444, %v1443
        %vm1453 = vcmask 523264
        %v1455 = vsel %vm1453, %v1413, 0
        %1457 = vmatprep.subr.bf16.mxu0 0
        %1458 = vmatpush1.bf16.msra.mxu0 %v1445
        %1459 = vmatprep.subr.bf16.mxu0 0
        %1460 = vmatpush1.bf16.msra.mxu0 %v1446
        %1461 = vmatprep.subr.bf16.mxu0 0
        %1462 = vmatpush1.bf16.msra.mxu0 %v1447
        %1463 = vmatprep.subr.bf16.mxu0 0
        %1464 = vmatpush1.bf16.msra.mxu0 %v1448
        %1465 = vmatprep.subr.bf16.mxu0 0
        %1466 = vmatpush1.bf16.msra.mxu0 0
        %1467 = vmatprep.subr.bf16.mxu0 0
        %1468 = vmatpush1.bf16.msra.mxu0 0
        %1469 = vmatprep.subr.bf16.mxu0 0
        %1470 = vmatpush1.bf16.msra.mxu0 0
        %1471 = vmatprep.subr.bf16.mxu0 0
        %1472 = vmatpush1.bf16.msra.mxu0 0
        %1473 = vmatprep.subr.bf16.mxu0 0
        %1474 = vmatpush1.bf16.msra.mxu0 0
        %1475 = vmatprep.subr.bf16.mxu0 0
        %1476 = vmatpush1.bf16.msra.mxu0 0
        %1477 = vmatprep.subr.bf16.mxu0 0
        %1478 = vmatpush1.bf16.msra.mxu0 0
        %1479 = vmatprep.subr.bf16.mxu0 0
        %1480 = vmatpush1.bf16.msra.mxu0 0
        %1481 = vmatprep.subr.bf16.mxu0 0
        %1482 = vmatpush1.bf16.msra.mxu0 0
        %1483 = vmatprep.subr.bf16.mxu0 0
        %1484 = vmatpush1.bf16.msra.mxu0 0
        %1485 = vmatprep.subr.bf16.mxu0 0
        %1486 = vmatpush1.bf16.msra.mxu0 0
        %1487 = vmatprep.subr.bf16.mxu0 0
        %1488 = vmatpush1.bf16.msra.mxu0 0
        %1489 = vmatprep.mubr.bf16.mxu0 0
        %1490 = vmatmul.mubr.bf16.gmra.mrb[0].mxu0 %v1455
        %v1491 = vpop.f32.mrb[0].mxu0
        %v1492 = vadd.f32 %v1427, %v1491
        %v1493 = vpop.f32.mrb[0].mxu0
        %v1494 = vpop.f32.mrb[0].mxu0
        %v1495 = vpop.f32.mrb[0].mxu0
        %1496 = vdwg.mxu0
        %v1497 = vadd.f32 %v1492, %v1344
        %v1498 = vsel %vm1264, %v1497, 0.0
        %1499 = vadd.xlane.f32.xlu0 %v1498
        %v1500 = vpop.xlane.xlu0 %1499
        %v1501 = vmul.f32 %v1500, %v1311
        %v1502 = vsub.f32 %v1497, %v1501
        %v1503 = vmul.f32 %v1502, %v1502
        %v1504 = vsel %vm1264, %v1503, 0.0
        %1505 = vadd.xlane.f32.xlu0 %v1504
        %v1506 = vpop.xlane.xlu0 %1505
        %v1507 = vmul.f32 %v1506, 0.032258064
        %v1508 = vrsqrt.pop %v1507
        %v1509 = vmul.f32 %v1507, %v1508
        %vm1510 = vcmp.eq.f32.partialorder %v1507, inf
        %v1511 = vsel %vm1510, %v1507, %v1509
        %vm1512 = vcmp.eq.f32.partialorder %v1507, 0.0
        %v1513 = vand.u32 %v1507, 2147483648
        %v1514 = vsel %vm1512, %v1513, %v1511
        %v1515 = vld [vmem:[%s11] sm:$0x1]
        %v1516 = vadd.f32 %v1514, 1e-05
        %v1517 = vrcp.pop %v1516
        %v1518 = vmul.f32 %v1502, %v1517
        %v1520 = vlaneseq
        %v1521 = vshrl.u32 %v1520, 7
        %v1522 = vsub.s32 0, %v1521
        %v1523 = vrot.slane %v1515, %v1522
        %v1525 = vmul.f32 %v1523, %v1518
        %v1526 = vld [vmem:[%s12] sm:$0x1]
        %v1528 = vlaneseq
        %v1529 = vshrl.u32 %v1528, 7
        %v1530 = vsub.s32 0, %v1529
        %v1531 = vrot.slane %v1526, %v1530
        %v1533 = vadd.f32 %v1525, %v1531
        %1534 = vst.msk [vmem:[%s535] sm:$0xff] %vm1264, %v1533
      $region84: #{transformer_wrapper_forward.6} parent=71 // pred_fallthru
        _
      %p1535 = scmp.lt.s32.totalorder %s29, 1
      %s1536 = scalar_select %p1535, %s29, 1
      %p1537 = scmp.lt.s32.totalorder %s30, 0
      %s1538 = scalar_select %p1537, %s30, 0
      %s1539 = sadd.s32 %s1538, %s1536
      %s1540 = smul.addr %s1539, 8
      %s1541 = scalar_lea.vmem %s13, %s1540
      // Predicated region
      $region85: #{transformer_wrapper_forward.6} parent=71 // pred_check
        %p1542 = pneg %p357
      $region86: #{transformer_wrapper_forward.6} parent=71 // pred_check_branch
        %1544 = sbr.rel (%p1542) target = $region88
      $region87: #{transformer_wrapper_forward.6} parent=71 // pred_region
        _
      $region88: #{transformer_wrapper_forward.6} parent=71 // pred_fallthru
        _
    $region72: #{transformer_wrapper_forward.6} parent=5 // pred_fallthru
      _
    %p1545 = scmp.le.s32.totalorder 2, %s19
    // Predicated region
    $region89: #{transformer_wrapper_forward.6} parent=5 // pred_check
      %p1546 = pneg %p1545
    $region90: #{transformer_wrapper_forward.6} parent=5 // pred_check_branch
      %1548 = sbr.rel (%p1546) target = $region92
    $region91: #{transformer_wrapper_forward.6} parent=5 // pred_region
      %s1549 = ssub.s32 %s19, 2
      // Predicated region
      $region93: #{transformer_wrapper_forward.6} parent=91 // pred_check
        %p1550 = pneg %p363
      $region94: #{transformer_wrapper_forward.6} parent=91 // pred_check_branch
        %1552 = sbr.rel (%p1550) target = $region96
      $region95: #{transformer_wrapper_forward.6} parent=91 // pred_region
        %p1553 = scmp.lt.s32.totalorder %s32, 1
        %s1554 = scalar_select %p1553, %s32, 1
        %p1555 = scmp.lt.s32.totalorder %s33, 0
        %s1556 = scalar_select %p1555, %s33, 0
        %s1557 = sadd.s32 %s1556, %s1554
        %s1558 = smul.addr %s1557, 8
        %s1559 = scalar_lea.vmem %s13, %s1558
      $region96: #{transformer_wrapper_forward.6} parent=91 // pred_fallthru
        _
    $region92: #{transformer_wrapper_forward.6} parent=5 // pred_fallthru
      _
  $region6: #{transformer_wrapper_forward.6} parent=0 // loop_footer
    %s23 = sadd.s32 1, %s19
  $region7: #{transformer_wrapper_forward.6} parent=0 // loop_footer_branch
    %18 = sbr.rel target = $region3
  $region8: #{transformer_wrapper_forward.6} parent=0 // loop_exit
    _

</llo_original>
